<compile_context>
chip_gen: v6e
topology: v6e:2x2x1
jax: 0.10.0
libtpu: 0.0.40
codegen_flags: <defaults>
</compile_context>

<pallas_src>
import functools

import jax
import jax.numpy as jnp
from jax.experimental import pallas as pl
from jax.experimental.pallas import tpu as pltpu

EPS = 1e-5  # nn.BatchNorm3d default


# ----------------------------------------------------------------------------
# Small helpers
# ----------------------------------------------------------------------------
def _compiler_params(n_grid_axes):
    """Parallel semantics on every grid axis + a generation-aware VMEM limit."""
    try:
        cap = pltpu.get_tpu_info().vmem_capacity_bytes
        vmem_limit = min(int(cap * 0.7), 100 * 1024 * 1024)
    except Exception:  # fall back to the compiler default if the query fails
        vmem_limit = None
    return pltpu.CompilerParams(
        dimension_semantics=("parallel",) * n_grid_axes,
        vmem_limit_bytes=vmem_limit)


def _pick_depth_tile(D, H, W, max_rows=256):
    """Largest depth tile (divisor of D) keeping the matmul M dim <= max_rows."""
    best = 1
    for t in range(1, D + 1):
        if D % t == 0 and t * H * W <= max_rows:
            best = t
    return best


def _window_depth(xp, tD):
    """(N, D+2, Hp, Wp, C) zero-padded -> (N*nD, tD+2, Hp, Wp, C) overlapping
    depth windows (halo of 1 on each side) so the conv grid can tile depth
    with plain blocked indexing."""
    N, Dp, Hp, Wp, C = xp.shape
    D = Dp - 2
    nD = D // tD
    slabs = [xp[:, i * tD:i * tD + tD + 2] for i in range(nD)]
    return jnp.stack(slabs, axis=1).reshape(N * nD, tD + 2, Hp, Wp, C)


def _im2col_patch(x, tD, H, W):
    """x: (tD+2, H+2, W+2, Cin) -> (tD*H*W, 27*Cin) patch matrix; column order
    (kd, kh, kw, cin) matches w.reshape(27*Cin, Cout)."""
    Cin = x.shape[-1]
    parts = []
    for kd in range(3):
        for kh in range(3):
            for kw in range(3):
                parts.append(
                    x[kd:kd + tD, kh:kh + H, kw:kw + W, :].reshape(tD * H * W, Cin))
    return jnp.concatenate(parts, axis=-1)


# ----------------------------------------------------------------------------
# Conv kernels: 3x3x3 "same" conv as a single MXU matmul (K = 27*Cin), plus
# fused per-tile BN partial statistics (sum, sum of squares) from the f32 acc.
# ----------------------------------------------------------------------------
def _conv_stats_kernel(x_ref, w_ref, y_ref, s_ref, q_ref, *, tD, H, W):
    # x_ref: (1, tD+2, H+2, W+2, Cin) bf16 halo window, w_ref: (27*Cin, Cout) bf16
    patch = _im2col_patch(x_ref[0], tD, H, W)
    acc = jnp.dot(patch, w_ref[...], preferred_element_type=jnp.float32)
    cout = w_ref.shape[-1]
    y_ref[...] = acc.reshape(1, tD, H, W, cout).astype(y_ref.dtype)
    s_ref[...] = jnp.sum(acc, axis=0, keepdims=True).reshape(1, 1, cout)
    q_ref[...] = jnp.sum(acc * acc, axis=0, keepdims=True).reshape(1, 1, cout)


def _conv_affine_stats_kernel(x_ref, w_ref, sc_ref, sh_ref, y_ref, s_ref, q_ref,
                              *, tD, D, H, W, nD):
    # Fuses bn1-affine + ReLU into conv2's input path.  x_ref holds a zero
    # padded halo window of the *raw* conv1 output, so padded entries must be
    # forced back to exactly zero after the affine (interior mask below).
    d0 = (pl.program_id(0) % nD) * tD        # depth offset of this halo window
    x = x_ref[0].astype(jnp.float32)         # (tD+2, H+2, W+2, C)
    h = jnp.maximum(x * sc_ref[...] + sh_ref[...], 0.0)
    shape = h.shape
    dd = jax.lax.broadcasted_iota(jnp.int32, shape, 0) + d0
    hh = jax.lax.broadcasted_iota(jnp.int32, shape, 1)
    ww = jax.lax.broadcasted_iota(jnp.int32, shape, 2)
    interior = ((dd >= 1) & (dd <= D) & (hh >= 1) & (hh <= H)
                & (ww >= 1) & (ww <= W))
    h = jnp.where(interior, h, 0.0).astype(jnp.bfloat16)

    patch = _im2col_patch(h, tD, H, W)
    acc = jnp.dot(patch, w_ref[...], preferred_element_type=jnp.float32)
    cout = w_ref.shape[-1]
    y_ref[...] = acc.reshape(1, tD, H, W, cout).astype(y_ref.dtype)
    s_ref[...] = jnp.sum(acc, axis=0, keepdims=True).reshape(1, 1, cout)
    q_ref[...] = jnp.sum(acc * acc, axis=0, keepdims=True).reshape(1, 1, cout)


def _conv_bn_stats(xw, w_flat, *, tD, D, H, W, nD, out_dtype,
                   scale=None, shift=None):
    """One pallas_call: 3x3x3 'same' conv (optionally with a fused input
    affine+ReLU) plus per-tile BN partial statistics, over grid (N*nD,)."""
    G, tDp, Hp, Wp, Cin = xw.shape
    Cout = w_flat.shape[-1]

    x_spec = pl.BlockSpec((1, tDp, Hp, Wp, Cin), lambda g: (g, 0, 0, 0, 0))
    w_spec = pl.BlockSpec((w_flat.shape[0], Cout), lambda g: (0, 0))
    out_shape = (jax.ShapeDtypeStruct((G, tD, H, W, Cout), out_dtype),
                 jax.ShapeDtypeStruct((G, 1, Cout), jnp.float32),
                 jax.ShapeDtypeStruct((G, 1, Cout), jnp.float32))
    out_specs = (pl.BlockSpec((1, tD, H, W, Cout), lambda g: (g, 0, 0, 0, 0)),
                 pl.BlockSpec((1, 1, Cout), lambda g: (g, 0, 0)),
                 pl.BlockSpec((1, 1, Cout), lambda g: (g, 0, 0)))

    if scale is None:
        kernel = functools.partial(_conv_stats_kernel, tD=tD, H=H, W=W)
        in_specs = [x_spec, w_spec]
        args = (xw, w_flat)
    else:
        kernel = functools.partial(_conv_affine_stats_kernel,
                                   tD=tD, D=D, H=H, W=W, nD=nD)
        c_spec = pl.BlockSpec((1, 1, 1, Cin), lambda g: (0, 0, 0, 0))
        in_specs = [x_spec, w_spec, c_spec, c_spec]
        args = (xw, w_flat, scale, shift)

    return pl.pallas_call(
        kernel,
        out_shape=out_shape,
        grid=(G,),
        in_specs=in_specs,
        out_specs=out_specs,
        compiler_params=_compiler_params(1),
    )(*args)


# ----------------------------------------------------------------------------
# Fused bn2-affine + residual add + ReLU, row-tiled with a lane-dense last dim.
# ----------------------------------------------------------------------------
def _affine_add_relu_kernel(y_ref, sc_ref, sh_ref, r_ref, o_ref):
    o_ref[...] = jnp.maximum(
        y_ref[...] * sc_ref[...] + sh_ref[...] + r_ref[...], 0.0)


def _choose_cols(D, H, W, C):
    # Smallest channel-suffix flattening whose last dim is lane dense.
    for cols in (C, W * C, H * W * C, D * H * W * C):
        if cols % 128 == 0 and cols <= 16384:
            return cols
    for cols in (D * H * W * C, H * W * C, W * C, C):
        if cols <= 16384:
            return cols
    return C


def _pick_row_tile(rows):
    if rows <= 8 or rows % 8 != 0:
        return rows
    cap = min(1024, rows // 2)
    best = 8
    for t in range(8, cap + 1, 8):
        if rows % t == 0:
            best = t
    return best


def bn_affine_add_relu(y2, scale, shift, identity):
    """out = relu(y2 * scale + shift + identity), tiled over rows."""
    N, D, H, W, C = y2.shape
    cols = _choose_cols(D, H, W, C)
    rows = (N * D * H * W * C) // cols
    tR = _pick_row_tile(rows)
    reps = cols // C
    scf = jnp.tile(scale.reshape(1, C).astype(jnp.float32), (1, reps))
    shf = jnp.tile(shift.reshape(1, C).astype(jnp.float32), (1, reps))
    out = pl.pallas_call(
        _affine_add_relu_kernel,
        out_shape=jax.ShapeDtypeStruct((rows, cols), jnp.float32),
        grid=(rows // tR,),
        in_specs=[pl.BlockSpec((tR, cols), lambda i: (i, 0)),
                  pl.BlockSpec((1, cols), lambda i: (0, 0)),
                  pl.BlockSpec((1, cols), lambda i: (0, 0)),
                  pl.BlockSpec((tR, cols), lambda i: (i, 0))],
        out_specs=pl.BlockSpec((tR, cols), lambda i: (i, 0)),
        compiler_params=_compiler_params(1),
    )(y2.reshape(rows, cols), scf, shf, identity.reshape(rows, cols))
    return out.reshape(N, D, H, W, C)


# ----------------------------------------------------------------------------
# BasicBlock3D forward (stride=1, downsample=None — the module defaults).
# ----------------------------------------------------------------------------
def basic_block3d_forward(x_ncdhw, params, stride=1, downsample=None):
    if stride != 1 or downsample is not None:
        # TODO(synk): stride>1 / downsample path not implemented (module defaults used).
        raise NotImplementedError("only stride=1, downsample=None supported")

    x = jnp.transpose(x_ncdhw, (0, 2, 3, 4, 1)).astype(jnp.float32)   # NDHWC
    N, D, H, W, Cin = x.shape
    planes = params["w1"].shape[-1]
    assert Cin == planes, "identity add requires inplanes == planes"

    tD = _pick_depth_tile(D, H, W)
    nD = D // tD
    cnt = float(N * D * H * W)

    w1f = params["w1"].reshape(27 * Cin, planes).astype(jnp.bfloat16)
    w2f = params["w2"].reshape(27 * planes, planes).astype(jnp.bfloat16)

    # --- conv1 (+ fused per-tile BN1 statistics); y1 stored as bf16 ----------
    # TODO(synk): the zero-pad + halo-window copy could be folded into the
    # kernel with manual DMA to avoid one extra HBM round trip of the input.
    xp = jnp.pad(x.astype(jnp.bfloat16),
                 ((0, 0), (1, 1), (1, 1), (1, 1), (0, 0)))
    xw1 = _window_depth(xp, tD)
    y1, s1, q1 = _conv_bn_stats(xw1, w1f, tD=tD, D=D, H=H, W=W, nD=nD,
                                out_dtype=jnp.bfloat16)

    mean1 = jnp.sum(s1, axis=(0, 1)) / cnt
    var1 = jnp.maximum(jnp.sum(q1, axis=(0, 1)) / cnt - mean1 * mean1, 0.0)
    scale1 = params["gamma1"].reshape(-1) / jnp.sqrt(var1 + EPS)
    shift1 = params["beta1"].reshape(-1) - mean1 * scale1

    # --- conv2 with bn1-affine + ReLU fused into its input path --------------
    y1p = jnp.pad(y1.reshape(N, D, H, W, planes),
                  ((0, 0), (1, 1), (1, 1), (1, 1), (0, 0)))
    y1w = _window_depth(y1p, tD)
    y2, s2, q2 = _conv_bn_stats(
        y1w, w2f, tD=tD, D=D, H=H, W=W, nD=nD, out_dtype=jnp.float32,
        scale=scale1.reshape(1, 1, 1, planes).astype(jnp.float32),
        shift=shift1.reshape(1, 1, 1, planes).astype(jnp.float32))

    mean2 = jnp.sum(s2, axis=(0, 1)) / cnt
    var2 = jnp.maximum(jnp.sum(q2, axis=(0, 1)) / cnt - mean2 * mean2, 0.0)
    scale2 = params["gamma2"].reshape(-1) / jnp.sqrt(var2 + EPS)
    shift2 = params["beta2"].reshape(-1) - mean2 * scale2

    # --- bn2 affine + residual add + ReLU (tiled, lane-dense) ----------------
    out = bn_affine_add_relu(y2.reshape(N, D, H, W, planes), scale2, shift2, x)
    return jnp.transpose(out, (0, 4, 1, 2, 3))        # back to NCDHW


# ----------------------------------------------------------------------------
# Pure-JAX reference with the same numerics (bf16 MXU operands, f32 accumulate,
# training-mode batch statistics) for the correctness check.
# ----------------------------------------------------------------------------
def reference_forward(x_ncdhw, params):
    x = jnp.transpose(x_ncdhw, (0, 2, 3, 4, 1)).astype(jnp.float32)

    def conv(h, w):
        return jax.lax.conv_general_dilated(
            h.astype(jnp.bfloat16), w.astype(jnp.bfloat16),
            window_strides=(1, 1, 1), padding=((1, 1), (1, 1), (1, 1)),
            dimension_numbers=("NDHWC", "DHWIO", "NDHWC"),
            preferred_element_type=jnp.float32)

    def bn_affine_params(h, gamma, beta):
        m = jnp.mean(h, axis=(0, 1, 2, 3))
        v = jnp.mean(h * h, axis=(0, 1, 2, 3)) - m * m
        scale = gamma.reshape(-1) / jnp.sqrt(v + EPS)
        shift = beta.reshape(-1) - m * scale
        return scale, shift

    y1 = conv(x, params["w1"])
    sc1, sh1 = bn_affine_params(y1, params["gamma1"], params["beta1"])
    # mirror the kernel: y1 is stored in bf16 before bn1/ReLU are applied
    h1 = jnp.maximum(y1.astype(jnp.bfloat16).astype(jnp.float32) * sc1 + sh1, 0.0)
    y2 = conv(h1, params["w2"])
    sc2, sh2 = bn_affine_params(y2, params["gamma2"], params["beta2"])
    out = jnp.maximum(y2 * sc2 + sh2 + x, 0.0)
    return jnp.transpose(out, (0, 4, 1, 2, 3))


if __name__ == "__main__":
    key = jax.random.PRNGKey(0)
    k_x, k_w1, k_w2 = jax.random.split(key, 3)

    # Small shapes: inplanes = planes = 4 (residual add requires equal channels
    # when downsample is None), batch=2, spatial 8x8x8.
    N, C, D, H, W = 2, 4, 8, 8, 8
    x = jax.random.normal(k_x, (N, C, D, H, W), jnp.float32)   # NCDHW like PyTorch

    fan_in = C * 3 * 3 * 3
    bound = 1.0 / (fan_in ** 0.5)
    params = {
        "w1": jax.random.uniform(k_w1, (3, 3, 3, C, C), jnp.float32, -bound, bound),
        "w2": jax.random.uniform(k_w2, (3, 3, 3, C, C), jnp.float32, -bound, bound),
        "gamma1": jnp.ones((1, C), jnp.float32),
        "beta1": jnp.zeros((1, C), jnp.float32),
        "gamma2": jnp.ones((1, C), jnp.float32),
        "beta2": jnp.zeros((1, C), jnp.float32),
    }

    out = basic_block3d_forward(x, params)
    out = jax.block_until_ready(out)
    assert out.shape == (N, C, D, H, W), out.shape

    ref = reference_forward(x, params)
    max_err = float(jnp.max(jnp.abs(out - ref)))
    assert jnp.allclose(out, ref, atol=2e-2, rtol=2e-2), max_err

    print("KERNEL_OK")
</pallas_src>

<mosaic_0001>
module attributes {stable_mosaic.version = 11 : i64} {
  func.func @_conv_stats_kernel(%arg0: i32, %arg1: memref<1x6x10x10x4xbf16, #tpu.memory_space<vmem>>, %arg2: memref<108x4xbf16, #tpu.memory_space<vmem>>, %arg3: memref<1x4x8x8x4xbf16, #tpu.memory_space<vmem>>, %arg4: memref<1x1x4xf32, #tpu.memory_space<vmem>>, %arg5: memref<1x1x4xf32, #tpu.memory_space<vmem>>) attributes {dimension_semantics = [#tpu.dimension_semantics<parallel>], iteration_bounds = array<i64: 4>, scalar_prefetch = 0 : i64, scratch_operands = 0 : i64, tpu.core_type = #tpu.core_type<tc>, window_params = [{transform_indices = @transform_0, window_bounds = array<i64: 1, 6, 10, 10, 4>}, {pipeline_mode = #tpu.pipeline_mode<synchronous>, transform_indices = @transform_1, window_bounds = array<i64: 108, 4>}, {transform_indices = @transform_2, window_bounds = array<i64: 1, 4, 8, 8, 4>}, {transform_indices = @transform_3, window_bounds = array<i64: 1, 1, 4>}, {transform_indices = @transform_4, window_bounds = array<i64: 1, 1, 4>}]} {
    %c0 = arith.constant 0 : index
    %c0_0 = arith.constant 0 : index
    %c0_1 = arith.constant 0 : index
    %c0_2 = arith.constant 0 : index
    %c0_3 = arith.constant 0 : index
    %0 = vector.load %arg1[%c0, %c0_0, %c0_1, %c0_2, %c0_3] : memref<1x6x10x10x4xbf16, #tpu.memory_space<vmem>>, vector<1x6x10x10x4xbf16>
    %1 = vector.shape_cast %0 : vector<1x6x10x10x4xbf16> to vector<6x10x10x4xbf16>
    %2 = vector.extract_strided_slice %1 {offsets = [0, 0, 0, 0], sizes = [4, 8, 8, 4], strides = [1, 1, 1, 1]} : vector<6x10x10x4xbf16> to vector<4x8x8x4xbf16>
    %3 = vector.shape_cast %2 : vector<4x8x8x4xbf16> to vector<256x4xbf16>
    %4 = vector.extract_strided_slice %1 {offsets = [0, 0, 1, 0], sizes = [4, 8, 8, 4], strides = [1, 1, 1, 1]} : vector<6x10x10x4xbf16> to vector<4x8x8x4xbf16>
    %5 = vector.shape_cast %4 : vector<4x8x8x4xbf16> to vector<256x4xbf16>
    %6 = vector.extract_strided_slice %1 {offsets = [0, 0, 2, 0], sizes = [4, 8, 8, 4], strides = [1, 1, 1, 1]} : vector<6x10x10x4xbf16> to vector<4x8x8x4xbf16>
    %7 = vector.shape_cast %6 : vector<4x8x8x4xbf16> to vector<256x4xbf16>
    %8 = vector.extract_strided_slice %1 {offsets = [0, 1, 0, 0], sizes = [4, 8, 8, 4], strides = [1, 1, 1, 1]} : vector<6x10x10x4xbf16> to vector<4x8x8x4xbf16>
    %9 = vector.shape_cast %8 : vector<4x8x8x4xbf16> to vector<256x4xbf16>
    %10 = vector.extract_strided_slice %1 {offsets = [0, 1, 1, 0], sizes = [4, 8, 8, 4], strides = [1, 1, 1, 1]} : vector<6x10x10x4xbf16> to vector<4x8x8x4xbf16>
    %11 = vector.shape_cast %10 : vector<4x8x8x4xbf16> to vector<256x4xbf16>
    %12 = vector.extract_strided_slice %1 {offsets = [0, 1, 2, 0], sizes = [4, 8, 8, 4], strides = [1, 1, 1, 1]} : vector<6x10x10x4xbf16> to vector<4x8x8x4xbf16>
    %13 = vector.shape_cast %12 : vector<4x8x8x4xbf16> to vector<256x4xbf16>
    %14 = vector.extract_strided_slice %1 {offsets = [0, 2, 0, 0], sizes = [4, 8, 8, 4], strides = [1, 1, 1, 1]} : vector<6x10x10x4xbf16> to vector<4x8x8x4xbf16>
    %15 = vector.shape_cast %14 : vector<4x8x8x4xbf16> to vector<256x4xbf16>
    %16 = vector.extract_strided_slice %1 {offsets = [0, 2, 1, 0], sizes = [4, 8, 8, 4], strides = [1, 1, 1, 1]} : vector<6x10x10x4xbf16> to vector<4x8x8x4xbf16>
    %17 = vector.shape_cast %16 : vector<4x8x8x4xbf16> to vector<256x4xbf16>
    %18 = vector.extract_strided_slice %1 {offsets = [0, 2, 2, 0], sizes = [4, 8, 8, 4], strides = [1, 1, 1, 1]} : vector<6x10x10x4xbf16> to vector<4x8x8x4xbf16>
    %19 = vector.shape_cast %18 : vector<4x8x8x4xbf16> to vector<256x4xbf16>
    %20 = vector.extract_strided_slice %1 {offsets = [1, 0, 0, 0], sizes = [4, 8, 8, 4], strides = [1, 1, 1, 1]} : vector<6x10x10x4xbf16> to vector<4x8x8x4xbf16>
    %21 = vector.shape_cast %20 : vector<4x8x8x4xbf16> to vector<256x4xbf16>
    %22 = vector.extract_strided_slice %1 {offsets = [1, 0, 1, 0], sizes = [4, 8, 8, 4], strides = [1, 1, 1, 1]} : vector<6x10x10x4xbf16> to vector<4x8x8x4xbf16>
    %23 = vector.shape_cast %22 : vector<4x8x8x4xbf16> to vector<256x4xbf16>
    %24 = vector.extract_strided_slice %1 {offsets = [1, 0, 2, 0], sizes = [4, 8, 8, 4], strides = [1, 1, 1, 1]} : vector<6x10x10x4xbf16> to vector<4x8x8x4xbf16>
    %25 = vector.shape_cast %24 : vector<4x8x8x4xbf16> to vector<256x4xbf16>
    %26 = vector.extract_strided_slice %1 {offsets = [1, 1, 0, 0], sizes = [4, 8, 8, 4], strides = [1, 1, 1, 1]} : vector<6x10x10x4xbf16> to vector<4x8x8x4xbf16>
    %27 = vector.shape_cast %26 : vector<4x8x8x4xbf16> to vector<256x4xbf16>
    %28 = vector.extract_strided_slice %1 {offsets = [1, 1, 1, 0], sizes = [4, 8, 8, 4], strides = [1, 1, 1, 1]} : vector<6x10x10x4xbf16> to vector<4x8x8x4xbf16>
    %29 = vector.shape_cast %28 : vector<4x8x8x4xbf16> to vector<256x4xbf16>
    %30 = vector.extract_strided_slice %1 {offsets = [1, 1, 2, 0], sizes = [4, 8, 8, 4], strides = [1, 1, 1, 1]} : vector<6x10x10x4xbf16> to vector<4x8x8x4xbf16>
    %31 = vector.shape_cast %30 : vector<4x8x8x4xbf16> to vector<256x4xbf16>
    %32 = vector.extract_strided_slice %1 {offsets = [1, 2, 0, 0], sizes = [4, 8, 8, 4], strides = [1, 1, 1, 1]} : vector<6x10x10x4xbf16> to vector<4x8x8x4xbf16>
    %33 = vector.shape_cast %32 : vector<4x8x8x4xbf16> to vector<256x4xbf16>
    %34 = vector.extract_strided_slice %1 {offsets = [1, 2, 1, 0], sizes = [4, 8, 8, 4], strides = [1, 1, 1, 1]} : vector<6x10x10x4xbf16> to vector<4x8x8x4xbf16>
    %35 = vector.shape_cast %34 : vector<4x8x8x4xbf16> to vector<256x4xbf16>
    %36 = vector.extract_strided_slice %1 {offsets = [1, 2, 2, 0], sizes = [4, 8, 8, 4], strides = [1, 1, 1, 1]} : vector<6x10x10x4xbf16> to vector<4x8x8x4xbf16>
    %37 = vector.shape_cast %36 : vector<4x8x8x4xbf16> to vector<256x4xbf16>
    %38 = vector.extract_strided_slice %1 {offsets = [2, 0, 0, 0], sizes = [4, 8, 8, 4], strides = [1, 1, 1, 1]} : vector<6x10x10x4xbf16> to vector<4x8x8x4xbf16>
    %39 = vector.shape_cast %38 : vector<4x8x8x4xbf16> to vector<256x4xbf16>
    %40 = vector.extract_strided_slice %1 {offsets = [2, 0, 1, 0], sizes = [4, 8, 8, 4], strides = [1, 1, 1, 1]} : vector<6x10x10x4xbf16> to vector<4x8x8x4xbf16>
    %41 = vector.shape_cast %40 : vector<4x8x8x4xbf16> to vector<256x4xbf16>
    %42 = vector.extract_strided_slice %1 {offsets = [2, 0, 2, 0], sizes = [4, 8, 8, 4], strides = [1, 1, 1, 1]} : vector<6x10x10x4xbf16> to vector<4x8x8x4xbf16>
    %43 = vector.shape_cast %42 : vector<4x8x8x4xbf16> to vector<256x4xbf16>
    %44 = vector.extract_strided_slice %1 {offsets = [2, 1, 0, 0], sizes = [4, 8, 8, 4], strides = [1, 1, 1, 1]} : vector<6x10x10x4xbf16> to vector<4x8x8x4xbf16>
    %45 = vector.shape_cast %44 : vector<4x8x8x4xbf16> to vector<256x4xbf16>
    %46 = vector.extract_strided_slice %1 {offsets = [2, 1, 1, 0], sizes = [4, 8, 8, 4], strides = [1, 1, 1, 1]} : vector<6x10x10x4xbf16> to vector<4x8x8x4xbf16>
    %47 = vector.shape_cast %46 : vector<4x8x8x4xbf16> to vector<256x4xbf16>
    %48 = vector.extract_strided_slice %1 {offsets = [2, 1, 2, 0], sizes = [4, 8, 8, 4], strides = [1, 1, 1, 1]} : vector<6x10x10x4xbf16> to vector<4x8x8x4xbf16>
    %49 = vector.shape_cast %48 : vector<4x8x8x4xbf16> to vector<256x4xbf16>
    %50 = vector.extract_strided_slice %1 {offsets = [2, 2, 0, 0], sizes = [4, 8, 8, 4], strides = [1, 1, 1, 1]} : vector<6x10x10x4xbf16> to vector<4x8x8x4xbf16>
    %51 = vector.shape_cast %50 : vector<4x8x8x4xbf16> to vector<256x4xbf16>
    %52 = vector.extract_strided_slice %1 {offsets = [2, 2, 1, 0], sizes = [4, 8, 8, 4], strides = [1, 1, 1, 1]} : vector<6x10x10x4xbf16> to vector<4x8x8x4xbf16>
    %53 = vector.shape_cast %52 : vector<4x8x8x4xbf16> to vector<256x4xbf16>
    %54 = vector.extract_strided_slice %1 {offsets = [2, 2, 2, 0], sizes = [4, 8, 8, 4], strides = [1, 1, 1, 1]} : vector<6x10x10x4xbf16> to vector<4x8x8x4xbf16>
    %55 = vector.shape_cast %54 : vector<4x8x8x4xbf16> to vector<256x4xbf16>
    %56 = tpu.concatenate %3, %5, %7, %9, %11, %13, %15, %17, %19, %21, %23, %25, %27, %29, %31, %33 in 1 : vector<256x4xbf16>, vector<256x4xbf16>, vector<256x4xbf16>, vector<256x4xbf16>, vector<256x4xbf16>, vector<256x4xbf16>, vector<256x4xbf16>, vector<256x4xbf16>, vector<256x4xbf16>, vector<256x4xbf16>, vector<256x4xbf16>, vector<256x4xbf16>, vector<256x4xbf16>, vector<256x4xbf16>, vector<256x4xbf16>, vector<256x4xbf16> -> vector<256x64xbf16>
    %57 = tpu.concatenate %35, %37, %39, %41, %43, %45, %47, %49, %51, %53, %55 in 1 : vector<256x4xbf16>, vector<256x4xbf16>, vector<256x4xbf16>, vector<256x4xbf16>, vector<256x4xbf16>, vector<256x4xbf16>, vector<256x4xbf16>, vector<256x4xbf16>, vector<256x4xbf16>, vector<256x4xbf16>, vector<256x4xbf16> -> vector<256x44xbf16>
    %58 = tpu.concatenate %56, %57 in 1 : vector<256x64xbf16>, vector<256x44xbf16> -> vector<256x108xbf16>
    %c0_4 = arith.constant 0 : index
    %c0_5 = arith.constant 0 : index
    %59 = vector.load %arg2[%c0_4, %c0_5] : memref<108x4xbf16, #tpu.memory_space<vmem>>, vector<108x4xbf16>
    %cst = arith.constant dense<0.000000e+00> : vector<256x4xf32>
    %60 = tpu.matmul %58, %59, %cst {dimension_numbers = #tpu.dot_dimension_numbers<[1], [0], [0], [1], [0, 0, 1, 1], [], []>} : vector<256x108xbf16>, vector<108x4xbf16>, vector<256x4xf32> -> vector<256x4xf32>
    %61 = vector.shape_cast %60 : vector<256x4xf32> to vector<1x4x8x8x4xf32>
    %62 = arith.truncf %61 : vector<1x4x8x8x4xf32> to vector<1x4x8x8x4xbf16>
    %c0_6 = arith.constant 0 : index
    %c0_7 = arith.constant 0 : index
    %c0_8 = arith.constant 0 : index
    %c0_9 = arith.constant 0 : index
    %c0_10 = arith.constant 0 : index
    %63 = vector.load %arg3[%c0_6, %c0_7, %c0_8, %c0_9, %c0_10] : memref<1x4x8x8x4xbf16, #tpu.memory_space<vmem>>, vector<1x4x8x8x4xbf16>
    tpu.vector_store %arg3[%c0_6, %c0_7, %c0_8, %c0_9, %c0_10], %62 {strides = array<i32>} : memref<1x4x8x8x4xbf16, #tpu.memory_space<vmem>>, vector<1x4x8x8x4xbf16>,
    %cst_11 = arith.constant dense<0.000000e+00> : vector<4xf32>
    %64 = vector.multi_reduction <add>, %60, %cst_11 [0] : vector<256x4xf32> to vector<4xf32>
    %65 = vector.shape_cast %64 : vector<4xf32> to vector<1x4xf32>
    %66 = vector.shape_cast %65 : vector<1x4xf32> to vector<1x1x4xf32>
    %c0_12 = arith.constant 0 : index
    %c0_13 = arith.constant 0 : index
    %c0_14 = arith.constant 0 : index
    %67 = vector.load %arg4[%c0_12, %c0_13, %c0_14] : memref<1x1x4xf32, #tpu.memory_space<vmem>>, vector<1x1x4xf32>
    tpu.vector_store %arg4[%c0_12, %c0_13, %c0_14], %66 {strides = array<i32>} : memref<1x1x4xf32, #tpu.memory_space<vmem>>, vector<1x1x4xf32>,
    %68 = arith.mulf %60, %60 : vector<256x4xf32>
    %cst_15 = arith.constant dense<0.000000e+00> : vector<4xf32>
    %69 = vector.multi_reduction <add>, %68, %cst_15 [0] : vector<256x4xf32> to vector<4xf32>
    %70 = vector.shape_cast %69 : vector<4xf32> to vector<1x4xf32>
    %71 = vector.shape_cast %70 : vector<1x4xf32> to vector<1x1x4xf32>
    %c0_16 = arith.constant 0 : index
    %c0_17 = arith.constant 0 : index
    %c0_18 = arith.constant 0 : index
    %72 = vector.load %arg5[%c0_16, %c0_17, %c0_18] : memref<1x1x4xf32, #tpu.memory_space<vmem>>, vector<1x1x4xf32>
    tpu.vector_store %arg5[%c0_16, %c0_17, %c0_18], %71 {strides = array<i32>} : memref<1x1x4xf32, #tpu.memory_space<vmem>>, vector<1x1x4xf32>,
    return
  }
  func.func @transform_0(%arg0: i32) -> (i32, i32, i32, i32, i32) {
    %c0_i32 = arith.constant 0 : i32
    %c0_i32_0 = arith.constant 0 : i32
    %c0_i32_1 = arith.constant 0 : i32
    %c0_i32_2 = arith.constant 0 : i32
    %c0_i32_3 = arith.constant 0 : i32
    return %arg0, %c0_i32, %c0_i32_0, %c0_i32_1, %c0_i32_2 : i32, i32, i32, i32, i32
  }
  func.func @transform_1(%arg0: i32) -> (i32, i32) {
    %c0_i32 = arith.constant 0 : i32
    %c0_i32_0 = arith.constant 0 : i32
    %c0_i32_1 = arith.constant 0 : i32
    return %c0_i32, %c0_i32_0 : i32, i32
  }
  func.func @transform_2(%arg0: i32) -> (i32, i32, i32, i32, i32) {
    %c0_i32 = arith.constant 0 : i32
    %c0_i32_0 = arith.constant 0 : i32
    %c0_i32_1 = arith.constant 0 : i32
    %c0_i32_2 = arith.constant 0 : i32
    %c0_i32_3 = arith.constant 0 : i32
    return %arg0, %c0_i32, %c0_i32_0, %c0_i32_1, %c0_i32_2 : i32, i32, i32, i32, i32
  }
  func.func @transform_3(%arg0: i32) -> (i32, i32, i32) {
    %c0_i32 = arith.constant 0 : i32
    %c0_i32_0 = arith.constant 0 : i32
    %c0_i32_1 = arith.constant 0 : i32
    return %arg0, %c0_i32, %c0_i32_0 : i32, i32, i32
  }
  func.func @transform_4(%arg0: i32) -> (i32, i32, i32) {
    %c0_i32 = arith.constant 0 : i32
    %c0_i32_0 = arith.constant 0 : i32
    %c0_i32_1 = arith.constant 0 : i32
    return %arg0, %c0_i32, %c0_i32_0 : i32, i32, i32
  }
}

</mosaic_0001>

<llo_original>
// kernel: tpu_custom_call.1
$region0: #{tpu_custom_call.1}
  #allocation0 [shape = 'u32[]', space=smem, size = 0x4, offset = 0x4, fixed_abs, tag = 'smem constant byte address 0x4 - core index']
  #allocation1 [shape = 'u32[144,128]{1,0:T(1,128)}', space=vmem, size = 0x12000, scoped, tag = 'internal scratch']
  %s0 = inlined_call_operand.vmem [shape: bf16[4,6,10,10,4], index: 0, kind: input, shape index: {}]
  %s1 = inlined_call_operand.vmem [shape: bf16[108,4], index: 1, kind: input, shape index: {}]
  %s2 = inlined_call_operand.vmem [shape: bf16[4,4,8,8,4], index: 2, kind: output, shape index: {0}]
  %s3 = inlined_call_operand.hbm [shape: f32[4,1,4], index: 3, kind: output, shape index: {1}]
  %s4 = inlined_call_operand.hbm [shape: f32[4,1,4], index: 4, kind: output, shape index: {2}]
  %5 = xla_tuple %s2, %s3, %s4
  %s6 = sld [smem:[#allocation0]]
  $region57: #{tpu_custom_call.1} parent=0
    _
  %s8 = ssub.s32 1, %s6
  %s9 = scalar_select 0, %s8, %s6
  $region1: #{tpu_custom_call.1} parent=0
    #allocation2 [shape = 'u8[1024]{0}', space=vmem, size = 0x400, scoped, tag = 'output window, operand 1']
    #allocation3 [shape = 's32[2]{0}', space=sflag, size = 0x8, scoped, tag = 'scoped memory for tpu_custom_call.1']
    #allocation4 [shape = 'u8[1024]{0}', space=vmem, size = 0x400, scoped, tag = 'output window, operand 2']
    #allocation5 [shape = 's32[2]{0}', space=sflag, size = 0x8, scoped, tag = 'scoped memory for tpu_custom_call.1']
    %10 = vsyncpa [#allocation3], 0
    %s11 = scalar_lea.sflag [#allocation3], 1
    %12 = vsyncpa %s11, 0
    %13 = vsyncpa [#allocation5], 0
    %s14 = scalar_lea.sflag [#allocation5], 1
    %15 = vsyncpa %s14, 0
    loop: start=0, step=1, limit=6
    $region2: #{tpu_custom_call.1} parent=1 // loop_pre_header
      _
    $region3: #{tpu_custom_call.1} parent=1 // loop_header
      %s17 = sphi 0, %s21
      %p18 = scmp.ge.s32.totalorder %s17, 6
      %s27 = sphi 0, %s29
      %s30 = sphi 0, %s27
      %s31 = sphi 0, %s30
      %s47 = sphi 0, %s31
      %s51 = sphi 0, %s51
      %s53 = sphi 0, %s51
      %s54 = sphi 0, %s53
      %s68 = sphi 0, %s54
      %s74 = sphi 0, %s76
      %s77 = sphi 0, %s74
      %s78 = sphi 0, %s77
      %s94 = sphi 0, %s78
      %s100 = sphi 0, %s102
      %s103 = sphi 0, %s100
      %s104 = sphi 0, %s103
      %s120 = sphi 0, %s104
      %s126 = sphi 0, %s128
      %s129 = sphi 0, %s126
      %s130 = sphi 0, %s129
      %s146 = sphi 0, %s130
    $region4: #{tpu_custom_call.1} parent=1 // loop_header_branch
      %20 = sbr.rel (%p18) target = $region8
    $region5: #{tpu_custom_call.1} parent=1 // loop_body
      %s22 = ssub.s32 %s17, 1
      %s23 = ssub.s32 %s17, 2
      %s24 = sadd.s32 %s17, 1
      %s25 = ssub.s32 %s17, %s24
      %p26 = scmp.eq.s32.totalorder %s25, 0
      %s28 = sadd.s32 %s27, 1
      %s29 = scalar_select %p26, %s27, %s28
      %p32 = pneg %p26
      %p33 = scmp.eq.s32.totalorder %s17, 3
      %p34 = por %p32, %p33
      %p35 = scmp.ne.s32.totalorder %s27, %s30
      %p36 = scmp.eq.s32.totalorder %s17, 0
      %p37 = por %p35, %p36
      %p38 = scmp.ne.s32.totalorder %s27, %s30
      %p39 = scmp.eq.s32.totalorder %s22, 3
      %p40 = por %p38, %p39
      %p41 = scmp.ne.s32.totalorder %s30, %s31
      %p42 = scmp.eq.s32.totalorder %s22, 0
      %p43 = por %p41, %p42
      %p44 = scmp.ne.s32.totalorder %s30, %s31
      %p45 = scmp.eq.s32.totalorder %s23, 3
      %p46 = por %p44, %p45
      %p48 = scmp.ne.s32.totalorder %s31, %s47
      %p49 = scmp.eq.s32.totalorder %s23, 0
      %p50 = por %p48, %p49
      %s52 = sadd.s32 %s51, 1
      %p55 = scmp.eq.s32.totalorder %s17, 3
      %p56 = scmp.ne.s32.totalorder %s51, %s53
      %p57 = scmp.eq.s32.totalorder %s17, 0
      %p58 = por %p56, %p57
      %p59 = scmp.ne.s32.totalorder %s51, %s53
      %p60 = scmp.eq.s32.totalorder %s22, 3
      %p61 = por %p59, %p60
      %p62 = scmp.ne.s32.totalorder %s53, %s54
      %p63 = scmp.eq.s32.totalorder %s22, 0
      %p64 = por %p62, %p63
      %p65 = scmp.ne.s32.totalorder %s53, %s54
      %p66 = scmp.eq.s32.totalorder %s23, 3
      %p67 = por %p65, %p66
      %p69 = scmp.ne.s32.totalorder %s54, %s68
      %p70 = scmp.eq.s32.totalorder %s23, 0
      %p71 = por %p69, %p70
      %s72 = ssub.s32 %s17, %s24
      %p73 = scmp.eq.s32.totalorder %s72, 0
      %s75 = sadd.s32 %s74, 1
      %s76 = scalar_select %p73, %s74, %s75
      %p79 = pneg %p73
      %p80 = scmp.eq.s32.totalorder %s17, 3
      %p81 = por %p79, %p80
      %p82 = scmp.ne.s32.totalorder %s74, %s77
      %p83 = scmp.eq.s32.totalorder %s17, 0
      %p84 = por %p82, %p83
      %p85 = scmp.ne.s32.totalorder %s74, %s77
      %p86 = scmp.eq.s32.totalorder %s22, 3
      %p87 = por %p85, %p86
      %p88 = scmp.ne.s32.totalorder %s77, %s78
      %p89 = scmp.eq.s32.totalorder %s22, 0
      %p90 = por %p88, %p89
      %p91 = scmp.ne.s32.totalorder %s77, %s78
      %p92 = scmp.eq.s32.totalorder %s23, 3
      %p93 = por %p91, %p92
      %p95 = scmp.ne.s32.totalorder %s78, %s94
      %p96 = scmp.eq.s32.totalorder %s23, 0
      %p97 = por %p95, %p96
      %s98 = ssub.s32 %s17, %s24
      %p99 = scmp.eq.s32.totalorder %s98, 0
      %s101 = sadd.s32 %s100, 1
      %s102 = scalar_select %p99, %s100, %s101
      %p105 = pneg %p99
      %p106 = scmp.eq.s32.totalorder %s17, 3
      %p107 = por %p105, %p106
      %p108 = scmp.ne.s32.totalorder %s100, %s103
      %p109 = scmp.eq.s32.totalorder %s17, 0
      %p110 = por %p108, %p109
      %p111 = scmp.ne.s32.totalorder %s100, %s103
      %p112 = scmp.eq.s32.totalorder %s22, 3
      %p113 = por %p111, %p112
      %p114 = scmp.ne.s32.totalorder %s103, %s104
      %p115 = scmp.eq.s32.totalorder %s22, 0
      %p116 = por %p114, %p115
      %p117 = scmp.ne.s32.totalorder %s103, %s104
      %p118 = scmp.eq.s32.totalorder %s23, 3
      %p119 = por %p117, %p118
      %p121 = scmp.ne.s32.totalorder %s104, %s120
      %p122 = scmp.eq.s32.totalorder %s23, 0
      %p123 = por %p121, %p122
      %s124 = ssub.s32 %s17, %s24
      %p125 = scmp.eq.s32.totalorder %s124, 0
      %s127 = sadd.s32 %s126, 1
      %s128 = scalar_select %p125, %s126, %s127
      %p131 = pneg %p125
      %p132 = scmp.eq.s32.totalorder %s17, 3
      %p133 = por %p131, %p132
      %p134 = scmp.ne.s32.totalorder %s126, %s129
      %p135 = scmp.eq.s32.totalorder %s17, 0
      %p136 = por %p134, %p135
      %p137 = scmp.ne.s32.totalorder %s126, %s129
      %p138 = scmp.eq.s32.totalorder %s22, 3
      %p139 = por %p137, %p138
      %p140 = scmp.ne.s32.totalorder %s129, %s130
      %p141 = scmp.eq.s32.totalorder %s22, 0
      %p142 = por %p140, %p141
      %p143 = scmp.ne.s32.totalorder %s129, %s130
      %p144 = scmp.eq.s32.totalorder %s23, 3
      %p145 = por %p143, %p144
      %p147 = scmp.ne.s32.totalorder %s130, %s146
      %p148 = scmp.eq.s32.totalorder %s23, 0
      %p149 = por %p147, %p148
      %p150 = scmp.le.s32.totalorder 1, %s17
      %p151 = scmp.lt.s32.totalorder %s17, 5
      %p152 = pnand %p150, %p151
      %p153 = pneg %p152
      // Predicated region
      $region9: #{tpu_custom_call.1} parent=5 // pred_check
        _
      $region10: #{tpu_custom_call.1} parent=5 // pred_check_branch
        %155 = sbr.rel (%p152) target = $region12
      $region11: #{tpu_custom_call.1} parent=5 // pred_region
        %s156 = ssub.s32 %s17, 1
        // Predicated region
        $region13: #{tpu_custom_call.1} parent=11 // pred_check
          %p157 = pneg %p64
        $region14: #{tpu_custom_call.1} parent=11 // pred_check_branch
          %159 = sbr.rel (%p157) target = $region16
        $region15: #{tpu_custom_call.1} parent=11 // pred_region
          _
        $region16: #{tpu_custom_call.1} parent=11 // pred_fallthru
          _
      $region12: #{tpu_custom_call.1} parent=5 // pred_fallthru
        _
      %p160 = scmp.lt.s32.totalorder %s17, 4
      // Predicated region
      $region17: #{tpu_custom_call.1} parent=5 // pred_check
        %p161 = pneg %p160
      $region18: #{tpu_custom_call.1} parent=5 // pred_check_branch
        %163 = sbr.rel (%p161) target = $region20
      $region19: #{tpu_custom_call.1} parent=5 // pred_region
        // Predicated region
        $region21: #{tpu_custom_call.1} parent=19 // pred_check
          %p164 = pneg %p37
        $region22: #{tpu_custom_call.1} parent=19 // pred_check_branch
          %166 = sbr.rel (%p164) target = $region24
        $region23: #{tpu_custom_call.1} parent=19 // pred_region
          %p167 = scmp.lt.s32.totalorder %s17, 3
          %s168 = scalar_select %p167, %s17, 3
          %s169 = smul.addr %s168, 120
          %s170 = smul.addr %s169, 4
          %s171 = scalar_lea.vmem %s0, %s170
        $region24: #{tpu_custom_call.1} parent=19 // pred_fallthru
          _
      $region20: #{tpu_custom_call.1} parent=5 // pred_fallthru
        _
      %p172 = scmp.le.s32.totalorder 1, %s17
      %p173 = scmp.lt.s32.totalorder %s17, 5
      %p174 = pnand %p172, %p173
      %p175 = pneg %p174
      // Predicated region
      $region25: #{tpu_custom_call.1} parent=5 // pred_check
        _
      $region26: #{tpu_custom_call.1} parent=5 // pred_check_branch
        %177 = sbr.rel (%p174) target = $region28
      $region27: #{tpu_custom_call.1} parent=5 // pred_region
        %s178 = ssub.s32 %s17, 1
        %p179 = scmp.lt.s32.totalorder %s22, 3
        %s180 = scalar_select %p179, %s22, 3
        %s181 = smul.addr %s180, 120
        %s182 = smul.addr %s181, 4
        %s183 = scalar_lea.vmem %s0, %s182
        %p184 = pneg %p43
        %p185 = pneg %p40
        %p186 = pneg %p64
        %p187 = pneg %p61
        %p188 = pneg %p90
        %p189 = pneg %p87
        %p190 = scmp.lt.s32.totalorder %s22, 3
        %s191 = scalar_select %p190, %s22, 3
        %s192 = smul.addr %s191, 32
        %s193 = smul.addr %s192, 4
        %s194 = scalar_lea.vmem %s2, %s193
        %p195 = pneg %p116
        %p196 = pneg %p113
        %s197 = sand.u32 %s103, 1
        %s198 = scalar_lea.sflag [#allocation3], %s197
        %s199 = sand.u32 %s103, 1
        %s200 = scalar_lea.vmem [#allocation2], %s199
        %p201 = pneg %p142
        %p202 = pneg %p139
        %s203 = sand.u32 %s129, 1
        %s204 = scalar_lea.sflag [#allocation5], %s203
        %s205 = sand.u32 %s129, 1
        %s206 = scalar_lea.vmem [#allocation4], %s205
        %p207 = scmp.lt.s32.totalorder %s22, 3
        %s208 = scalar_select %p207, %s22, 3
        %s209 = smul.addr %s208, 120
        %s210 = smul.addr %s209, 4
        %s211 = scalar_lea.vmem %s0, %s210
        %p212 = scmp.lt.s32.totalorder %s22, 3
        %s213 = scalar_select %p212, %s22, 3
        %s214 = smul.addr %s213, 32
        %s215 = smul.addr %s214, 4
        %s216 = scalar_lea.vmem %s2, %s215
        %v218 = vld [vmem:[%s211] sm:$0xf]
        %v219 = vld [vmem:[%s211 + $0x4] sm:$0x1]
        %v220 = vld [vmem:[%s211 + $0x8] sm:$0xf]
        %v221 = vld [vmem:[%s211 + $0xc] sm:$0x1]
        %v222 = vld [vmem:[%s211 + $0x10] sm:$0xf]
        %v223 = vld [vmem:[%s211 + $0x14] sm:$0x1]
        %v224 = vld [vmem:[%s211 + $0x18] sm:$0xf]
        %v225 = vld [vmem:[%s211 + $0x1c] sm:$0x1]
        %v226 = vld [vmem:[%s211 + $0x20] sm:$0xf]
        %v227 = vld [vmem:[%s211 + $0x24] sm:$0x1]
        %v228 = vld [vmem:[%s211 + $0x28] sm:$0xf]
        %v229 = vld [vmem:[%s211 + $0x2c] sm:$0x1]
        %v230 = vld [vmem:[%s211 + $0x30] sm:$0xf]
        %v231 = vld [vmem:[%s211 + $0x34] sm:$0x1]
        %v232 = vld [vmem:[%s211 + $0x38] sm:$0xf]
        %v233 = vld [vmem:[%s211 + $0x3c] sm:$0x1]
        %v234 = vld [vmem:[%s211 + $0x40] sm:$0xf]
        %v235 = vld [vmem:[%s211 + $0x44] sm:$0x1]
        %v236 = vld [vmem:[%s211 + $0x48] sm:$0xf]
        %v237 = vld [vmem:[%s211 + $0x4c] sm:$0x1]
        %v238 = vld [vmem:[%s211 + $0x50] sm:$0xf]
        %v239 = vld [vmem:[%s211 + $0x54] sm:$0x1]
        %v240 = vld [vmem:[%s211 + $0x58] sm:$0xf]
        %v241 = vld [vmem:[%s211 + $0x5c] sm:$0x1]
        %v242 = vld [vmem:[%s211 + $0x60] sm:$0xf]
        %v243 = vld [vmem:[%s211 + $0x64] sm:$0x1]
        %v244 = vld [vmem:[%s211 + $0x68] sm:$0xf]
        %v245 = vld [vmem:[%s211 + $0x6c] sm:$0x1]
        %v246 = vld [vmem:[%s211 + $0x70] sm:$0xf]
        %v247 = vld [vmem:[%s211 + $0x74] sm:$0x1]
        %v248 = vld [vmem:[%s211 + $0x78] sm:$0xf]
        %v249 = vld [vmem:[%s211 + $0x7c] sm:$0x1]
        %v250 = vld [vmem:[%s211 + $0x80] sm:$0xf]
        %v251 = vld [vmem:[%s211 + $0x84] sm:$0x1]
        %v252 = vld [vmem:[%s211 + $0x88] sm:$0xf]
        %v253 = vld [vmem:[%s211 + $0x8c] sm:$0x1]
        %v254 = vld [vmem:[%s211 + $0x90] sm:$0xf]
        %v255 = vld [vmem:[%s211 + $0x94] sm:$0x1]
        %v256 = vld [vmem:[%s211 + $0x98] sm:$0xf]
        %v257 = vld [vmem:[%s211 + $0x9c] sm:$0x1]
        %v258 = vld [vmem:[%s211 + $0xa0] sm:$0xf]
        %v259 = vld [vmem:[%s211 + $0xa4] sm:$0x1]
        %v260 = vld [vmem:[%s211 + $0xa8] sm:$0xf]
        %v261 = vld [vmem:[%s211 + $0xac] sm:$0x1]
        %v262 = vld [vmem:[%s211 + $0xb0] sm:$0xf]
        %v263 = vld [vmem:[%s211 + $0xb4] sm:$0x1]
        %v264 = vld [vmem:[%s211 + $0xb8] sm:$0xf]
        %v265 = vld [vmem:[%s211 + $0xbc] sm:$0x1]
        %v266 = vld [vmem:[%s211 + $0xc0] sm:$0xf]
        %v267 = vld [vmem:[%s211 + $0xc4] sm:$0x1]
        %v268 = vld [vmem:[%s211 + $0xc8] sm:$0xf]
        %v269 = vld [vmem:[%s211 + $0xcc] sm:$0x1]
        %v270 = vld [vmem:[%s211 + $0xd0] sm:$0xf]
        %v271 = vld [vmem:[%s211 + $0xd4] sm:$0x1]
        %v272 = vld [vmem:[%s211 + $0xd8] sm:$0xf]
        %v273 = vld [vmem:[%s211 + $0xdc] sm:$0x1]
        %v274 = vld [vmem:[%s211 + $0xe0] sm:$0xf]
        %v275 = vld [vmem:[%s211 + $0xe4] sm:$0x1]
        %v276 = vld [vmem:[%s211 + $0xe8] sm:$0xf]
        %v277 = vld [vmem:[%s211 + $0xec] sm:$0x1]
        %v278 = vld [vmem:[%s211 + $0xf0] sm:$0xf]
        %v279 = vld [vmem:[%s211 + $0xf4] sm:$0x1]
        %v280 = vld [vmem:[%s211 + $0xf8] sm:$0xf]
        %v281 = vld [vmem:[%s211 + $0xfc] sm:$0x1]
        %v282 = vld [vmem:[%s211 + $0x100] sm:$0xf]
        %v283 = vld [vmem:[%s211 + $0x104] sm:$0x1]
        %v284 = vld [vmem:[%s211 + $0x108] sm:$0xf]
        %v285 = vld [vmem:[%s211 + $0x10c] sm:$0x1]
        %v286 = vld [vmem:[%s211 + $0x110] sm:$0xf]
        %v287 = vld [vmem:[%s211 + $0x114] sm:$0x1]
        %v288 = vld [vmem:[%s211 + $0x118] sm:$0xf]
        %v289 = vld [vmem:[%s211 + $0x11c] sm:$0x1]
        %v290 = vld [vmem:[%s211 + $0x120] sm:$0xf]
        %v291 = vld [vmem:[%s211 + $0x124] sm:$0x1]
        %v292 = vld [vmem:[%s211 + $0x128] sm:$0xf]
        %v293 = vld [vmem:[%s211 + $0x12c] sm:$0x1]
        %v294 = vld [vmem:[%s211 + $0x130] sm:$0xf]
        %v295 = vld [vmem:[%s211 + $0x134] sm:$0x1]
        %v296 = vld [vmem:[%s211 + $0x138] sm:$0xf]
        %v297 = vld [vmem:[%s211 + $0x13c] sm:$0x1]
        %v298 = vld [vmem:[%s211 + $0x140] sm:$0xf]
        %v299 = vld [vmem:[%s211 + $0x144] sm:$0x1]
        %v300 = vld [vmem:[%s211 + $0x148] sm:$0xf]
        %v301 = vld [vmem:[%s211 + $0x14c] sm:$0x1]
        %v302 = vld [vmem:[%s211 + $0x150] sm:$0xf]
        %v303 = vld [vmem:[%s211 + $0x154] sm:$0x1]
        %v304 = vld [vmem:[%s211 + $0x158] sm:$0xf]
        %v305 = vld [vmem:[%s211 + $0x15c] sm:$0x1]
        %v306 = vld [vmem:[%s211 + $0x160] sm:$0xf]
        %v307 = vld [vmem:[%s211 + $0x164] sm:$0x1]
        %v308 = vld [vmem:[%s211 + $0x168] sm:$0xf]
        %v309 = vld [vmem:[%s211 + $0x16c] sm:$0x1]
        %v310 = vld [vmem:[%s211 + $0x170] sm:$0xf]
        %v311 = vld [vmem:[%s211 + $0x174] sm:$0x1]
        %v312 = vld [vmem:[%s211 + $0x178] sm:$0xf]
        %v313 = vld [vmem:[%s211 + $0x17c] sm:$0x1]
        %v314 = vld [vmem:[%s211 + $0x180] sm:$0xf]
        %v315 = vld [vmem:[%s211 + $0x184] sm:$0x1]
        %v316 = vld [vmem:[%s211 + $0x188] sm:$0xf]
        %v317 = vld [vmem:[%s211 + $0x18c] sm:$0x1]
        %v318 = vld [vmem:[%s211 + $0x190] sm:$0xf]
        %v319 = vld [vmem:[%s211 + $0x194] sm:$0x1]
        %v320 = vld [vmem:[%s211 + $0x198] sm:$0xf]
        %v321 = vld [vmem:[%s211 + $0x19c] sm:$0x1]
        %v322 = vld [vmem:[%s211 + $0x1a0] sm:$0xf]
        %v323 = vld [vmem:[%s211 + $0x1a4] sm:$0x1]
        %v324 = vld [vmem:[%s211 + $0x1a8] sm:$0xf]
        %v325 = vld [vmem:[%s211 + $0x1ac] sm:$0x1]
        %v326 = vld [vmem:[%s211 + $0x1b0] sm:$0xf]
        %v327 = vld [vmem:[%s211 + $0x1b4] sm:$0x1]
        %v328 = vld [vmem:[%s211 + $0x1b8] sm:$0xf]
        %v329 = vld [vmem:[%s211 + $0x1bc] sm:$0x1]
        %v330 = vld [vmem:[%s211 + $0x1c0] sm:$0xf]
        %v331 = vld [vmem:[%s211 + $0x1c4] sm:$0x1]
        %v332 = vld [vmem:[%s211 + $0x1c8] sm:$0xf]
        %v333 = vld [vmem:[%s211 + $0x1cc] sm:$0x1]
        %v334 = vld [vmem:[%s211 + $0x1d0] sm:$0xf]
        %v335 = vld [vmem:[%s211 + $0x1d4] sm:$0x1]
        %v336 = vld [vmem:[%s211 + $0x1d8] sm:$0xf]
        %v337 = vld [vmem:[%s211 + $0x1dc] sm:$0x1]
        %vm338 = vsmask.f32 3328
        %vm339 = vsmask.f32 7440
        %vm340 = vmor %vm338, %vm339
        %v342 = vshrl.u32 %v218, 16
        %v344 = vrot.slane %v342, 4
        %v345 = vshll.u32 %v218, 16
        %v347 = vrot.slane %v345, 5
        %v348 = vor.u32 %v344, %v347
        %v349 = vrot.slane %v348, 4
        %v351 = vshll.u32 %v219, 16
        %v353 = vrot.slane %v351, 5
        %v354 = vsel %vm340, %v349, %v353
        %v356 = vshrl.u32 %v220, 16
        %v358 = vrot.slane %v356, 4
        %v359 = vshll.u32 %v220, 16
        %v361 = vrot.slane %v359, 5
        %v362 = vor.u32 %v358, %v361
        %v363 = vrot.slane %v362, 4
        %v365 = vshll.u32 %v221, 16
        %v367 = vrot.slane %v365, 5
        %v368 = vsel %vm340, %v363, %v367
        %v370 = vshrl.u32 %v222, 16
        %v372 = vrot.slane %v370, 4
        %v373 = vshll.u32 %v222, 16
        %v375 = vrot.slane %v373, 5
        %v376 = vor.u32 %v372, %v375
        %v377 = vrot.slane %v376, 4
        %v379 = vshll.u32 %v223, 16
        %v381 = vrot.slane %v379, 5
        %v382 = vsel %vm340, %v377, %v381
        %v384 = vshrl.u32 %v224, 16
        %v386 = vrot.slane %v384, 4
        %v387 = vshll.u32 %v224, 16
        %v389 = vrot.slane %v387, 5
        %v390 = vor.u32 %v386, %v389
        %v391 = vrot.slane %v390, 4
        %v393 = vshll.u32 %v225, 16
        %v395 = vrot.slane %v393, 5
        %v396 = vsel %vm340, %v391, %v395
        %v398 = vshrl.u32 %v226, 16
        %v400 = vrot.slane %v398, 4
        %v401 = vshll.u32 %v226, 16
        %v403 = vrot.slane %v401, 5
        %v404 = vor.u32 %v400, %v403
        %v405 = vrot.slane %v404, 4
        %v407 = vshll.u32 %v227, 16
        %v409 = vrot.slane %v407, 5
        %v410 = vsel %vm340, %v405, %v409
        %v412 = vshrl.u32 %v228, 16
        %v414 = vrot.slane %v412, 4
        %v415 = vshll.u32 %v228, 16
        %v417 = vrot.slane %v415, 5
        %v418 = vor.u32 %v414, %v417
        %v419 = vrot.slane %v418, 4
        %v421 = vshll.u32 %v229, 16
        %v423 = vrot.slane %v421, 5
        %v424 = vsel %vm340, %v419, %v423
        %v426 = vshrl.u32 %v230, 16
        %v428 = vrot.slane %v426, 4
        %v429 = vshll.u32 %v230, 16
        %v431 = vrot.slane %v429, 5
        %v432 = vor.u32 %v428, %v431
        %v433 = vrot.slane %v432, 4
        %v435 = vshll.u32 %v231, 16
        %v437 = vrot.slane %v435, 5
        %v438 = vsel %vm340, %v433, %v437
        %v440 = vshrl.u32 %v232, 16
        %v442 = vrot.slane %v440, 4
        %v443 = vshll.u32 %v232, 16
        %v445 = vrot.slane %v443, 5
        %v446 = vor.u32 %v442, %v445
        %v447 = vrot.slane %v446, 4
        %v449 = vshll.u32 %v233, 16
        %v451 = vrot.slane %v449, 5
        %v452 = vsel %vm340, %v447, %v451
        %v454 = vshrl.u32 %v238, 16
        %v456 = vrot.slane %v454, 4
        %v457 = vshll.u32 %v238, 16
        %v459 = vrot.slane %v457, 5
        %v460 = vor.u32 %v456, %v459
        %v461 = vrot.slane %v460, 4
        %v463 = vshll.u32 %v239, 16
        %v465 = vrot.slane %v463, 5
        %v466 = vsel %vm340, %v461, %v465
        %v468 = vshrl.u32 %v240, 16
        %v470 = vrot.slane %v468, 4
        %v471 = vshll.u32 %v240, 16
        %v473 = vrot.slane %v471, 5
        %v474 = vor.u32 %v470, %v473
        %v475 = vrot.slane %v474, 4
        %v477 = vshll.u32 %v241, 16
        %v479 = vrot.slane %v477, 5
        %v480 = vsel %vm340, %v475, %v479
        %v482 = vshrl.u32 %v242, 16
        %v484 = vrot.slane %v482, 4
        %v485 = vshll.u32 %v242, 16
        %v487 = vrot.slane %v485, 5
        %v488 = vor.u32 %v484, %v487
        %v489 = vrot.slane %v488, 4
        %v491 = vshll.u32 %v243, 16
        %v493 = vrot.slane %v491, 5
        %v494 = vsel %vm340, %v489, %v493
        %v496 = vshrl.u32 %v244, 16
        %v498 = vrot.slane %v496, 4
        %v499 = vshll.u32 %v244, 16
        %v501 = vrot.slane %v499, 5
        %v502 = vor.u32 %v498, %v501
        %v503 = vrot.slane %v502, 4
        %v505 = vshll.u32 %v245, 16
        %v507 = vrot.slane %v505, 5
        %v508 = vsel %vm340, %v503, %v507
        %v510 = vshrl.u32 %v246, 16
        %v512 = vrot.slane %v510, 4
        %v513 = vshll.u32 %v246, 16
        %v515 = vrot.slane %v513, 5
        %v516 = vor.u32 %v512, %v515
        %v517 = vrot.slane %v516, 4
        %v519 = vshll.u32 %v247, 16
        %v521 = vrot.slane %v519, 5
        %v522 = vsel %vm340, %v517, %v521
        %v524 = vshrl.u32 %v248, 16
        %v526 = vrot.slane %v524, 4
        %v527 = vshll.u32 %v248, 16
        %v529 = vrot.slane %v527, 5
        %v530 = vor.u32 %v526, %v529
        %v531 = vrot.slane %v530, 4
        %v533 = vshll.u32 %v249, 16
        %v535 = vrot.slane %v533, 5
        %v536 = vsel %vm340, %v531, %v535
        %v538 = vshrl.u32 %v250, 16
        %v540 = vrot.slane %v538, 4
        %v541 = vshll.u32 %v250, 16
        %v543 = vrot.slane %v541, 5
        %v544 = vor.u32 %v540, %v543
        %v545 = vrot.slane %v544, 4
        %v547 = vshll.u32 %v251, 16
        %v549 = vrot.slane %v547, 5
        %v550 = vsel %vm340, %v545, %v549
        %v552 = vshrl.u32 %v252, 16
        %v554 = vrot.slane %v552, 4
        %v555 = vshll.u32 %v252, 16
        %v557 = vrot.slane %v555, 5
        %v558 = vor.u32 %v554, %v557
        %v559 = vrot.slane %v558, 4
        %v561 = vshll.u32 %v253, 16
        %v563 = vrot.slane %v561, 5
        %v564 = vsel %vm340, %v559, %v563
        %v566 = vshrl.u32 %v258, 16
        %v568 = vrot.slane %v566, 4
        %v569 = vshll.u32 %v258, 16
        %v571 = vrot.slane %v569, 5
        %v572 = vor.u32 %v568, %v571
        %v573 = vrot.slane %v572, 4
        %v575 = vshll.u32 %v259, 16
        %v577 = vrot.slane %v575, 5
        %v578 = vsel %vm340, %v573, %v577
        %v580 = vshrl.u32 %v260, 16
        %v582 = vrot.slane %v580, 4
        %v583 = vshll.u32 %v260, 16
        %v585 = vrot.slane %v583, 5
        %v586 = vor.u32 %v582, %v585
        %v587 = vrot.slane %v586, 4
        %v589 = vshll.u32 %v261, 16
        %v591 = vrot.slane %v589, 5
        %v592 = vsel %vm340, %v587, %v591
        %v594 = vshrl.u32 %v262, 16
        %v596 = vrot.slane %v594, 4
        %v597 = vshll.u32 %v262, 16
        %v599 = vrot.slane %v597, 5
        %v600 = vor.u32 %v596, %v599
        %v601 = vrot.slane %v600, 4
        %v603 = vshll.u32 %v263, 16
        %v605 = vrot.slane %v603, 5
        %v606 = vsel %vm340, %v601, %v605
        %v608 = vshrl.u32 %v264, 16
        %v610 = vrot.slane %v608, 4
        %v611 = vshll.u32 %v264, 16
        %v613 = vrot.slane %v611, 5
        %v614 = vor.u32 %v610, %v613
        %v615 = vrot.slane %v614, 4
        %v617 = vshll.u32 %v265, 16
        %v619 = vrot.slane %v617, 5
        %v620 = vsel %vm340, %v615, %v619
        %v622 = vshrl.u32 %v266, 16
        %v624 = vrot.slane %v622, 4
        %v625 = vshll.u32 %v266, 16
        %v627 = vrot.slane %v625, 5
        %v628 = vor.u32 %v624, %v627
        %v629 = vrot.slane %v628, 4
        %v631 = vshll.u32 %v267, 16
        %v633 = vrot.slane %v631, 5
        %v634 = vsel %vm340, %v629, %v633
        %v636 = vshrl.u32 %v268, 16
        %v638 = vrot.slane %v636, 4
        %v639 = vshll.u32 %v268, 16
        %v641 = vrot.slane %v639, 5
        %v642 = vor.u32 %v638, %v641
        %v643 = vrot.slane %v642, 4
        %v645 = vshll.u32 %v269, 16
        %v647 = vrot.slane %v645, 5
        %v648 = vsel %vm340, %v643, %v647
        %v650 = vshrl.u32 %v270, 16
        %v652 = vrot.slane %v650, 4
        %v653 = vshll.u32 %v270, 16
        %v655 = vrot.slane %v653, 5
        %v656 = vor.u32 %v652, %v655
        %v657 = vrot.slane %v656, 4
        %v659 = vshll.u32 %v271, 16
        %v661 = vrot.slane %v659, 5
        %v662 = vsel %vm340, %v657, %v661
        %v664 = vshrl.u32 %v272, 16
        %v666 = vrot.slane %v664, 4
        %v667 = vshll.u32 %v272, 16
        %v669 = vrot.slane %v667, 5
        %v670 = vor.u32 %v666, %v669
        %v671 = vrot.slane %v670, 4
        %v673 = vshll.u32 %v273, 16
        %v675 = vrot.slane %v673, 5
        %v676 = vsel %vm340, %v671, %v675
        %v678 = vshrl.u32 %v278, 16
        %v680 = vrot.slane %v678, 4
        %v681 = vshll.u32 %v278, 16
        %v683 = vrot.slane %v681, 5
        %v684 = vor.u32 %v680, %v683
        %v685 = vrot.slane %v684, 4
        %v687 = vshll.u32 %v279, 16
        %v689 = vrot.slane %v687, 5
        %v690 = vsel %vm340, %v685, %v689
        %v692 = vshrl.u32 %v280, 16
        %v694 = vrot.slane %v692, 4
        %v695 = vshll.u32 %v280, 16
        %v697 = vrot.slane %v695, 5
        %v698 = vor.u32 %v694, %v697
        %v699 = vrot.slane %v698, 4
        %v701 = vshll.u32 %v281, 16
        %v703 = vrot.slane %v701, 5
        %v704 = vsel %vm340, %v699, %v703
        %v706 = vshrl.u32 %v282, 16
        %v708 = vrot.slane %v706, 4
        %v709 = vshll.u32 %v282, 16
        %v711 = vrot.slane %v709, 5
        %v712 = vor.u32 %v708, %v711
        %v713 = vrot.slane %v712, 4
        %v715 = vshll.u32 %v283, 16
        %v717 = vrot.slane %v715, 5
        %v718 = vsel %vm340, %v713, %v717
        %v720 = vshrl.u32 %v284, 16
        %v722 = vrot.slane %v720, 4
        %v723 = vshll.u32 %v284, 16
        %v725 = vrot.slane %v723, 5
        %v726 = vor.u32 %v722, %v725
        %v727 = vrot.slane %v726, 4
        %v729 = vshll.u32 %v285, 16
        %v731 = vrot.slane %v729, 5
        %v732 = vsel %vm340, %v727, %v731
        %v734 = vshrl.u32 %v286, 16
        %v736 = vrot.slane %v734, 4
        %v737 = vshll.u32 %v286, 16
        %v739 = vrot.slane %v737, 5
        %v740 = vor.u32 %v736, %v739
        %v741 = vrot.slane %v740, 4
        %v743 = vshll.u32 %v287, 16
        %v745 = vrot.slane %v743, 5
        %v746 = vsel %vm340, %v741, %v745
        %v748 = vshrl.u32 %v288, 16
        %v750 = vrot.slane %v748, 4
        %v751 = vshll.u32 %v288, 16
        %v753 = vrot.slane %v751, 5
        %v754 = vor.u32 %v750, %v753
        %v755 = vrot.slane %v754, 4
        %v757 = vshll.u32 %v289, 16
        %v759 = vrot.slane %v757, 5
        %v760 = vsel %vm340, %v755, %v759
        %v762 = vshrl.u32 %v290, 16
        %v764 = vrot.slane %v762, 4
        %v765 = vshll.u32 %v290, 16
        %v767 = vrot.slane %v765, 5
        %v768 = vor.u32 %v764, %v767
        %v769 = vrot.slane %v768, 4
        %v771 = vshll.u32 %v291, 16
        %v773 = vrot.slane %v771, 5
        %v774 = vsel %vm340, %v769, %v773
        %v776 = vshrl.u32 %v292, 16
        %v778 = vrot.slane %v776, 4
        %v779 = vshll.u32 %v292, 16
        %v781 = vrot.slane %v779, 5
        %v782 = vor.u32 %v778, %v781
        %v783 = vrot.slane %v782, 4
        %v785 = vshll.u32 %v293, 16
        %v787 = vrot.slane %v785, 5
        %v788 = vsel %vm340, %v783, %v787
        %vm853 = vcmask 1042432
        %vm854 = vcmask 1046532
        %vm855 = vmor %vm853, %vm854
        %v856 = vrot.slane %v218, 5
        %v857 = vrot.slane %v856, 4
        %v858 = vrot.slane %v219, 5
        %v859 = vsel %vm855, %v857, %v858
        %v860 = vrot.slane %v220, 5
        %v861 = vrot.slane %v860, 4
        %v862 = vrot.slane %v221, 5
        %v863 = vsel %vm855, %v861, %v862
        %v864 = vrot.slane %v222, 5
        %v865 = vrot.slane %v864, 4
        %v866 = vrot.slane %v223, 5
        %v867 = vsel %vm855, %v865, %v866
        %v868 = vrot.slane %v224, 5
        %v869 = vrot.slane %v868, 4
        %v870 = vrot.slane %v225, 5
        %v871 = vsel %vm855, %v869, %v870
        %v872 = vrot.slane %v226, 5
        %v873 = vrot.slane %v872, 4
        %v874 = vrot.slane %v227, 5
        %v875 = vsel %vm855, %v873, %v874
        %v876 = vrot.slane %v228, 5
        %v877 = vrot.slane %v876, 4
        %v878 = vrot.slane %v229, 5
        %v879 = vsel %vm855, %v877, %v878
        %v880 = vrot.slane %v230, 5
        %v881 = vrot.slane %v880, 4
        %v882 = vrot.slane %v231, 5
        %v883 = vsel %vm855, %v881, %v882
        %v884 = vrot.slane %v232, 5
        %v885 = vrot.slane %v884, 4
        %v886 = vrot.slane %v233, 5
        %v887 = vsel %vm855, %v885, %v886
        %v888 = vrot.slane %v238, 5
        %v889 = vrot.slane %v888, 4
        %v890 = vrot.slane %v239, 5
        %v891 = vsel %vm855, %v889, %v890
        %v892 = vrot.slane %v240, 5
        %v893 = vrot.slane %v892, 4
        %v894 = vrot.slane %v241, 5
        %v895 = vsel %vm855, %v893, %v894
        %v896 = vrot.slane %v242, 5
        %v897 = vrot.slane %v896, 4
        %v898 = vrot.slane %v243, 5
        %v899 = vsel %vm855, %v897, %v898
        %v900 = vrot.slane %v244, 5
        %v901 = vrot.slane %v900, 4
        %v902 = vrot.slane %v245, 5
        %v903 = vsel %vm855, %v901, %v902
        %v904 = vrot.slane %v246, 5
        %v905 = vrot.slane %v904, 4
        %v906 = vrot.slane %v247, 5
        %v907 = vsel %vm855, %v905, %v906
        %v908 = vrot.slane %v248, 5
        %v909 = vrot.slane %v908, 4
        %v910 = vrot.slane %v249, 5
        %v911 = vsel %vm855, %v909, %v910
        %v912 = vrot.slane %v250, 5
        %v913 = vrot.slane %v912, 4
        %v914 = vrot.slane %v251, 5
        %v915 = vsel %vm855, %v913, %v914
        %v916 = vrot.slane %v252, 5
        %v917 = vrot.slane %v916, 4
        %v918 = vrot.slane %v253, 5
        %v919 = vsel %vm855, %v917, %v918
        %v920 = vrot.slane %v258, 5
        %v921 = vrot.slane %v920, 4
        %v922 = vrot.slane %v259, 5
        %v923 = vsel %vm855, %v921, %v922
        %v924 = vrot.slane %v260, 5
        %v925 = vrot.slane %v924, 4
        %v926 = vrot.slane %v261, 5
        %v927 = vsel %vm855, %v925, %v926
        %v928 = vrot.slane %v262, 5
        %v929 = vrot.slane %v928, 4
        %v930 = vrot.slane %v263, 5
        %v931 = vsel %vm855, %v929, %v930
        %v932 = vrot.slane %v264, 5
        %v933 = vrot.slane %v932, 4
        %v934 = vrot.slane %v265, 5
        %v935 = vsel %vm855, %v933, %v934
        %v936 = vrot.slane %v266, 5
        %v937 = vrot.slane %v936, 4
        %v938 = vrot.slane %v267, 5
        %v939 = vsel %vm855, %v937, %v938
        %v940 = vrot.slane %v268, 5
        %v941 = vrot.slane %v940, 4
        %v942 = vrot.slane %v269, 5
        %v943 = vsel %vm855, %v941, %v942
        %v944 = vrot.slane %v270, 5
        %v945 = vrot.slane %v944, 4
        %v946 = vrot.slane %v271, 5
        %v947 = vsel %vm855, %v945, %v946
        %v948 = vrot.slane %v272, 5
        %v949 = vrot.slane %v948, 4
        %v950 = vrot.slane %v273, 5
        %v951 = vsel %vm855, %v949, %v950
        %v952 = vrot.slane %v278, 5
        %v953 = vrot.slane %v952, 4
        %v954 = vrot.slane %v279, 5
        %v955 = vsel %vm855, %v953, %v954
        %v956 = vrot.slane %v280, 5
        %v957 = vrot.slane %v956, 4
        %v958 = vrot.slane %v281, 5
        %v959 = vsel %vm855, %v957, %v958
        %v960 = vrot.slane %v282, 5
        %v961 = vrot.slane %v960, 4
        %v962 = vrot.slane %v283, 5
        %v963 = vsel %vm855, %v961, %v962
        %v964 = vrot.slane %v284, 5
        %v965 = vrot.slane %v964, 4
        %v966 = vrot.slane %v285, 5
        %v967 = vsel %vm855, %v965, %v966
        %v968 = vrot.slane %v286, 5
        %v969 = vrot.slane %v968, 4
        %v970 = vrot.slane %v287, 5
        %v971 = vsel %vm855, %v969, %v970
        %v972 = vrot.slane %v288, 5
        %v973 = vrot.slane %v972, 4
        %v974 = vrot.slane %v289, 5
        %v975 = vsel %vm855, %v973, %v974
        %v976 = vrot.slane %v290, 5
        %v977 = vrot.slane %v976, 4
        %v978 = vrot.slane %v291, 5
        %v979 = vsel %vm855, %v977, %v978
        %v980 = vrot.slane %v292, 5
        %v981 = vrot.slane %v980, 4
        %v982 = vrot.slane %v293, 5
        %v983 = vsel %vm855, %v981, %v982
        %v985 = vshrl.u32 %v234, 16
        %v987 = vrot.slane %v985, 4
        %v988 = vshll.u32 %v234, 16
        %v990 = vrot.slane %v988, 5
        %v991 = vor.u32 %v987, %v990
        %v992 = vrot.slane %v991, 4
        %v994 = vshll.u32 %v235, 16
        %v996 = vrot.slane %v994, 5
        %v997 = vsel %vm340, %v992, %v996
        %v999 = vshrl.u32 %v254, 16
        %v1001 = vrot.slane %v999, 4
        %v1002 = vshll.u32 %v254, 16
        %v1004 = vrot.slane %v1002, 5
        %v1005 = vor.u32 %v1001, %v1004
        %v1006 = vrot.slane %v1005, 4
        %v1008 = vshll.u32 %v255, 16
        %v1010 = vrot.slane %v1008, 5
        %v1011 = vsel %vm340, %v1006, %v1010
        %v1013 = vshrl.u32 %v274, 16
        %v1015 = vrot.slane %v1013, 4
        %v1016 = vshll.u32 %v274, 16
        %v1018 = vrot.slane %v1016, 5
        %v1019 = vor.u32 %v1015, %v1018
        %v1020 = vrot.slane %v1019, 4
        %v1022 = vshll.u32 %v275, 16
        %v1024 = vrot.slane %v1022, 5
        %v1025 = vsel %vm340, %v1020, %v1024
        %v1027 = vshrl.u32 %v294, 16
        %v1029 = vrot.slane %v1027, 4
        %v1030 = vshll.u32 %v294, 16
        %v1032 = vrot.slane %v1030, 5
        %v1033 = vor.u32 %v1029, %v1032
        %v1034 = vrot.slane %v1033, 4
        %v1036 = vshll.u32 %v295, 16
        %v1038 = vrot.slane %v1036, 5
        %v1039 = vsel %vm340, %v1034, %v1038
        %v1048 = vrot.slane %v234, 5
        %v1049 = vrot.slane %v1048, 4
        %v1050 = vrot.slane %v235, 5
        %v1051 = vsel %vm855, %v1049, %v1050
        %v1052 = vrot.slane %v254, 5
        %v1053 = vrot.slane %v1052, 4
        %v1054 = vrot.slane %v255, 5
        %v1055 = vsel %vm855, %v1053, %v1054
        %v1056 = vrot.slane %v274, 5
        %v1057 = vrot.slane %v1056, 4
        %v1058 = vrot.slane %v275, 5
        %v1059 = vsel %vm855, %v1057, %v1058
        %v1060 = vrot.slane %v294, 5
        %v1061 = vrot.slane %v1060, 4
        %v1062 = vrot.slane %v295, 5
        %v1063 = vsel %vm855, %v1061, %v1062
        %v1065 = vshrl.u32 %v236, 16
        %v1067 = vrot.slane %v1065, 4
        %v1068 = vshll.u32 %v236, 16
        %v1070 = vrot.slane %v1068, 5
        %v1071 = vor.u32 %v1067, %v1070
        %v1072 = vrot.slane %v1071, 4
        %v1074 = vshll.u32 %v237, 16
        %v1076 = vrot.slane %v1074, 5
        %v1077 = vsel %vm340, %v1072, %v1076
        %v1079 = vshrl.u32 %v256, 16
        %v1081 = vrot.slane %v1079, 4
        %v1082 = vshll.u32 %v256, 16
        %v1084 = vrot.slane %v1082, 5
        %v1085 = vor.u32 %v1081, %v1084
        %v1086 = vrot.slane %v1085, 4
        %v1088 = vshll.u32 %v257, 16
        %v1090 = vrot.slane %v1088, 5
        %v1091 = vsel %vm340, %v1086, %v1090
        %v1093 = vshrl.u32 %v276, 16
        %v1095 = vrot.slane %v1093, 4
        %v1096 = vshll.u32 %v276, 16
        %v1098 = vrot.slane %v1096, 5
        %v1099 = vor.u32 %v1095, %v1098
        %v1100 = vrot.slane %v1099, 4
        %v1102 = vshll.u32 %v277, 16
        %v1104 = vrot.slane %v1102, 5
        %v1105 = vsel %vm340, %v1100, %v1104
        %v1107 = vshrl.u32 %v296, 16
        %v1109 = vrot.slane %v1107, 4
        %v1110 = vshll.u32 %v296, 16
        %v1112 = vrot.slane %v1110, 5
        %v1113 = vor.u32 %v1109, %v1112
        %v1114 = vrot.slane %v1113, 4
        %v1116 = vshll.u32 %v297, 16
        %v1118 = vrot.slane %v1116, 5
        %v1119 = vsel %vm340, %v1114, %v1118
        %v1128 = vrot.slane %v236, 5
        %v1129 = vrot.slane %v1128, 4
        %v1130 = vrot.slane %v237, 5
        %v1131 = vsel %vm855, %v1129, %v1130
        %v1132 = vrot.slane %v256, 5
        %v1133 = vrot.slane %v1132, 4
        %v1134 = vrot.slane %v257, 5
        %v1135 = vsel %vm855, %v1133, %v1134
        %v1136 = vrot.slane %v276, 5
        %v1137 = vrot.slane %v1136, 4
        %v1138 = vrot.slane %v277, 5
        %v1139 = vsel %vm855, %v1137, %v1138
        %v1140 = vrot.slane %v296, 5
        %v1141 = vrot.slane %v1140, 4
        %v1142 = vrot.slane %v297, 5
        %v1143 = vsel %vm855, %v1141, %v1142
        %v1145 = vshrl.u32 %v298, 16
        %v1147 = vrot.slane %v1145, 4
        %v1148 = vshll.u32 %v298, 16
        %v1150 = vrot.slane %v1148, 5
        %v1151 = vor.u32 %v1147, %v1150
        %v1152 = vrot.slane %v1151, 4
        %v1154 = vshll.u32 %v299, 16
        %v1156 = vrot.slane %v1154, 5
        %v1157 = vsel %vm340, %v1152, %v1156
        %v1159 = vshrl.u32 %v300, 16
        %v1161 = vrot.slane %v1159, 4
        %v1162 = vshll.u32 %v300, 16
        %v1164 = vrot.slane %v1162, 5
        %v1165 = vor.u32 %v1161, %v1164
        %v1166 = vrot.slane %v1165, 4
        %v1168 = vshll.u32 %v301, 16
        %v1170 = vrot.slane %v1168, 5
        %v1171 = vsel %vm340, %v1166, %v1170
        %v1173 = vshrl.u32 %v302, 16
        %v1175 = vrot.slane %v1173, 4
        %v1176 = vshll.u32 %v302, 16
        %v1178 = vrot.slane %v1176, 5
        %v1179 = vor.u32 %v1175, %v1178
        %v1180 = vrot.slane %v1179, 4
        %v1182 = vshll.u32 %v303, 16
        %v1184 = vrot.slane %v1182, 5
        %v1185 = vsel %vm340, %v1180, %v1184
        %v1187 = vshrl.u32 %v304, 16
        %v1189 = vrot.slane %v1187, 4
        %v1190 = vshll.u32 %v304, 16
        %v1192 = vrot.slane %v1190, 5
        %v1193 = vor.u32 %v1189, %v1192
        %v1194 = vrot.slane %v1193, 4
        %v1196 = vshll.u32 %v305, 16
        %v1198 = vrot.slane %v1196, 5
        %v1199 = vsel %vm340, %v1194, %v1198
        %v1201 = vshrl.u32 %v306, 16
        %v1203 = vrot.slane %v1201, 4
        %v1204 = vshll.u32 %v306, 16
        %v1206 = vrot.slane %v1204, 5
        %v1207 = vor.u32 %v1203, %v1206
        %v1208 = vrot.slane %v1207, 4
        %v1210 = vshll.u32 %v307, 16
        %v1212 = vrot.slane %v1210, 5
        %v1213 = vsel %vm340, %v1208, %v1212
        %v1215 = vshrl.u32 %v308, 16
        %v1217 = vrot.slane %v1215, 4
        %v1218 = vshll.u32 %v308, 16
        %v1220 = vrot.slane %v1218, 5
        %v1221 = vor.u32 %v1217, %v1220
        %v1222 = vrot.slane %v1221, 4
        %v1224 = vshll.u32 %v309, 16
        %v1226 = vrot.slane %v1224, 5
        %v1227 = vsel %vm340, %v1222, %v1226
        %v1229 = vshrl.u32 %v310, 16
        %v1231 = vrot.slane %v1229, 4
        %v1232 = vshll.u32 %v310, 16
        %v1234 = vrot.slane %v1232, 5
        %v1235 = vor.u32 %v1231, %v1234
        %v1236 = vrot.slane %v1235, 4
        %v1238 = vshll.u32 %v311, 16
        %v1240 = vrot.slane %v1238, 5
        %v1241 = vsel %vm340, %v1236, %v1240
        %v1243 = vshrl.u32 %v312, 16
        %v1245 = vrot.slane %v1243, 4
        %v1246 = vshll.u32 %v312, 16
        %v1248 = vrot.slane %v1246, 5
        %v1249 = vor.u32 %v1245, %v1248
        %v1250 = vrot.slane %v1249, 4
        %v1252 = vshll.u32 %v313, 16
        %v1254 = vrot.slane %v1252, 5
        %v1255 = vsel %vm340, %v1250, %v1254
        %v1272 = vrot.slane %v298, 5
        %v1273 = vrot.slane %v1272, 4
        %v1274 = vrot.slane %v299, 5
        %v1275 = vsel %vm855, %v1273, %v1274
        %v1276 = vrot.slane %v300, 5
        %v1277 = vrot.slane %v1276, 4
        %v1278 = vrot.slane %v301, 5
        %v1279 = vsel %vm855, %v1277, %v1278
        %v1280 = vrot.slane %v302, 5
        %v1281 = vrot.slane %v1280, 4
        %v1282 = vrot.slane %v303, 5
        %v1283 = vsel %vm855, %v1281, %v1282
        %v1284 = vrot.slane %v304, 5
        %v1285 = vrot.slane %v1284, 4
        %v1286 = vrot.slane %v305, 5
        %v1287 = vsel %vm855, %v1285, %v1286
        %v1288 = vrot.slane %v306, 5
        %v1289 = vrot.slane %v1288, 4
        %v1290 = vrot.slane %v307, 5
        %v1291 = vsel %vm855, %v1289, %v1290
        %v1292 = vrot.slane %v308, 5
        %v1293 = vrot.slane %v1292, 4
        %v1294 = vrot.slane %v309, 5
        %v1295 = vsel %vm855, %v1293, %v1294
        %v1296 = vrot.slane %v310, 5
        %v1297 = vrot.slane %v1296, 4
        %v1298 = vrot.slane %v311, 5
        %v1299 = vsel %vm855, %v1297, %v1298
        %v1300 = vrot.slane %v312, 5
        %v1301 = vrot.slane %v1300, 4
        %v1302 = vrot.slane %v313, 5
        %v1303 = vsel %vm855, %v1301, %v1302
        %v1305 = vshrl.u32 %v314, 16
        %v1307 = vrot.slane %v1305, 4
        %v1308 = vshll.u32 %v314, 16
        %v1310 = vrot.slane %v1308, 5
        %v1311 = vor.u32 %v1307, %v1310
        %v1312 = vrot.slane %v1311, 4
        %v1314 = vshll.u32 %v315, 16
        %v1316 = vrot.slane %v1314, 5
        %v1317 = vsel %vm340, %v1312, %v1316
        %v1320 = vrot.slane %v314, 5
        %v1321 = vrot.slane %v1320, 4
        %v1322 = vrot.slane %v315, 5
        %v1323 = vsel %vm855, %v1321, %v1322
        %v1325 = vshrl.u32 %v316, 16
        %v1327 = vrot.slane %v1325, 4
        %v1328 = vshll.u32 %v316, 16
        %v1330 = vrot.slane %v1328, 5
        %v1331 = vor.u32 %v1327, %v1330
        %v1332 = vrot.slane %v1331, 4
        %v1334 = vshll.u32 %v317, 16
        %v1336 = vrot.slane %v1334, 5
        %v1337 = vsel %vm340, %v1332, %v1336
        %v1340 = vrot.slane %v316, 5
        %v1341 = vrot.slane %v1340, 4
        %v1342 = vrot.slane %v317, 5
        %v1343 = vsel %vm855, %v1341, %v1342
        %v1345 = vshrl.u32 %v318, 16
        %v1347 = vrot.slane %v1345, 4
        %v1348 = vshll.u32 %v318, 16
        %v1350 = vrot.slane %v1348, 5
        %v1351 = vor.u32 %v1347, %v1350
        %v1352 = vrot.slane %v1351, 4
        %v1354 = vshll.u32 %v319, 16
        %v1356 = vrot.slane %v1354, 5
        %v1357 = vsel %vm340, %v1352, %v1356
        %v1359 = vshrl.u32 %v320, 16
        %v1361 = vrot.slane %v1359, 4
        %v1362 = vshll.u32 %v320, 16
        %v1364 = vrot.slane %v1362, 5
        %v1365 = vor.u32 %v1361, %v1364
        %v1366 = vrot.slane %v1365, 4
        %v1368 = vshll.u32 %v321, 16
        %v1370 = vrot.slane %v1368, 5
        %v1371 = vsel %vm340, %v1366, %v1370
        %v1373 = vshrl.u32 %v322, 16
        %v1375 = vrot.slane %v1373, 4
        %v1376 = vshll.u32 %v322, 16
        %v1378 = vrot.slane %v1376, 5
        %v1379 = vor.u32 %v1375, %v1378
        %v1380 = vrot.slane %v1379, 4
        %v1382 = vshll.u32 %v323, 16
        %v1384 = vrot.slane %v1382, 5
        %v1385 = vsel %vm340, %v1380, %v1384
        %v1387 = vshrl.u32 %v324, 16
        %v1389 = vrot.slane %v1387, 4
        %v1390 = vshll.u32 %v324, 16
        %v1392 = vrot.slane %v1390, 5
        %v1393 = vor.u32 %v1389, %v1392
        %v1394 = vrot.slane %v1393, 4
        %v1396 = vshll.u32 %v325, 16
        %v1398 = vrot.slane %v1396, 5
        %v1399 = vsel %vm340, %v1394, %v1398
        %v1401 = vshrl.u32 %v326, 16
        %v1403 = vrot.slane %v1401, 4
        %v1404 = vshll.u32 %v326, 16
        %v1406 = vrot.slane %v1404, 5
        %v1407 = vor.u32 %v1403, %v1406
        %v1408 = vrot.slane %v1407, 4
        %v1410 = vshll.u32 %v327, 16
        %v1412 = vrot.slane %v1410, 5
        %v1413 = vsel %vm340, %v1408, %v1412
        %v1415 = vshrl.u32 %v328, 16
        %v1417 = vrot.slane %v1415, 4
        %v1418 = vshll.u32 %v328, 16
        %v1420 = vrot.slane %v1418, 5
        %v1421 = vor.u32 %v1417, %v1420
        %v1422 = vrot.slane %v1421, 4
        %v1424 = vshll.u32 %v329, 16
        %v1426 = vrot.slane %v1424, 5
        %v1427 = vsel %vm340, %v1422, %v1426
        %v1429 = vshrl.u32 %v330, 16
        %v1431 = vrot.slane %v1429, 4
        %v1432 = vshll.u32 %v330, 16
        %v1434 = vrot.slane %v1432, 5
        %v1435 = vor.u32 %v1431, %v1434
        %v1436 = vrot.slane %v1435, 4
        %v1438 = vshll.u32 %v331, 16
        %v1440 = vrot.slane %v1438, 5
        %v1441 = vsel %vm340, %v1436, %v1440
        %v1443 = vshrl.u32 %v332, 16
        %v1445 = vrot.slane %v1443, 4
        %v1446 = vshll.u32 %v332, 16
        %v1448 = vrot.slane %v1446, 5
        %v1449 = vor.u32 %v1445, %v1448
        %v1450 = vrot.slane %v1449, 4
        %v1452 = vshll.u32 %v333, 16
        %v1454 = vrot.slane %v1452, 5
        %v1455 = vsel %vm340, %v1450, %v1454
        %v1472 = vrot.slane %v318, 5
        %v1473 = vrot.slane %v1472, 4
        %v1474 = vrot.slane %v319, 5
        %v1475 = vsel %vm855, %v1473, %v1474
        %v1476 = vrot.slane %v320, 5
        %v1477 = vrot.slane %v1476, 4
        %v1478 = vrot.slane %v321, 5
        %v1479 = vsel %vm855, %v1477, %v1478
        %v1480 = vrot.slane %v322, 5
        %v1481 = vrot.slane %v1480, 4
        %v1482 = vrot.slane %v323, 5
        %v1483 = vsel %vm855, %v1481, %v1482
        %v1484 = vrot.slane %v324, 5
        %v1485 = vrot.slane %v1484, 4
        %v1486 = vrot.slane %v325, 5
        %v1487 = vsel %vm855, %v1485, %v1486
        %v1488 = vrot.slane %v326, 5
        %v1489 = vrot.slane %v1488, 4
        %v1490 = vrot.slane %v327, 5
        %v1491 = vsel %vm855, %v1489, %v1490
        %v1492 = vrot.slane %v328, 5
        %v1493 = vrot.slane %v1492, 4
        %v1494 = vrot.slane %v329, 5
        %v1495 = vsel %vm855, %v1493, %v1494
        %v1496 = vrot.slane %v330, 5
        %v1497 = vrot.slane %v1496, 4
        %v1498 = vrot.slane %v331, 5
        %v1499 = vsel %vm855, %v1497, %v1498
        %v1500 = vrot.slane %v332, 5
        %v1501 = vrot.slane %v1500, 4
        %v1502 = vrot.slane %v333, 5
        %v1503 = vsel %vm855, %v1501, %v1502
        %v1505 = vshrl.u32 %v334, 16
        %v1507 = vrot.slane %v1505, 4
        %v1508 = vshll.u32 %v334, 16
        %v1510 = vrot.slane %v1508, 5
        %v1511 = vor.u32 %v1507, %v1510
        %v1512 = vrot.slane %v1511, 4
        %v1514 = vshll.u32 %v335, 16
        %v1516 = vrot.slane %v1514, 5
        %v1517 = vsel %vm340, %v1512, %v1516
        %v1520 = vrot.slane %v334, 5
        %v1521 = vrot.slane %v1520, 4
        %v1522 = vrot.slane %v335, 5
        %v1523 = vsel %vm855, %v1521, %v1522
        %v1525 = vshrl.u32 %v336, 16
        %v1527 = vrot.slane %v1525, 4
        %v1528 = vshll.u32 %v336, 16
        %v1530 = vrot.slane %v1528, 5
        %v1531 = vor.u32 %v1527, %v1530
        %v1532 = vrot.slane %v1531, 4
        %v1534 = vshll.u32 %v337, 16
        %v1536 = vrot.slane %v1534, 5
        %v1537 = vsel %vm340, %v1532, %v1536
        %v1540 = vrot.slane %v336, 5
        %v1541 = vrot.slane %v1540, 4
        %v1542 = vrot.slane %v337, 5
        %v1543 = vsel %vm855, %v1541, %v1542
        %v1544 = vunpack.c.l.b16 %v218
        %v1545 = vunpack.c.l.b16 %v220
        %v1546 = vunpack.c.l.b16 %v222
        %v1547 = vunpack.c.l.b16 %v224
        %v1548 = vunpack.c.l.b16 %v226
        %v1549 = vunpack.c.l.b16 %v228
        %v1550 = vunpack.c.l.b16 %v230
        %v1551 = vunpack.c.l.b16 %v232
        %v1552 = vunpack.c.l.b16 %v238
        %v1553 = vunpack.c.l.b16 %v240
        %v1554 = vunpack.c.l.b16 %v242
        %v1555 = vunpack.c.l.b16 %v244
        %v1556 = vunpack.c.l.b16 %v246
        %v1557 = vunpack.c.l.b16 %v248
        %v1558 = vunpack.c.l.b16 %v250
        %v1559 = vunpack.c.l.b16 %v252
        %v1560 = vunpack.c.l.b16 %v258
        %v1561 = vunpack.c.l.b16 %v260
        %v1562 = vunpack.c.l.b16 %v262
        %v1563 = vunpack.c.l.b16 %v264
        %v1564 = vunpack.c.l.b16 %v266
        %v1565 = vunpack.c.l.b16 %v268
        %v1566 = vunpack.c.l.b16 %v270
        %v1567 = vunpack.c.l.b16 %v272
        %v1568 = vunpack.c.l.b16 %v278
        %v1569 = vunpack.c.l.b16 %v280
        %v1570 = vunpack.c.l.b16 %v282
        %v1571 = vunpack.c.l.b16 %v284
        %v1572 = vunpack.c.l.b16 %v286
        %v1573 = vunpack.c.l.b16 %v288
        %v1574 = vunpack.c.l.b16 %v290
        %v1575 = vunpack.c.l.b16 %v292
        %v1576 = vpack.c.b16 %v1545, %v1544
        %v1577 = vpack.c.b16 %v1547, %v1546
        %v1578 = vpack.c.b16 %v1549, %v1548
        %v1579 = vpack.c.b16 %v1551, %v1550
        %v1580 = vpack.c.b16 %v1553, %v1552
        %v1581 = vpack.c.b16 %v1555, %v1554
        %v1582 = vpack.c.b16 %v1557, %v1556
        %v1583 = vpack.c.b16 %v1559, %v1558
        %v1584 = vpack.c.b16 %v1561, %v1560
        %v1585 = vpack.c.b16 %v1563, %v1562
        %v1586 = vpack.c.b16 %v1565, %v1564
        %v1587 = vpack.c.b16 %v1567, %v1566
        %v1588 = vpack.c.b16 %v1569, %v1568
        %v1589 = vpack.c.b16 %v1571, %v1570
        %v1590 = vpack.c.b16 %v1573, %v1572
        %v1591 = vpack.c.b16 %v1575, %v1574
        %v1592 = vunpack.c.l.b16 %v354
        %v1593 = vunpack.c.l.b16 %v368
        %v1594 = vunpack.c.l.b16 %v382
        %v1595 = vunpack.c.l.b16 %v396
        %v1596 = vunpack.c.l.b16 %v410
        %v1597 = vunpack.c.l.b16 %v424
        %v1598 = vunpack.c.l.b16 %v438
        %v1599 = vunpack.c.l.b16 %v452
        %v1600 = vunpack.c.l.b16 %v466
        %v1601 = vunpack.c.l.b16 %v480
        %v1602 = vunpack.c.l.b16 %v494
        %v1603 = vunpack.c.l.b16 %v508
        %v1604 = vunpack.c.l.b16 %v522
        %v1605 = vunpack.c.l.b16 %v536
        %v1606 = vunpack.c.l.b16 %v550
        %v1607 = vunpack.c.l.b16 %v564
        %v1608 = vunpack.c.l.b16 %v578
        %v1609 = vunpack.c.l.b16 %v592
        %v1610 = vunpack.c.l.b16 %v606
        %v1611 = vunpack.c.l.b16 %v620
        %v1612 = vunpack.c.l.b16 %v634
        %v1613 = vunpack.c.l.b16 %v648
        %v1614 = vunpack.c.l.b16 %v662
        %v1615 = vunpack.c.l.b16 %v676
        %v1616 = vunpack.c.l.b16 %v690
        %v1617 = vunpack.c.l.b16 %v704
        %v1618 = vunpack.c.l.b16 %v718
        %v1619 = vunpack.c.l.b16 %v732
        %v1620 = vunpack.c.l.b16 %v746
        %v1621 = vunpack.c.l.b16 %v760
        %v1622 = vunpack.c.l.b16 %v774
        %v1623 = vunpack.c.l.b16 %v788
        %v1624 = vpack.c.b16 %v1593, %v1592
        %v1625 = vpack.c.b16 %v1595, %v1594
        %v1626 = vpack.c.b16 %v1597, %v1596
        %v1627 = vpack.c.b16 %v1599, %v1598
        %v1628 = vpack.c.b16 %v1601, %v1600
        %v1629 = vpack.c.b16 %v1603, %v1602
        %v1630 = vpack.c.b16 %v1605, %v1604
        %v1631 = vpack.c.b16 %v1607, %v1606
        %v1632 = vpack.c.b16 %v1609, %v1608
        %v1633 = vpack.c.b16 %v1611, %v1610
        %v1634 = vpack.c.b16 %v1613, %v1612
        %v1635 = vpack.c.b16 %v1615, %v1614
        %v1636 = vpack.c.b16 %v1617, %v1616
        %v1637 = vpack.c.b16 %v1619, %v1618
        %v1638 = vpack.c.b16 %v1621, %v1620
        %v1639 = vpack.c.b16 %v1623, %v1622
        %1640 = vrot.lane.b32.xlu0 %v1624, 4
        %v1641 = vpop.permute.xlu0 %1640
        %1642 = vrot.lane.b32.xlu0 %v1625, 4
        %v1643 = vpop.permute.xlu0 %1642
        %1644 = vrot.lane.b32.xlu0 %v1626, 4
        %v1645 = vpop.permute.xlu0 %1644
        %1646 = vrot.lane.b32.xlu0 %v1627, 4
        %v1647 = vpop.permute.xlu0 %1646
        %1648 = vrot.lane.b32.xlu0 %v1628, 4
        %v1649 = vpop.permute.xlu0 %1648
        %1650 = vrot.lane.b32.xlu0 %v1629, 4
        %v1651 = vpop.permute.xlu0 %1650
        %1652 = vrot.lane.b32.xlu0 %v1630, 4
        %v1653 = vpop.permute.xlu0 %1652
        %1654 = vrot.lane.b32.xlu0 %v1631, 4
        %v1655 = vpop.permute.xlu0 %1654
        %1656 = vrot.lane.b32.xlu0 %v1632, 4
        %v1657 = vpop.permute.xlu0 %1656
        %1658 = vrot.lane.b32.xlu0 %v1633, 4
        %v1659 = vpop.permute.xlu0 %1658
        %1660 = vrot.lane.b32.xlu0 %v1634, 4
        %v1661 = vpop.permute.xlu0 %1660
        %1662 = vrot.lane.b32.xlu0 %v1635, 4
        %v1663 = vpop.permute.xlu0 %1662
        %1664 = vrot.lane.b32.xlu0 %v1636, 4
        %v1665 = vpop.permute.xlu0 %1664
        %1666 = vrot.lane.b32.xlu0 %v1637, 4
        %v1667 = vpop.permute.xlu0 %1666
        %1668 = vrot.lane.b32.xlu0 %v1638, 4
        %v1669 = vpop.permute.xlu0 %1668
        %1670 = vrot.lane.b32.xlu0 %v1639, 4
        %v1671 = vpop.permute.xlu0 %1670
        %v1672 = vunpack.c.l.b16 %v859
        %v1673 = vunpack.c.l.b16 %v863
        %v1674 = vunpack.c.l.b16 %v867
        %v1675 = vunpack.c.l.b16 %v871
        %v1676 = vunpack.c.l.b16 %v875
        %v1677 = vunpack.c.l.b16 %v879
        %v1678 = vunpack.c.l.b16 %v883
        %v1679 = vunpack.c.l.b16 %v887
        %v1680 = vunpack.c.l.b16 %v891
        %v1681 = vunpack.c.l.b16 %v895
        %v1682 = vunpack.c.l.b16 %v899
        %v1683 = vunpack.c.l.b16 %v903
        %v1684 = vunpack.c.l.b16 %v907
        %v1685 = vunpack.c.l.b16 %v911
        %v1686 = vunpack.c.l.b16 %v915
        %v1687 = vunpack.c.l.b16 %v919
        %v1688 = vunpack.c.l.b16 %v923
        %v1689 = vunpack.c.l.b16 %v927
        %v1690 = vunpack.c.l.b16 %v931
        %v1691 = vunpack.c.l.b16 %v935
        %v1692 = vunpack.c.l.b16 %v939
        %v1693 = vunpack.c.l.b16 %v943
        %v1694 = vunpack.c.l.b16 %v947
        %v1695 = vunpack.c.l.b16 %v951
        %v1696 = vunpack.c.l.b16 %v955
        %v1697 = vunpack.c.l.b16 %v959
        %v1698 = vunpack.c.l.b16 %v963
        %v1699 = vunpack.c.l.b16 %v967
        %v1700 = vunpack.c.l.b16 %v971
        %v1701 = vunpack.c.l.b16 %v975
        %v1702 = vunpack.c.l.b16 %v979
        %v1703 = vunpack.c.l.b16 %v983
        %v1704 = vpack.c.b16 %v1673, %v1672
        %v1705 = vpack.c.b16 %v1675, %v1674
        %v1706 = vpack.c.b16 %v1677, %v1676
        %v1707 = vpack.c.b16 %v1679, %v1678
        %v1708 = vpack.c.b16 %v1681, %v1680
        %v1709 = vpack.c.b16 %v1683, %v1682
        %v1710 = vpack.c.b16 %v1685, %v1684
        %v1711 = vpack.c.b16 %v1687, %v1686
        %v1712 = vpack.c.b16 %v1689, %v1688
        %v1713 = vpack.c.b16 %v1691, %v1690
        %v1714 = vpack.c.b16 %v1693, %v1692
        %v1715 = vpack.c.b16 %v1695, %v1694
        %v1716 = vpack.c.b16 %v1697, %v1696
        %v1717 = vpack.c.b16 %v1699, %v1698
        %v1718 = vpack.c.b16 %v1701, %v1700
        %v1719 = vpack.c.b16 %v1703, %v1702
        %1720 = vrot.lane.b32.xlu0 %v1704, 8
        %v1721 = vpop.permute.xlu0 %1720
        %1722 = vrot.lane.b32.xlu0 %v1705, 8
        %v1723 = vpop.permute.xlu0 %1722
        %1724 = vrot.lane.b32.xlu0 %v1706, 8
        %v1725 = vpop.permute.xlu0 %1724
        %1726 = vrot.lane.b32.xlu0 %v1707, 8
        %v1727 = vpop.permute.xlu0 %1726
        %1728 = vrot.lane.b32.xlu0 %v1708, 8
        %v1729 = vpop.permute.xlu0 %1728
        %1730 = vrot.lane.b32.xlu0 %v1709, 8
        %v1731 = vpop.permute.xlu0 %1730
        %1732 = vrot.lane.b32.xlu0 %v1710, 8
        %v1733 = vpop.permute.xlu0 %1732
        %1734 = vrot.lane.b32.xlu0 %v1711, 8
        %v1735 = vpop.permute.xlu0 %1734
        %1736 = vrot.lane.b32.xlu0 %v1712, 8
        %v1737 = vpop.permute.xlu0 %1736
        %1738 = vrot.lane.b32.xlu0 %v1713, 8
        %v1739 = vpop.permute.xlu0 %1738
        %1740 = vrot.lane.b32.xlu0 %v1714, 8
        %v1741 = vpop.permute.xlu0 %1740
        %1742 = vrot.lane.b32.xlu0 %v1715, 8
        %v1743 = vpop.permute.xlu0 %1742
        %1744 = vrot.lane.b32.xlu0 %v1716, 8
        %v1745 = vpop.permute.xlu0 %1744
        %1746 = vrot.lane.b32.xlu0 %v1717, 8
        %v1747 = vpop.permute.xlu0 %1746
        %1748 = vrot.lane.b32.xlu0 %v1718, 8
        %v1749 = vpop.permute.xlu0 %1748
        %1750 = vrot.lane.b32.xlu0 %v1719, 8
        %v1751 = vpop.permute.xlu0 %1750
        %v1752 = vunpack.c.l.b16 %v234
        %v1753 = vunpack.c.l.b16 %v254
        %v1754 = vunpack.c.l.b16 %v274
        %v1755 = vunpack.c.l.b16 %v294
        %v1756 = vpack.c.b16 %v1546, %v1545
        %v1757 = vpack.c.b16 %v1548, %v1547
        %v1758 = vpack.c.b16 %v1550, %v1549
        %v1759 = vpack.c.b16 %v1752, %v1551
        %v1760 = vpack.c.b16 %v1554, %v1553
        %v1761 = vpack.c.b16 %v1556, %v1555
        %v1762 = vpack.c.b16 %v1558, %v1557
        %v1763 = vpack.c.b16 %v1753, %v1559
        %v1764 = vpack.c.b16 %v1562, %v1561
        %v1765 = vpack.c.b16 %v1564, %v1563
        %v1766 = vpack.c.b16 %v1566, %v1565
        %v1767 = vpack.c.b16 %v1754, %v1567
        %v1768 = vpack.c.b16 %v1570, %v1569
        %v1769 = vpack.c.b16 %v1572, %v1571
        %v1770 = vpack.c.b16 %v1574, %v1573
        %v1771 = vpack.c.b16 %v1755, %v1575
        %1772 = vrot.lane.b32.xlu0 %v1756, 12
        %v1773 = vpop.permute.xlu0 %1772
        %1774 = vrot.lane.b32.xlu0 %v1757, 12
        %v1775 = vpop.permute.xlu0 %1774
        %1776 = vrot.lane.b32.xlu0 %v1758, 12
        %v1777 = vpop.permute.xlu0 %1776
        %1778 = vrot.lane.b32.xlu0 %v1759, 12
        %v1779 = vpop.permute.xlu0 %1778
        %1780 = vrot.lane.b32.xlu0 %v1760, 12
        %v1781 = vpop.permute.xlu0 %1780
        %1782 = vrot.lane.b32.xlu0 %v1761, 12
        %v1783 = vpop.permute.xlu0 %1782
        %1784 = vrot.lane.b32.xlu0 %v1762, 12
        %v1785 = vpop.permute.xlu0 %1784
        %1786 = vrot.lane.b32.xlu0 %v1763, 12
        %v1787 = vpop.permute.xlu0 %1786
        %1788 = vrot.lane.b32.xlu0 %v1764, 12
        %v1789 = vpop.permute.xlu0 %1788
        %1790 = vrot.lane.b32.xlu0 %v1765, 12
        %v1791 = vpop.permute.xlu0 %1790
        %1792 = vrot.lane.b32.xlu0 %v1766, 12
        %v1793 = vpop.permute.xlu0 %1792
        %1794 = vrot.lane.b32.xlu0 %v1767, 12
        %v1795 = vpop.permute.xlu0 %1794
        %1796 = vrot.lane.b32.xlu0 %v1768, 12
        %v1797 = vpop.permute.xlu0 %1796
        %1798 = vrot.lane.b32.xlu0 %v1769, 12
        %v1799 = vpop.permute.xlu0 %1798
        %1800 = vrot.lane.b32.xlu0 %v1770, 12
        %v1801 = vpop.permute.xlu0 %1800
        %1802 = vrot.lane.b32.xlu0 %v1771, 12
        %v1803 = vpop.permute.xlu0 %1802
        %v1804 = vunpack.c.l.b16 %v997
        %v1805 = vunpack.c.l.b16 %v1011
        %v1806 = vunpack.c.l.b16 %v1025
        %v1807 = vunpack.c.l.b16 %v1039
        %v1808 = vpack.c.b16 %v1594, %v1593
        %v1809 = vpack.c.b16 %v1596, %v1595
        %v1810 = vpack.c.b16 %v1598, %v1597
        %v1811 = vpack.c.b16 %v1804, %v1599
        %v1812 = vpack.c.b16 %v1602, %v1601
        %v1813 = vpack.c.b16 %v1604, %v1603
        %v1814 = vpack.c.b16 %v1606, %v1605
        %v1815 = vpack.c.b16 %v1805, %v1607
        %v1816 = vpack.c.b16 %v1610, %v1609
        %v1817 = vpack.c.b16 %v1612, %v1611
        %v1818 = vpack.c.b16 %v1614, %v1613
        %v1819 = vpack.c.b16 %v1806, %v1615
        %v1820 = vpack.c.b16 %v1618, %v1617
        %v1821 = vpack.c.b16 %v1620, %v1619
        %v1822 = vpack.c.b16 %v1622, %v1621
        %v1823 = vpack.c.b16 %v1807, %v1623
        %1824 = vrot.lane.b32.xlu0 %v1808, 16
        %v1825 = vpop.permute.xlu0 %1824
        %1826 = vrot.lane.b32.xlu0 %v1809, 16
        %v1827 = vpop.permute.xlu0 %1826
        %1828 = vrot.lane.b32.xlu0 %v1810, 16
        %v1829 = vpop.permute.xlu0 %1828
        %1830 = vrot.lane.b32.xlu0 %v1811, 16
        %v1831 = vpop.permute.xlu0 %1830
        %1832 = vrot.lane.b32.xlu0 %v1812, 16
        %v1833 = vpop.permute.xlu0 %1832
        %1834 = vrot.lane.b32.xlu0 %v1813, 16
        %v1835 = vpop.permute.xlu0 %1834
        %1836 = vrot.lane.b32.xlu0 %v1814, 16
        %v1837 = vpop.permute.xlu0 %1836
        %1838 = vrot.lane.b32.xlu0 %v1815, 16
        %v1839 = vpop.permute.xlu0 %1838
        %1840 = vrot.lane.b32.xlu0 %v1816, 16
        %v1841 = vpop.permute.xlu0 %1840
        %1842 = vrot.lane.b32.xlu0 %v1817, 16
        %v1843 = vpop.permute.xlu0 %1842
        %1844 = vrot.lane.b32.xlu0 %v1818, 16
        %v1845 = vpop.permute.xlu0 %1844
        %1846 = vrot.lane.b32.xlu0 %v1819, 16
        %v1847 = vpop.permute.xlu0 %1846
        %1848 = vrot.lane.b32.xlu0 %v1820, 16
        %v1849 = vpop.permute.xlu0 %1848
        %1850 = vrot.lane.b32.xlu0 %v1821, 16
        %v1851 = vpop.permute.xlu0 %1850
        %1852 = vrot.lane.b32.xlu0 %v1822, 16
        %v1853 = vpop.permute.xlu0 %1852
        %1854 = vrot.lane.b32.xlu0 %v1823, 16
        %v1855 = vpop.permute.xlu0 %1854
        %v1856 = vunpack.c.l.b16 %v1051
        %v1857 = vunpack.c.l.b16 %v1055
        %v1858 = vunpack.c.l.b16 %v1059
        %v1859 = vunpack.c.l.b16 %v1063
        %v1860 = vpack.c.b16 %v1674, %v1673
        %v1861 = vpack.c.b16 %v1676, %v1675
        %v1862 = vpack.c.b16 %v1678, %v1677
        %v1863 = vpack.c.b16 %v1856, %v1679
        %v1864 = vpack.c.b16 %v1682, %v1681
        %v1865 = vpack.c.b16 %v1684, %v1683
        %v1866 = vpack.c.b16 %v1686, %v1685
        %v1867 = vpack.c.b16 %v1857, %v1687
        %v1868 = vpack.c.b16 %v1690, %v1689
        %v1869 = vpack.c.b16 %v1692, %v1691
        %v1870 = vpack.c.b16 %v1694, %v1693
        %v1871 = vpack.c.b16 %v1858, %v1695
        %v1872 = vpack.c.b16 %v1698, %v1697
        %v1873 = vpack.c.b16 %v1700, %v1699
        %v1874 = vpack.c.b16 %v1702, %v1701
        %v1875 = vpack.c.b16 %v1859, %v1703
        %1876 = vrot.lane.b32.xlu0 %v1860, 20
        %v1877 = vpop.permute.xlu0 %1876
        %1878 = vrot.lane.b32.xlu0 %v1861, 20
        %v1879 = vpop.permute.xlu0 %1878
        %1880 = vrot.lane.b32.xlu0 %v1862, 20
        %v1881 = vpop.permute.xlu0 %1880
        %1882 = vrot.lane.b32.xlu0 %v1863, 20
        %v1883 = vpop.permute.xlu0 %1882
        %1884 = vrot.lane.b32.xlu0 %v1864, 20
        %v1885 = vpop.permute.xlu0 %1884
        %1886 = vrot.lane.b32.xlu0 %v1865, 20
        %v1887 = vpop.permute.xlu0 %1886
        %1888 = vrot.lane.b32.xlu0 %v1866, 20
        %v1889 = vpop.permute.xlu0 %1888
        %1890 = vrot.lane.b32.xlu0 %v1867, 20
        %v1891 = vpop.permute.xlu0 %1890
        %1892 = vrot.lane.b32.xlu0 %v1868, 20
        %v1893 = vpop.permute.xlu0 %1892
        %1894 = vrot.lane.b32.xlu0 %v1869, 20
        %v1895 = vpop.permute.xlu0 %1894
        %1896 = vrot.lane.b32.xlu0 %v1870, 20
        %v1897 = vpop.permute.xlu0 %1896
        %1898 = vrot.lane.b32.xlu0 %v1871, 20
        %v1899 = vpop.permute.xlu0 %1898
        %1900 = vrot.lane.b32.xlu0 %v1872, 20
        %v1901 = vpop.permute.xlu0 %1900
        %1902 = vrot.lane.b32.xlu0 %v1873, 20
        %v1903 = vpop.permute.xlu0 %1902
        %1904 = vrot.lane.b32.xlu0 %v1874, 20
        %v1905 = vpop.permute.xlu0 %1904
        %1906 = vrot.lane.b32.xlu0 %v1875, 20
        %v1907 = vpop.permute.xlu0 %1906
        %v1908 = vunpack.c.l.b16 %v236
        %v1909 = vunpack.c.l.b16 %v256
        %v1910 = vunpack.c.l.b16 %v276
        %v1911 = vunpack.c.l.b16 %v296
        %v1912 = vpack.c.b16 %v1908, %v1752
        %v1913 = vpack.c.b16 %v1909, %v1753
        %v1914 = vpack.c.b16 %v1910, %v1754
        %v1915 = vpack.c.b16 %v1911, %v1755
        %1916 = vrot.lane.b32.xlu0 %v1577, 24
        %v1917 = vpop.permute.xlu0 %1916
        %1918 = vrot.lane.b32.xlu0 %v1578, 24
        %v1919 = vpop.permute.xlu0 %1918
        %1920 = vrot.lane.b32.xlu0 %v1579, 24
        %v1921 = vpop.permute.xlu0 %1920
        %1922 = vrot.lane.b32.xlu0 %v1912, 24
        %v1923 = vpop.permute.xlu0 %1922
        %1924 = vrot.lane.b32.xlu0 %v1581, 24
        %v1925 = vpop.permute.xlu0 %1924
        %1926 = vrot.lane.b32.xlu0 %v1582, 24
        %v1927 = vpop.permute.xlu0 %1926
        %1928 = vrot.lane.b32.xlu0 %v1583, 24
        %v1929 = vpop.permute.xlu0 %1928
        %1930 = vrot.lane.b32.xlu0 %v1913, 24
        %v1931 = vpop.permute.xlu0 %1930
        %1932 = vrot.lane.b32.xlu0 %v1585, 24
        %v1933 = vpop.permute.xlu0 %1932
        %1934 = vrot.lane.b32.xlu0 %v1586, 24
        %v1935 = vpop.permute.xlu0 %1934
        %1936 = vrot.lane.b32.xlu0 %v1587, 24
        %v1937 = vpop.permute.xlu0 %1936
        %1938 = vrot.lane.b32.xlu0 %v1914, 24
        %v1939 = vpop.permute.xlu0 %1938
        %1940 = vrot.lane.b32.xlu0 %v1589, 24
        %v1941 = vpop.permute.xlu0 %1940
        %1942 = vrot.lane.b32.xlu0 %v1590, 24
        %v1943 = vpop.permute.xlu0 %1942
        %1944 = vrot.lane.b32.xlu0 %v1591, 24
        %v1945 = vpop.permute.xlu0 %1944
        %1946 = vrot.lane.b32.xlu0 %v1915, 24
        %v1947 = vpop.permute.xlu0 %1946
        %v1948 = vunpack.c.l.b16 %v1077
        %v1949 = vunpack.c.l.b16 %v1091
        %v1950 = vunpack.c.l.b16 %v1105
        %v1951 = vunpack.c.l.b16 %v1119
        %v1952 = vpack.c.b16 %v1948, %v1804
        %v1953 = vpack.c.b16 %v1949, %v1805
        %v1954 = vpack.c.b16 %v1950, %v1806
        %v1955 = vpack.c.b16 %v1951, %v1807
        %1956 = vrot.lane.b32.xlu0 %v1625, 28
        %v1957 = vpop.permute.xlu0 %1956
        %1958 = vrot.lane.b32.xlu0 %v1626, 28
        %v1959 = vpop.permute.xlu0 %1958
        %1960 = vrot.lane.b32.xlu0 %v1627, 28
        %v1961 = vpop.permute.xlu0 %1960
        %1962 = vrot.lane.b32.xlu0 %v1952, 28
        %v1963 = vpop.permute.xlu0 %1962
        %1964 = vrot.lane.b32.xlu0 %v1629, 28
        %v1965 = vpop.permute.xlu0 %1964
        %1966 = vrot.lane.b32.xlu0 %v1630, 28
        %v1967 = vpop.permute.xlu0 %1966
        %1968 = vrot.lane.b32.xlu0 %v1631, 28
        %v1969 = vpop.permute.xlu0 %1968
        %1970 = vrot.lane.b32.xlu0 %v1953, 28
        %v1971 = vpop.permute.xlu0 %1970
        %1972 = vrot.lane.b32.xlu0 %v1633, 28
        %v1973 = vpop.permute.xlu0 %1972
        %1974 = vrot.lane.b32.xlu0 %v1634, 28
        %v1975 = vpop.permute.xlu0 %1974
        %1976 = vrot.lane.b32.xlu0 %v1635, 28
        %v1977 = vpop.permute.xlu0 %1976
        %1978 = vrot.lane.b32.xlu0 %v1954, 28
        %v1979 = vpop.permute.xlu0 %1978
        %1980 = vrot.lane.b32.xlu0 %v1637, 28
        %v1981 = vpop.permute.xlu0 %1980
        %1982 = vrot.lane.b32.xlu0 %v1638, 28
        %v1983 = vpop.permute.xlu0 %1982
        %1984 = vrot.lane.b32.xlu0 %v1639, 28
        %v1985 = vpop.permute.xlu0 %1984
        %1986 = vrot.lane.b32.xlu0 %v1955, 28
        %v1987 = vpop.permute.xlu0 %1986
        %v1988 = vunpack.c.l.b16 %v1131
        %v1989 = vunpack.c.l.b16 %v1135
        %v1990 = vunpack.c.l.b16 %v1139
        %v1991 = vunpack.c.l.b16 %v1143
        %v1992 = vpack.c.b16 %v1988, %v1856
        %v1993 = vpack.c.b16 %v1989, %v1857
        %v1994 = vpack.c.b16 %v1990, %v1858
        %v1995 = vpack.c.b16 %v1991, %v1859
        %1996 = vrot.lane.b32.xlu0 %v1705, 32
        %v1997 = vpop.permute.xlu0 %1996
        %1998 = vrot.lane.b32.xlu0 %v1706, 32
        %v1999 = vpop.permute.xlu0 %1998
        %2000 = vrot.lane.b32.xlu0 %v1707, 32
        %v2001 = vpop.permute.xlu0 %2000
        %2002 = vrot.lane.b32.xlu0 %v1992, 32
        %v2003 = vpop.permute.xlu0 %2002
        %2004 = vrot.lane.b32.xlu0 %v1709, 32
        %v2005 = vpop.permute.xlu0 %2004
        %2006 = vrot.lane.b32.xlu0 %v1710, 32
        %v2007 = vpop.permute.xlu0 %2006
        %2008 = vrot.lane.b32.xlu0 %v1711, 32
        %v2009 = vpop.permute.xlu0 %2008
        %2010 = vrot.lane.b32.xlu0 %v1993, 32
        %v2011 = vpop.permute.xlu0 %2010
        %2012 = vrot.lane.b32.xlu0 %v1713, 32
        %v2013 = vpop.permute.xlu0 %2012
        %2014 = vrot.lane.b32.xlu0 %v1714, 32
        %v2015 = vpop.permute.xlu0 %2014
        %2016 = vrot.lane.b32.xlu0 %v1715, 32
        %v2017 = vpop.permute.xlu0 %2016
        %2018 = vrot.lane.b32.xlu0 %v1994, 32
        %v2019 = vpop.permute.xlu0 %2018
        %2020 = vrot.lane.b32.xlu0 %v1717, 32
        %v2021 = vpop.permute.xlu0 %2020
        %2022 = vrot.lane.b32.xlu0 %v1718, 32
        %v2023 = vpop.permute.xlu0 %2022
        %2024 = vrot.lane.b32.xlu0 %v1719, 32
        %v2025 = vpop.permute.xlu0 %2024
        %2026 = vrot.lane.b32.xlu0 %v1995, 32
        %v2027 = vpop.permute.xlu0 %2026
        %v2028 = vunpack.c.l.b16 %v298
        %v2029 = vunpack.c.l.b16 %v300
        %v2030 = vunpack.c.l.b16 %v302
        %v2031 = vunpack.c.l.b16 %v304
        %v2032 = vunpack.c.l.b16 %v306
        %v2033 = vunpack.c.l.b16 %v308
        %v2034 = vunpack.c.l.b16 %v310
        %v2035 = vunpack.c.l.b16 %v312
        %v2036 = vpack.c.b16 %v2029, %v2028
        %v2037 = vpack.c.b16 %v2031, %v2030
        %v2038 = vpack.c.b16 %v2033, %v2032
        %v2039 = vpack.c.b16 %v2035, %v2034
        %2040 = vrot.lane.b32.xlu0 %v1580, 36
        %v2041 = vpop.permute.xlu0 %2040
        %2042 = vrot.lane.b32.xlu0 %v1581, 36
        %v2043 = vpop.permute.xlu0 %2042
        %2044 = vrot.lane.b32.xlu0 %v1582, 36
        %v2045 = vpop.permute.xlu0 %2044
        %2046 = vrot.lane.b32.xlu0 %v1583, 36
        %v2047 = vpop.permute.xlu0 %2046
        %2048 = vrot.lane.b32.xlu0 %v1584, 36
        %v2049 = vpop.permute.xlu0 %2048
        %2050 = vrot.lane.b32.xlu0 %v1585, 36
        %v2051 = vpop.permute.xlu0 %2050
        %2052 = vrot.lane.b32.xlu0 %v1586, 36
        %v2053 = vpop.permute.xlu0 %2052
        %2054 = vrot.lane.b32.xlu0 %v1587, 36
        %v2055 = vpop.permute.xlu0 %2054
        %2056 = vrot.lane.b32.xlu0 %v1588, 36
        %v2057 = vpop.permute.xlu0 %2056
        %2058 = vrot.lane.b32.xlu0 %v1589, 36
        %v2059 = vpop.permute.xlu0 %2058
        %2060 = vrot.lane.b32.xlu0 %v1590, 36
        %v2061 = vpop.permute.xlu0 %2060
        %2062 = vrot.lane.b32.xlu0 %v1591, 36
        %v2063 = vpop.permute.xlu0 %2062
        %2064 = vrot.lane.b32.xlu0 %v2036, 36
        %v2065 = vpop.permute.xlu0 %2064
        %2066 = vrot.lane.b32.xlu0 %v2037, 36
        %v2067 = vpop.permute.xlu0 %2066
        %2068 = vrot.lane.b32.xlu0 %v2038, 36
        %v2069 = vpop.permute.xlu0 %2068
        %2070 = vrot.lane.b32.xlu0 %v2039, 36
        %v2071 = vpop.permute.xlu0 %2070
        %v2072 = vunpack.c.l.b16 %v1157
        %v2073 = vunpack.c.l.b16 %v1171
        %v2074 = vunpack.c.l.b16 %v1185
        %v2075 = vunpack.c.l.b16 %v1199
        %v2076 = vunpack.c.l.b16 %v1213
        %v2077 = vunpack.c.l.b16 %v1227
        %v2078 = vunpack.c.l.b16 %v1241
        %v2079 = vunpack.c.l.b16 %v1255
        %v2080 = vpack.c.b16 %v2073, %v2072
        %v2081 = vpack.c.b16 %v2075, %v2074
        %v2082 = vpack.c.b16 %v2077, %v2076
        %v2083 = vpack.c.b16 %v2079, %v2078
        %2084 = vrot.lane.b32.xlu0 %v1628, 40
        %v2085 = vpop.permute.xlu0 %2084
        %2086 = vrot.lane.b32.xlu0 %v1629, 40
        %v2087 = vpop.permute.xlu0 %2086
        %2088 = vrot.lane.b32.xlu0 %v1630, 40
        %v2089 = vpop.permute.xlu0 %2088
        %2090 = vrot.lane.b32.xlu0 %v1631, 40
        %v2091 = vpop.permute.xlu0 %2090
        %2092 = vrot.lane.b32.xlu0 %v1632, 40
        %v2093 = vpop.permute.xlu0 %2092
        %2094 = vrot.lane.b32.xlu0 %v1633, 40
        %v2095 = vpop.permute.xlu0 %2094
        %2096 = vrot.lane.b32.xlu0 %v1634, 40
        %v2097 = vpop.permute.xlu0 %2096
        %2098 = vrot.lane.b32.xlu0 %v1635, 40
        %v2099 = vpop.permute.xlu0 %2098
        %2100 = vrot.lane.b32.xlu0 %v1636, 40
        %v2101 = vpop.permute.xlu0 %2100
        %2102 = vrot.lane.b32.xlu0 %v1637, 40
        %v2103 = vpop.permute.xlu0 %2102
        %2104 = vrot.lane.b32.xlu0 %v1638, 40
        %v2105 = vpop.permute.xlu0 %2104
        %2106 = vrot.lane.b32.xlu0 %v1639, 40
        %v2107 = vpop.permute.xlu0 %2106
        %2108 = vrot.lane.b32.xlu0 %v2080, 40
        %v2109 = vpop.permute.xlu0 %2108
        %2110 = vrot.lane.b32.xlu0 %v2081, 40
        %v2111 = vpop.permute.xlu0 %2110
        %2112 = vrot.lane.b32.xlu0 %v2082, 40
        %v2113 = vpop.permute.xlu0 %2112
        %2114 = vrot.lane.b32.xlu0 %v2083, 40
        %v2115 = vpop.permute.xlu0 %2114
        %v2116 = vunpack.c.l.b16 %v1275
        %v2117 = vunpack.c.l.b16 %v1279
        %v2118 = vunpack.c.l.b16 %v1283
        %v2119 = vunpack.c.l.b16 %v1287
        %v2120 = vunpack.c.l.b16 %v1291
        %v2121 = vunpack.c.l.b16 %v1295
        %v2122 = vunpack.c.l.b16 %v1299
        %v2123 = vunpack.c.l.b16 %v1303
        %v2124 = vpack.c.b16 %v2117, %v2116
        %v2125 = vpack.c.b16 %v2119, %v2118
        %v2126 = vpack.c.b16 %v2121, %v2120
        %v2127 = vpack.c.b16 %v2123, %v2122
        %2128 = vrot.lane.b32.xlu0 %v1708, 44
        %v2129 = vpop.permute.xlu0 %2128
        %2130 = vrot.lane.b32.xlu0 %v1709, 44
        %v2131 = vpop.permute.xlu0 %2130
        %2132 = vrot.lane.b32.xlu0 %v1710, 44
        %v2133 = vpop.permute.xlu0 %2132
        %2134 = vrot.lane.b32.xlu0 %v1711, 44
        %v2135 = vpop.permute.xlu0 %2134
        %2136 = vrot.lane.b32.xlu0 %v1712, 44
        %v2137 = vpop.permute.xlu0 %2136
        %2138 = vrot.lane.b32.xlu0 %v1713, 44
        %v2139 = vpop.permute.xlu0 %2138
        %2140 = vrot.lane.b32.xlu0 %v1714, 44
        %v2141 = vpop.permute.xlu0 %2140
        %2142 = vrot.lane.b32.xlu0 %v1715, 44
        %v2143 = vpop.permute.xlu0 %2142
        %2144 = vrot.lane.b32.xlu0 %v1716, 44
        %v2145 = vpop.permute.xlu0 %2144
        %2146 = vrot.lane.b32.xlu0 %v1717, 44
        %v2147 = vpop.permute.xlu0 %2146
        %2148 = vrot.lane.b32.xlu0 %v1718, 44
        %v2149 = vpop.permute.xlu0 %2148
        %2150 = vrot.lane.b32.xlu0 %v1719, 44
        %v2151 = vpop.permute.xlu0 %2150
        %2152 = vrot.lane.b32.xlu0 %v2124, 44
        %v2153 = vpop.permute.xlu0 %2152
        %2154 = vrot.lane.b32.xlu0 %v2125, 44
        %v2155 = vpop.permute.xlu0 %2154
        %2156 = vrot.lane.b32.xlu0 %v2126, 44
        %v2157 = vpop.permute.xlu0 %2156
        %2158 = vrot.lane.b32.xlu0 %v2127, 44
        %v2159 = vpop.permute.xlu0 %2158
        %v2160 = vunpack.c.l.b16 %v314
        %v2161 = vpack.c.b16 %v2030, %v2029
        %v2162 = vpack.c.b16 %v2032, %v2031
        %v2163 = vpack.c.b16 %v2034, %v2033
        %v2164 = vpack.c.b16 %v2160, %v2035
        %2165 = vrot.lane.b32.xlu0 %v1760, 48
        %v2166 = vpop.permute.xlu0 %2165
        %2167 = vrot.lane.b32.xlu0 %v1761, 48
        %v2168 = vpop.permute.xlu0 %2167
        %2169 = vrot.lane.b32.xlu0 %v1762, 48
        %v2170 = vpop.permute.xlu0 %2169
        %2171 = vrot.lane.b32.xlu0 %v1763, 48
        %v2172 = vpop.permute.xlu0 %2171
        %2173 = vrot.lane.b32.xlu0 %v1764, 48
        %v2174 = vpop.permute.xlu0 %2173
        %2175 = vrot.lane.b32.xlu0 %v1765, 48
        %v2176 = vpop.permute.xlu0 %2175
        %2177 = vrot.lane.b32.xlu0 %v1766, 48
        %v2178 = vpop.permute.xlu0 %2177
        %2179 = vrot.lane.b32.xlu0 %v1767, 48
        %v2180 = vpop.permute.xlu0 %2179
        %2181 = vrot.lane.b32.xlu0 %v1768, 48
        %v2182 = vpop.permute.xlu0 %2181
        %2183 = vrot.lane.b32.xlu0 %v1769, 48
        %v2184 = vpop.permute.xlu0 %2183
        %2185 = vrot.lane.b32.xlu0 %v1770, 48
        %v2186 = vpop.permute.xlu0 %2185
        %2187 = vrot.lane.b32.xlu0 %v1771, 48
        %v2188 = vpop.permute.xlu0 %2187
        %2189 = vrot.lane.b32.xlu0 %v2161, 48
        %v2190 = vpop.permute.xlu0 %2189
        %2191 = vrot.lane.b32.xlu0 %v2162, 48
        %v2192 = vpop.permute.xlu0 %2191
        %2193 = vrot.lane.b32.xlu0 %v2163, 48
        %v2194 = vpop.permute.xlu0 %2193
        %2195 = vrot.lane.b32.xlu0 %v2164, 48
        %v2196 = vpop.permute.xlu0 %2195
        %v2197 = vunpack.c.l.b16 %v1317
        %v2198 = vpack.c.b16 %v2074, %v2073
        %v2199 = vpack.c.b16 %v2076, %v2075
        %v2200 = vpack.c.b16 %v2078, %v2077
        %v2201 = vpack.c.b16 %v2197, %v2079
        %2202 = vrot.lane.b32.xlu0 %v1812, 52
        %v2203 = vpop.permute.xlu0 %2202
        %2204 = vrot.lane.b32.xlu0 %v1813, 52
        %v2205 = vpop.permute.xlu0 %2204
        %2206 = vrot.lane.b32.xlu0 %v1814, 52
        %v2207 = vpop.permute.xlu0 %2206
        %2208 = vrot.lane.b32.xlu0 %v1815, 52
        %v2209 = vpop.permute.xlu0 %2208
        %2210 = vrot.lane.b32.xlu0 %v1816, 52
        %v2211 = vpop.permute.xlu0 %2210
        %2212 = vrot.lane.b32.xlu0 %v1817, 52
        %v2213 = vpop.permute.xlu0 %2212
        %2214 = vrot.lane.b32.xlu0 %v1818, 52
        %v2215 = vpop.permute.xlu0 %2214
        %2216 = vrot.lane.b32.xlu0 %v1819, 52
        %v2217 = vpop.permute.xlu0 %2216
        %2218 = vrot.lane.b32.xlu0 %v1820, 52
        %v2219 = vpop.permute.xlu0 %2218
        %2220 = vrot.lane.b32.xlu0 %v1821, 52
        %v2221 = vpop.permute.xlu0 %2220
        %2222 = vrot.lane.b32.xlu0 %v1822, 52
        %v2223 = vpop.permute.xlu0 %2222
        %2224 = vrot.lane.b32.xlu0 %v1823, 52
        %v2225 = vpop.permute.xlu0 %2224
        %2226 = vrot.lane.b32.xlu0 %v2198, 52
        %v2227 = vpop.permute.xlu0 %2226
        %2228 = vrot.lane.b32.xlu0 %v2199, 52
        %v2229 = vpop.permute.xlu0 %2228
        %2230 = vrot.lane.b32.xlu0 %v2200, 52
        %v2231 = vpop.permute.xlu0 %2230
        %2232 = vrot.lane.b32.xlu0 %v2201, 52
        %v2233 = vpop.permute.xlu0 %2232
        %v2234 = vunpack.c.l.b16 %v1323
        %v2235 = vpack.c.b16 %v2118, %v2117
        %v2236 = vpack.c.b16 %v2120, %v2119
        %v2237 = vpack.c.b16 %v2122, %v2121
        %v2238 = vpack.c.b16 %v2234, %v2123
        %2239 = vrot.lane.b32.xlu0 %v1864, 56
        %v2240 = vpop.permute.xlu0 %2239
        %2241 = vrot.lane.b32.xlu0 %v1865, 56
        %v2242 = vpop.permute.xlu0 %2241
        %2243 = vrot.lane.b32.xlu0 %v1866, 56
        %v2244 = vpop.permute.xlu0 %2243
        %2245 = vrot.lane.b32.xlu0 %v1867, 56
        %v2246 = vpop.permute.xlu0 %2245
        %2247 = vrot.lane.b32.xlu0 %v1868, 56
        %v2248 = vpop.permute.xlu0 %2247
        %2249 = vrot.lane.b32.xlu0 %v1869, 56
        %v2250 = vpop.permute.xlu0 %2249
        %2251 = vrot.lane.b32.xlu0 %v1870, 56
        %v2252 = vpop.permute.xlu0 %2251
        %2253 = vrot.lane.b32.xlu0 %v1871, 56
        %v2254 = vpop.permute.xlu0 %2253
        %2255 = vrot.lane.b32.xlu0 %v1872, 56
        %v2256 = vpop.permute.xlu0 %2255
        %2257 = vrot.lane.b32.xlu0 %v1873, 56
        %v2258 = vpop.permute.xlu0 %2257
        %2259 = vrot.lane.b32.xlu0 %v1874, 56
        %v2260 = vpop.permute.xlu0 %2259
        %2261 = vrot.lane.b32.xlu0 %v1875, 56
        %v2262 = vpop.permute.xlu0 %2261
        %2263 = vrot.lane.b32.xlu0 %v2235, 56
        %v2264 = vpop.permute.xlu0 %2263
        %2265 = vrot.lane.b32.xlu0 %v2236, 56
        %v2266 = vpop.permute.xlu0 %2265
        %2267 = vrot.lane.b32.xlu0 %v2237, 56
        %v2268 = vpop.permute.xlu0 %2267
        %2269 = vrot.lane.b32.xlu0 %v2238, 56
        %v2270 = vpop.permute.xlu0 %2269
        %v2271 = vunpack.c.l.b16 %v316
        %v2272 = vpack.c.b16 %v2271, %v2160
        %2273 = vrot.lane.b32.xlu0 %v1581, 60
        %v2274 = vpop.permute.xlu0 %2273
        %2275 = vrot.lane.b32.xlu0 %v1582, 60
        %v2276 = vpop.permute.xlu0 %2275
        %2277 = vrot.lane.b32.xlu0 %v1583, 60
        %v2278 = vpop.permute.xlu0 %2277
        %2279 = vrot.lane.b32.xlu0 %v1913, 60
        %v2280 = vpop.permute.xlu0 %2279
        %2281 = vrot.lane.b32.xlu0 %v1585, 60
        %v2282 = vpop.permute.xlu0 %2281
        %2283 = vrot.lane.b32.xlu0 %v1586, 60
        %v2284 = vpop.permute.xlu0 %2283
        %2285 = vrot.lane.b32.xlu0 %v1587, 60
        %v2286 = vpop.permute.xlu0 %2285
        %2287 = vrot.lane.b32.xlu0 %v1914, 60
        %v2288 = vpop.permute.xlu0 %2287
        %2289 = vrot.lane.b32.xlu0 %v1589, 60
        %v2290 = vpop.permute.xlu0 %2289
        %2291 = vrot.lane.b32.xlu0 %v1590, 60
        %v2292 = vpop.permute.xlu0 %2291
        %2293 = vrot.lane.b32.xlu0 %v1591, 60
        %v2294 = vpop.permute.xlu0 %2293
        %2295 = vrot.lane.b32.xlu0 %v1915, 60
        %v2296 = vpop.permute.xlu0 %2295
        %2297 = vrot.lane.b32.xlu0 %v2037, 60
        %v2298 = vpop.permute.xlu0 %2297
        %2299 = vrot.lane.b32.xlu0 %v2038, 60
        %v2300 = vpop.permute.xlu0 %2299
        %2301 = vrot.lane.b32.xlu0 %v2039, 60
        %v2302 = vpop.permute.xlu0 %2301
        %2303 = vrot.lane.b32.xlu0 %v2272, 60
        %v2304 = vpop.permute.xlu0 %2303
        %vm2305 = vcmask 31744
        %v2308 = vsel %vm2305, %v1576, %v1641
        %v2311 = vsel %vm2305, %v1577, %v1643
        %v2314 = vsel %vm2305, %v1578, %v1645
        %v2317 = vsel %vm2305, %v1579, %v1647
        %v2320 = vsel %vm2305, %v1580, %v1649
        %v2323 = vsel %vm2305, %v1581, %v1651
        %v2326 = vsel %vm2305, %v1582, %v1653
        %v2329 = vsel %vm2305, %v1583, %v1655
        %v2332 = vsel %vm2305, %v1584, %v1657
        %v2335 = vsel %vm2305, %v1585, %v1659
        %v2338 = vsel %vm2305, %v1586, %v1661
        %v2341 = vsel %vm2305, %v1587, %v1663
        %v2344 = vsel %vm2305, %v1588, %v1665
        %v2347 = vsel %vm2305, %v1589, %v1667
        %v2350 = vsel %vm2305, %v1590, %v1669
        %v2353 = vsel %vm2305, %v1591, %v1671
        %vm2354 = vcmask 64512
        %v2356 = vsel %vm2354, %v2308, %v1721
        %v2358 = vsel %vm2354, %v2311, %v1723
        %v2360 = vsel %vm2354, %v2314, %v1725
        %v2362 = vsel %vm2354, %v2317, %v1727
        %v2364 = vsel %vm2354, %v2320, %v1729
        %v2366 = vsel %vm2354, %v2323, %v1731
        %v2368 = vsel %vm2354, %v2326, %v1733
        %v2370 = vsel %vm2354, %v2329, %v1735
        %v2372 = vsel %vm2354, %v2332, %v1737
        %v2374 = vsel %vm2354, %v2335, %v1739
        %v2376 = vsel %vm2354, %v2338, %v1741
        %v2378 = vsel %vm2354, %v2341, %v1743
        %v2380 = vsel %vm2354, %v2344, %v1745
        %v2382 = vsel %vm2354, %v2347, %v1747
        %v2384 = vsel %vm2354, %v2350, %v1749
        %v2386 = vsel %vm2354, %v2353, %v1751
        %vm2387 = vcmask 97280
        %v2389 = vsel %vm2387, %v2356, %v1773
        %v2391 = vsel %vm2387, %v2358, %v1775
        %v2393 = vsel %vm2387, %v2360, %v1777
        %v2395 = vsel %vm2387, %v2362, %v1779
        %v2397 = vsel %vm2387, %v2364, %v1781
        %v2399 = vsel %vm2387, %v2366, %v1783
        %v2401 = vsel %vm2387, %v2368, %v1785
        %v2403 = vsel %vm2387, %v2370, %v1787
        %v2405 = vsel %vm2387, %v2372, %v1789
        %v2407 = vsel %vm2387, %v2374, %v1791
        %v2409 = vsel %vm2387, %v2376, %v1793
        %v2411 = vsel %vm2387, %v2378, %v1795
        %v2413 = vsel %vm2387, %v2380, %v1797
        %v2415 = vsel %vm2387, %v2382, %v1799
        %v2417 = vsel %vm2387, %v2384, %v1801
        %v2419 = vsel %vm2387, %v2386, %v1803
        %vm2420 = vcmask 130048
        %v2422 = vsel %vm2420, %v2389, %v1825
        %v2424 = vsel %vm2420, %v2391, %v1827
        %v2426 = vsel %vm2420, %v2393, %v1829
        %v2428 = vsel %vm2420, %v2395, %v1831
        %v2430 = vsel %vm2420, %v2397, %v1833
        %v2432 = vsel %vm2420, %v2399, %v1835
        %v2434 = vsel %vm2420, %v2401, %v1837
        %v2436 = vsel %vm2420, %v2403, %v1839
        %v2438 = vsel %vm2420, %v2405, %v1841
        %v2440 = vsel %vm2420, %v2407, %v1843
        %v2442 = vsel %vm2420, %v2409, %v1845
        %v2444 = vsel %vm2420, %v2411, %v1847
        %v2446 = vsel %vm2420, %v2413, %v1849
        %v2448 = vsel %vm2420, %v2415, %v1851
        %v2450 = vsel %vm2420, %v2417, %v1853
        %v2452 = vsel %vm2420, %v2419, %v1855
        %vm2453 = vcmask 162816
        %v2455 = vsel %vm2453, %v2422, %v1877
        %v2457 = vsel %vm2453, %v2424, %v1879
        %v2459 = vsel %vm2453, %v2426, %v1881
        %v2461 = vsel %vm2453, %v2428, %v1883
        %v2463 = vsel %vm2453, %v2430, %v1885
        %v2465 = vsel %vm2453, %v2432, %v1887
        %v2467 = vsel %vm2453, %v2434, %v1889
        %v2469 = vsel %vm2453, %v2436, %v1891
        %v2471 = vsel %vm2453, %v2438, %v1893
        %v2473 = vsel %vm2453, %v2440, %v1895
        %v2475 = vsel %vm2453, %v2442, %v1897
        %v2477 = vsel %vm2453, %v2444, %v1899
        %v2479 = vsel %vm2453, %v2446, %v1901
        %v2481 = vsel %vm2453, %v2448, %v1903
        %v2483 = vsel %vm2453, %v2450, %v1905
        %v2485 = vsel %vm2453, %v2452, %v1907
        %vm2486 = vcmask 195584
        %v2488 = vsel %vm2486, %v2455, %v1917
        %v2490 = vsel %vm2486, %v2457, %v1919
        %v2492 = vsel %vm2486, %v2459, %v1921
        %v2494 = vsel %vm2486, %v2461, %v1923
        %v2496 = vsel %vm2486, %v2463, %v1925
        %v2498 = vsel %vm2486, %v2465, %v1927
        %v2500 = vsel %vm2486, %v2467, %v1929
        %v2502 = vsel %vm2486, %v2469, %v1931
        %v2504 = vsel %vm2486, %v2471, %v1933
        %v2506 = vsel %vm2486, %v2473, %v1935
        %v2508 = vsel %vm2486, %v2475, %v1937
        %v2510 = vsel %vm2486, %v2477, %v1939
        %v2512 = vsel %vm2486, %v2479, %v1941
        %v2514 = vsel %vm2486, %v2481, %v1943
        %v2516 = vsel %vm2486, %v2483, %v1945
        %v2518 = vsel %vm2486, %v2485, %v1947
        %vm2519 = vcmask 228352
        %v2521 = vsel %vm2519, %v2488, %v1957
        %v2523 = vsel %vm2519, %v2490, %v1959
        %v2525 = vsel %vm2519, %v2492, %v1961
        %v2527 = vsel %vm2519, %v2494, %v1963
        %v2529 = vsel %vm2519, %v2496, %v1965
        %v2531 = vsel %vm2519, %v2498, %v1967
        %v2533 = vsel %vm2519, %v2500, %v1969
        %v2535 = vsel %vm2519, %v2502, %v1971
        %v2537 = vsel %vm2519, %v2504, %v1973
        %v2539 = vsel %vm2519, %v2506, %v1975
        %v2541 = vsel %vm2519, %v2508, %v1977
        %v2543 = vsel %vm2519, %v2510, %v1979
        %v2545 = vsel %vm2519, %v2512, %v1981
        %v2547 = vsel %vm2519, %v2514, %v1983
        %v2549 = vsel %vm2519, %v2516, %v1985
        %v2551 = vsel %vm2519, %v2518, %v1987
        %vm2552 = vcmask 261120
        %v2554 = vsel %vm2552, %v2521, %v1997
        %v2556 = vsel %vm2552, %v2523, %v1999
        %v2558 = vsel %vm2552, %v2525, %v2001
        %v2560 = vsel %vm2552, %v2527, %v2003
        %v2562 = vsel %vm2552, %v2529, %v2005
        %v2564 = vsel %vm2552, %v2531, %v2007
        %v2566 = vsel %vm2552, %v2533, %v2009
        %v2568 = vsel %vm2552, %v2535, %v2011
        %v2570 = vsel %vm2552, %v2537, %v2013
        %v2572 = vsel %vm2552, %v2539, %v2015
        %v2574 = vsel %vm2552, %v2541, %v2017
        %v2576 = vsel %vm2552, %v2543, %v2019
        %v2578 = vsel %vm2552, %v2545, %v2021
        %v2580 = vsel %vm2552, %v2547, %v2023
        %v2582 = vsel %vm2552, %v2549, %v2025
        %v2584 = vsel %vm2552, %v2551, %v2027
        %vm2585 = vcmask 293888
        %v2587 = vsel %vm2585, %v2554, %v2041
        %v2589 = vsel %vm2585, %v2556, %v2043
        %v2591 = vsel %vm2585, %v2558, %v2045
        %v2593 = vsel %vm2585, %v2560, %v2047
        %v2595 = vsel %vm2585, %v2562, %v2049
        %v2597 = vsel %vm2585, %v2564, %v2051
        %v2599 = vsel %vm2585, %v2566, %v2053
        %v2601 = vsel %vm2585, %v2568, %v2055
        %v2603 = vsel %vm2585, %v2570, %v2057
        %v2605 = vsel %vm2585, %v2572, %v2059
        %v2607 = vsel %vm2585, %v2574, %v2061
        %v2609 = vsel %vm2585, %v2576, %v2063
        %v2611 = vsel %vm2585, %v2578, %v2065
        %v2613 = vsel %vm2585, %v2580, %v2067
        %v2615 = vsel %vm2585, %v2582, %v2069
        %v2617 = vsel %vm2585, %v2584, %v2071
        %vm2618 = vcmask 326656
        %v2620 = vsel %vm2618, %v2587, %v2085
        %v2622 = vsel %vm2618, %v2589, %v2087
        %v2624 = vsel %vm2618, %v2591, %v2089
        %v2626 = vsel %vm2618, %v2593, %v2091
        %v2628 = vsel %vm2618, %v2595, %v2093
        %v2630 = vsel %vm2618, %v2597, %v2095
        %v2632 = vsel %vm2618, %v2599, %v2097
        %v2634 = vsel %vm2618, %v2601, %v2099
        %v2636 = vsel %vm2618, %v2603, %v2101
        %v2638 = vsel %vm2618, %v2605, %v2103
        %v2640 = vsel %vm2618, %v2607, %v2105
        %v2642 = vsel %vm2618, %v2609, %v2107
        %v2644 = vsel %vm2618, %v2611, %v2109
        %v2646 = vsel %vm2618, %v2613, %v2111
        %v2648 = vsel %vm2618, %v2615, %v2113
        %v2650 = vsel %vm2618, %v2617, %v2115
        %vm2651 = vcmask 359424
        %v2653 = vsel %vm2651, %v2620, %v2129
        %v2655 = vsel %vm2651, %v2622, %v2131
        %v2657 = vsel %vm2651, %v2624, %v2133
        %v2659 = vsel %vm2651, %v2626, %v2135
        %v2661 = vsel %vm2651, %v2628, %v2137
        %v2663 = vsel %vm2651, %v2630, %v2139
        %v2665 = vsel %vm2651, %v2632, %v2141
        %v2667 = vsel %vm2651, %v2634, %v2143
        %v2669 = vsel %vm2651, %v2636, %v2145
        %v2671 = vsel %vm2651, %v2638, %v2147
        %v2673 = vsel %vm2651, %v2640, %v2149
        %v2675 = vsel %vm2651, %v2642, %v2151
        %v2677 = vsel %vm2651, %v2644, %v2153
        %v2679 = vsel %vm2651, %v2646, %v2155
        %v2681 = vsel %vm2651, %v2648, %v2157
        %v2683 = vsel %vm2651, %v2650, %v2159
        %vm2684 = vcmask 392192
        %v2686 = vsel %vm2684, %v2653, %v2166
        %v2688 = vsel %vm2684, %v2655, %v2168
        %v2690 = vsel %vm2684, %v2657, %v2170
        %v2692 = vsel %vm2684, %v2659, %v2172
        %v2694 = vsel %vm2684, %v2661, %v2174
        %v2696 = vsel %vm2684, %v2663, %v2176
        %v2698 = vsel %vm2684, %v2665, %v2178
        %v2700 = vsel %vm2684, %v2667, %v2180
        %v2702 = vsel %vm2684, %v2669, %v2182
        %v2704 = vsel %vm2684, %v2671, %v2184
        %v2706 = vsel %vm2684, %v2673, %v2186
        %v2708 = vsel %vm2684, %v2675, %v2188
        %v2710 = vsel %vm2684, %v2677, %v2190
        %v2712 = vsel %vm2684, %v2679, %v2192
        %v2714 = vsel %vm2684, %v2681, %v2194
        %v2716 = vsel %vm2684, %v2683, %v2196
        %vm2717 = vcmask 424960
        %v2719 = vsel %vm2717, %v2686, %v2203
        %v2721 = vsel %vm2717, %v2688, %v2205
        %v2723 = vsel %vm2717, %v2690, %v2207
        %v2725 = vsel %vm2717, %v2692, %v2209
        %v2727 = vsel %vm2717, %v2694, %v2211
        %v2729 = vsel %vm2717, %v2696, %v2213
        %v2731 = vsel %vm2717, %v2698, %v2215
        %v2733 = vsel %vm2717, %v2700, %v2217
        %v2735 = vsel %vm2717, %v2702, %v2219
        %v2737 = vsel %vm2717, %v2704, %v2221
        %v2739 = vsel %vm2717, %v2706, %v2223
        %v2741 = vsel %vm2717, %v2708, %v2225
        %v2743 = vsel %vm2717, %v2710, %v2227
        %v2745 = vsel %vm2717, %v2712, %v2229
        %v2747 = vsel %vm2717, %v2714, %v2231
        %v2749 = vsel %vm2717, %v2716, %v2233
        %vm2750 = vcmask 457728
        %v2752 = vsel %vm2750, %v2719, %v2240
        %v2754 = vsel %vm2750, %v2721, %v2242
        %v2756 = vsel %vm2750, %v2723, %v2244
        %v2758 = vsel %vm2750, %v2725, %v2246
        %v2760 = vsel %vm2750, %v2727, %v2248
        %v2762 = vsel %vm2750, %v2729, %v2250
        %v2764 = vsel %vm2750, %v2731, %v2252
        %v2766 = vsel %vm2750, %v2733, %v2254
        %v2768 = vsel %vm2750, %v2735, %v2256
        %v2770 = vsel %vm2750, %v2737, %v2258
        %v2772 = vsel %vm2750, %v2739, %v2260
        %v2774 = vsel %vm2750, %v2741, %v2262
        %v2776 = vsel %vm2750, %v2743, %v2264
        %v2778 = vsel %vm2750, %v2745, %v2266
        %v2780 = vsel %vm2750, %v2747, %v2268
        %v2782 = vsel %vm2750, %v2749, %v2270
        %vm2783 = vcmask 490496
        %v2785 = vsel %vm2783, %v2752, %v2274
        %v2787 = vsel %vm2783, %v2754, %v2276
        %v2789 = vsel %vm2783, %v2756, %v2278
        %v2791 = vsel %vm2783, %v2758, %v2280
        %v2793 = vsel %vm2783, %v2760, %v2282
        %v2795 = vsel %vm2783, %v2762, %v2284
        %v2797 = vsel %vm2783, %v2764, %v2286
        %v2799 = vsel %vm2783, %v2766, %v2288
        %v2801 = vsel %vm2783, %v2768, %v2290
        %v2803 = vsel %vm2783, %v2770, %v2292
        %v2805 = vsel %vm2783, %v2772, %v2294
        %v2807 = vsel %vm2783, %v2774, %v2296
        %v2809 = vsel %vm2783, %v2776, %v2298
        %v2811 = vsel %vm2783, %v2778, %v2300
        %v2813 = vsel %vm2783, %v2780, %v2302
        %v2815 = vsel %vm2783, %v2782, %v2304
        %v2816 = vunpack.c.l.b16 %v1337
        %v2817 = vpack.c.b16 %v2816, %v2197
        %v2818 = vunpack.c.l.b16 %v1343
        %v2819 = vpack.c.b16 %v2818, %v2234
        %2820 = vrot.lane.b32.xlu0 %v1709, 4
        %v2821 = vpop.permute.xlu0 %2820
        %2822 = vrot.lane.b32.xlu0 %v1710, 4
        %v2823 = vpop.permute.xlu0 %2822
        %2824 = vrot.lane.b32.xlu0 %v1711, 4
        %v2825 = vpop.permute.xlu0 %2824
        %2826 = vrot.lane.b32.xlu0 %v1993, 4
        %v2827 = vpop.permute.xlu0 %2826
        %2828 = vrot.lane.b32.xlu0 %v1713, 4
        %v2829 = vpop.permute.xlu0 %2828
        %2830 = vrot.lane.b32.xlu0 %v1714, 4
        %v2831 = vpop.permute.xlu0 %2830
        %2832 = vrot.lane.b32.xlu0 %v1715, 4
        %v2833 = vpop.permute.xlu0 %2832
        %2834 = vrot.lane.b32.xlu0 %v1994, 4
        %v2835 = vpop.permute.xlu0 %2834
        %2836 = vrot.lane.b32.xlu0 %v1717, 4
        %v2837 = vpop.permute.xlu0 %2836
        %2838 = vrot.lane.b32.xlu0 %v1718, 4
        %v2839 = vpop.permute.xlu0 %2838
        %2840 = vrot.lane.b32.xlu0 %v1719, 4
        %v2841 = vpop.permute.xlu0 %2840
        %2842 = vrot.lane.b32.xlu0 %v1995, 4
        %v2843 = vpop.permute.xlu0 %2842
        %2844 = vrot.lane.b32.xlu0 %v2125, 4
        %v2845 = vpop.permute.xlu0 %2844
        %2846 = vrot.lane.b32.xlu0 %v2126, 4
        %v2847 = vpop.permute.xlu0 %2846
        %2848 = vrot.lane.b32.xlu0 %v2127, 4
        %v2849 = vpop.permute.xlu0 %2848
        %2850 = vrot.lane.b32.xlu0 %v2819, 4
        %v2851 = vpop.permute.xlu0 %2850
        %v2852 = vunpack.c.l.b16 %v318
        %v2853 = vunpack.c.l.b16 %v320
        %v2854 = vunpack.c.l.b16 %v322
        %v2855 = vunpack.c.l.b16 %v324
        %v2856 = vunpack.c.l.b16 %v326
        %v2857 = vunpack.c.l.b16 %v328
        %v2858 = vunpack.c.l.b16 %v330
        %v2859 = vunpack.c.l.b16 %v332
        %v2860 = vpack.c.b16 %v2853, %v2852
        %v2861 = vpack.c.b16 %v2855, %v2854
        %v2862 = vpack.c.b16 %v2857, %v2856
        %v2863 = vpack.c.b16 %v2859, %v2858
        %2864 = vrot.lane.b32.xlu0 %v1584, 8
        %v2865 = vpop.permute.xlu0 %2864
        %2866 = vrot.lane.b32.xlu0 %v1585, 8
        %v2867 = vpop.permute.xlu0 %2866
        %2868 = vrot.lane.b32.xlu0 %v1586, 8
        %v2869 = vpop.permute.xlu0 %2868
        %2870 = vrot.lane.b32.xlu0 %v1587, 8
        %v2871 = vpop.permute.xlu0 %2870
        %2872 = vrot.lane.b32.xlu0 %v1588, 8
        %v2873 = vpop.permute.xlu0 %2872
        %2874 = vrot.lane.b32.xlu0 %v1589, 8
        %v2875 = vpop.permute.xlu0 %2874
        %2876 = vrot.lane.b32.xlu0 %v1590, 8
        %v2877 = vpop.permute.xlu0 %2876
        %2878 = vrot.lane.b32.xlu0 %v1591, 8
        %v2879 = vpop.permute.xlu0 %2878
        %2880 = vrot.lane.b32.xlu0 %v2036, 8
        %v2881 = vpop.permute.xlu0 %2880
        %2882 = vrot.lane.b32.xlu0 %v2037, 8
        %v2883 = vpop.permute.xlu0 %2882
        %2884 = vrot.lane.b32.xlu0 %v2038, 8
        %v2885 = vpop.permute.xlu0 %2884
        %2886 = vrot.lane.b32.xlu0 %v2039, 8
        %v2887 = vpop.permute.xlu0 %2886
        %2888 = vrot.lane.b32.xlu0 %v2860, 8
        %v2889 = vpop.permute.xlu0 %2888
        %2890 = vrot.lane.b32.xlu0 %v2861, 8
        %v2891 = vpop.permute.xlu0 %2890
        %2892 = vrot.lane.b32.xlu0 %v2862, 8
        %v2893 = vpop.permute.xlu0 %2892
        %2894 = vrot.lane.b32.xlu0 %v2863, 8
        %v2895 = vpop.permute.xlu0 %2894
        %v2896 = vunpack.c.l.b16 %v1357
        %v2897 = vunpack.c.l.b16 %v1371
        %v2898 = vunpack.c.l.b16 %v1385
        %v2899 = vunpack.c.l.b16 %v1399
        %v2900 = vunpack.c.l.b16 %v1413
        %v2901 = vunpack.c.l.b16 %v1427
        %v2902 = vunpack.c.l.b16 %v1441
        %v2903 = vunpack.c.l.b16 %v1455
        %v2904 = vpack.c.b16 %v2897, %v2896
        %v2905 = vpack.c.b16 %v2899, %v2898
        %v2906 = vpack.c.b16 %v2901, %v2900
        %v2907 = vpack.c.b16 %v2903, %v2902
        %2908 = vrot.lane.b32.xlu0 %v1632, 12
        %v2909 = vpop.permute.xlu0 %2908
        %2910 = vrot.lane.b32.xlu0 %v1633, 12
        %v2911 = vpop.permute.xlu0 %2910
        %2912 = vrot.lane.b32.xlu0 %v1634, 12
        %v2913 = vpop.permute.xlu0 %2912
        %2914 = vrot.lane.b32.xlu0 %v1635, 12
        %v2915 = vpop.permute.xlu0 %2914
        %2916 = vrot.lane.b32.xlu0 %v1636, 12
        %v2917 = vpop.permute.xlu0 %2916
        %2918 = vrot.lane.b32.xlu0 %v1637, 12
        %v2919 = vpop.permute.xlu0 %2918
        %2920 = vrot.lane.b32.xlu0 %v1638, 12
        %v2921 = vpop.permute.xlu0 %2920
        %2922 = vrot.lane.b32.xlu0 %v1639, 12
        %v2923 = vpop.permute.xlu0 %2922
        %2924 = vrot.lane.b32.xlu0 %v2080, 12
        %v2925 = vpop.permute.xlu0 %2924
        %2926 = vrot.lane.b32.xlu0 %v2081, 12
        %v2927 = vpop.permute.xlu0 %2926
        %2928 = vrot.lane.b32.xlu0 %v2082, 12
        %v2929 = vpop.permute.xlu0 %2928
        %2930 = vrot.lane.b32.xlu0 %v2083, 12
        %v2931 = vpop.permute.xlu0 %2930
        %2932 = vrot.lane.b32.xlu0 %v2904, 12
        %v2933 = vpop.permute.xlu0 %2932
        %2934 = vrot.lane.b32.xlu0 %v2905, 12
        %v2935 = vpop.permute.xlu0 %2934
        %2936 = vrot.lane.b32.xlu0 %v2906, 12
        %v2937 = vpop.permute.xlu0 %2936
        %2938 = vrot.lane.b32.xlu0 %v2907, 12
        %v2939 = vpop.permute.xlu0 %2938
        %v2940 = vunpack.c.l.b16 %v1475
        %v2941 = vunpack.c.l.b16 %v1479
        %v2942 = vunpack.c.l.b16 %v1483
        %v2943 = vunpack.c.l.b16 %v1487
        %v2944 = vunpack.c.l.b16 %v1491
        %v2945 = vunpack.c.l.b16 %v1495
        %v2946 = vunpack.c.l.b16 %v1499
        %v2947 = vunpack.c.l.b16 %v1503
        %v2948 = vpack.c.b16 %v2941, %v2940
        %v2949 = vpack.c.b16 %v2943, %v2942
        %v2950 = vpack.c.b16 %v2945, %v2944
        %v2951 = vpack.c.b16 %v2947, %v2946
        %2952 = vrot.lane.b32.xlu0 %v1712, 16
        %v2953 = vpop.permute.xlu0 %2952
        %2954 = vrot.lane.b32.xlu0 %v1713, 16
        %v2955 = vpop.permute.xlu0 %2954
        %2956 = vrot.lane.b32.xlu0 %v1714, 16
        %v2957 = vpop.permute.xlu0 %2956
        %2958 = vrot.lane.b32.xlu0 %v1715, 16
        %v2959 = vpop.permute.xlu0 %2958
        %2960 = vrot.lane.b32.xlu0 %v1716, 16
        %v2961 = vpop.permute.xlu0 %2960
        %2962 = vrot.lane.b32.xlu0 %v1717, 16
        %v2963 = vpop.permute.xlu0 %2962
        %2964 = vrot.lane.b32.xlu0 %v1718, 16
        %v2965 = vpop.permute.xlu0 %2964
        %2966 = vrot.lane.b32.xlu0 %v1719, 16
        %v2967 = vpop.permute.xlu0 %2966
        %2968 = vrot.lane.b32.xlu0 %v2124, 16
        %v2969 = vpop.permute.xlu0 %2968
        %2970 = vrot.lane.b32.xlu0 %v2125, 16
        %v2971 = vpop.permute.xlu0 %2970
        %2972 = vrot.lane.b32.xlu0 %v2126, 16
        %v2973 = vpop.permute.xlu0 %2972
        %2974 = vrot.lane.b32.xlu0 %v2127, 16
        %v2975 = vpop.permute.xlu0 %2974
        %2976 = vrot.lane.b32.xlu0 %v2948, 16
        %v2977 = vpop.permute.xlu0 %2976
        %2978 = vrot.lane.b32.xlu0 %v2949, 16
        %v2979 = vpop.permute.xlu0 %2978
        %2980 = vrot.lane.b32.xlu0 %v2950, 16
        %v2981 = vpop.permute.xlu0 %2980
        %2982 = vrot.lane.b32.xlu0 %v2951, 16
        %v2983 = vpop.permute.xlu0 %2982
        %v2984 = vunpack.c.l.b16 %v334
        %v2985 = vpack.c.b16 %v2854, %v2853
        %v2986 = vpack.c.b16 %v2856, %v2855
        %v2987 = vpack.c.b16 %v2858, %v2857
        %v2988 = vpack.c.b16 %v2984, %v2859
        %2989 = vrot.lane.b32.xlu0 %v1764, 20
        %v2990 = vpop.permute.xlu0 %2989
        %2991 = vrot.lane.b32.xlu0 %v1765, 20
        %v2992 = vpop.permute.xlu0 %2991
        %2993 = vrot.lane.b32.xlu0 %v1766, 20
        %v2994 = vpop.permute.xlu0 %2993
        %2995 = vrot.lane.b32.xlu0 %v1767, 20
        %v2996 = vpop.permute.xlu0 %2995
        %2997 = vrot.lane.b32.xlu0 %v1768, 20
        %v2998 = vpop.permute.xlu0 %2997
        %2999 = vrot.lane.b32.xlu0 %v1769, 20
        %v3000 = vpop.permute.xlu0 %2999
        %3001 = vrot.lane.b32.xlu0 %v1770, 20
        %v3002 = vpop.permute.xlu0 %3001
        %3003 = vrot.lane.b32.xlu0 %v1771, 20
        %v3004 = vpop.permute.xlu0 %3003
        %3005 = vrot.lane.b32.xlu0 %v2161, 20
        %v3006 = vpop.permute.xlu0 %3005
        %3007 = vrot.lane.b32.xlu0 %v2162, 20
        %v3008 = vpop.permute.xlu0 %3007
        %3009 = vrot.lane.b32.xlu0 %v2163, 20
        %v3010 = vpop.permute.xlu0 %3009
        %3011 = vrot.lane.b32.xlu0 %v2164, 20
        %v3012 = vpop.permute.xlu0 %3011
        %3013 = vrot.lane.b32.xlu0 %v2985, 20
        %v3014 = vpop.permute.xlu0 %3013
        %3015 = vrot.lane.b32.xlu0 %v2986, 20
        %v3016 = vpop.permute.xlu0 %3015
        %3017 = vrot.lane.b32.xlu0 %v2987, 20
        %v3018 = vpop.permute.xlu0 %3017
        %3019 = vrot.lane.b32.xlu0 %v2988, 20
        %v3020 = vpop.permute.xlu0 %3019
        %v3021 = vunpack.c.l.b16 %v1517
        %v3022 = vpack.c.b16 %v2898, %v2897
        %v3023 = vpack.c.b16 %v2900, %v2899
        %v3024 = vpack.c.b16 %v2902, %v2901
        %v3025 = vpack.c.b16 %v3021, %v2903
        %3026 = vrot.lane.b32.xlu0 %v1816, 24
        %v3027 = vpop.permute.xlu0 %3026
        %3028 = vrot.lane.b32.xlu0 %v1817, 24
        %v3029 = vpop.permute.xlu0 %3028
        %3030 = vrot.lane.b32.xlu0 %v1818, 24
        %v3031 = vpop.permute.xlu0 %3030
        %3032 = vrot.lane.b32.xlu0 %v1819, 24
        %v3033 = vpop.permute.xlu0 %3032
        %3034 = vrot.lane.b32.xlu0 %v1820, 24
        %v3035 = vpop.permute.xlu0 %3034
        %3036 = vrot.lane.b32.xlu0 %v1821, 24
        %v3037 = vpop.permute.xlu0 %3036
        %3038 = vrot.lane.b32.xlu0 %v1822, 24
        %v3039 = vpop.permute.xlu0 %3038
        %3040 = vrot.lane.b32.xlu0 %v1823, 24
        %v3041 = vpop.permute.xlu0 %3040
        %3042 = vrot.lane.b32.xlu0 %v2198, 24
        %v3043 = vpop.permute.xlu0 %3042
        %3044 = vrot.lane.b32.xlu0 %v2199, 24
        %v3045 = vpop.permute.xlu0 %3044
        %3046 = vrot.lane.b32.xlu0 %v2200, 24
        %v3047 = vpop.permute.xlu0 %3046
        %3048 = vrot.lane.b32.xlu0 %v2201, 24
        %v3049 = vpop.permute.xlu0 %3048
        %3050 = vrot.lane.b32.xlu0 %v3022, 24
        %v3051 = vpop.permute.xlu0 %3050
        %3052 = vrot.lane.b32.xlu0 %v3023, 24
        %v3053 = vpop.permute.xlu0 %3052
        %3054 = vrot.lane.b32.xlu0 %v3024, 24
        %v3055 = vpop.permute.xlu0 %3054
        %3056 = vrot.lane.b32.xlu0 %v3025, 24
        %v3057 = vpop.permute.xlu0 %3056
        %v3058 = vunpack.c.l.b16 %v1523
        %v3059 = vpack.c.b16 %v2942, %v2941
        %v3060 = vpack.c.b16 %v2944, %v2943
        %v3061 = vpack.c.b16 %v2946, %v2945
        %v3062 = vpack.c.b16 %v3058, %v2947
        %3063 = vrot.lane.b32.xlu0 %v1868, 28
        %v3064 = vpop.permute.xlu0 %3063
        %3065 = vrot.lane.b32.xlu0 %v1869, 28
        %v3066 = vpop.permute.xlu0 %3065
        %3067 = vrot.lane.b32.xlu0 %v1870, 28
        %v3068 = vpop.permute.xlu0 %3067
        %3069 = vrot.lane.b32.xlu0 %v1871, 28
        %v3070 = vpop.permute.xlu0 %3069
        %3071 = vrot.lane.b32.xlu0 %v1872, 28
        %v3072 = vpop.permute.xlu0 %3071
        %3073 = vrot.lane.b32.xlu0 %v1873, 28
        %v3074 = vpop.permute.xlu0 %3073
        %3075 = vrot.lane.b32.xlu0 %v1874, 28
        %v3076 = vpop.permute.xlu0 %3075
        %3077 = vrot.lane.b32.xlu0 %v1875, 28
        %v3078 = vpop.permute.xlu0 %3077
        %3079 = vrot.lane.b32.xlu0 %v2235, 28
        %v3080 = vpop.permute.xlu0 %3079
        %3081 = vrot.lane.b32.xlu0 %v2236, 28
        %v3082 = vpop.permute.xlu0 %3081
        %3083 = vrot.lane.b32.xlu0 %v2237, 28
        %v3084 = vpop.permute.xlu0 %3083
        %3085 = vrot.lane.b32.xlu0 %v2238, 28
        %v3086 = vpop.permute.xlu0 %3085
        %3087 = vrot.lane.b32.xlu0 %v3059, 28
        %v3088 = vpop.permute.xlu0 %3087
        %3089 = vrot.lane.b32.xlu0 %v3060, 28
        %v3090 = vpop.permute.xlu0 %3089
        %3091 = vrot.lane.b32.xlu0 %v3061, 28
        %v3092 = vpop.permute.xlu0 %3091
        %3093 = vrot.lane.b32.xlu0 %v3062, 28
        %v3094 = vpop.permute.xlu0 %3093
        %v3095 = vunpack.c.l.b16 %v336
        %v3096 = vpack.c.b16 %v3095, %v2984
        %3097 = vrot.lane.b32.xlu0 %v1585, 32
        %v3098 = vpop.permute.xlu0 %3097
        %3099 = vrot.lane.b32.xlu0 %v1586, 32
        %v3100 = vpop.permute.xlu0 %3099
        %3101 = vrot.lane.b32.xlu0 %v1587, 32
        %v3102 = vpop.permute.xlu0 %3101
        %3103 = vrot.lane.b32.xlu0 %v1914, 32
        %v3104 = vpop.permute.xlu0 %3103
        %3105 = vrot.lane.b32.xlu0 %v1589, 32
        %v3106 = vpop.permute.xlu0 %3105
        %3107 = vrot.lane.b32.xlu0 %v1590, 32
        %v3108 = vpop.permute.xlu0 %3107
        %3109 = vrot.lane.b32.xlu0 %v1591, 32
        %v3110 = vpop.permute.xlu0 %3109
        %3111 = vrot.lane.b32.xlu0 %v1915, 32
        %v3112 = vpop.permute.xlu0 %3111
        %3113 = vrot.lane.b32.xlu0 %v2037, 32
        %v3114 = vpop.permute.xlu0 %3113
        %3115 = vrot.lane.b32.xlu0 %v2038, 32
        %v3116 = vpop.permute.xlu0 %3115
        %3117 = vrot.lane.b32.xlu0 %v2039, 32
        %v3118 = vpop.permute.xlu0 %3117
        %3119 = vrot.lane.b32.xlu0 %v2272, 32
        %v3120 = vpop.permute.xlu0 %3119
        %3121 = vrot.lane.b32.xlu0 %v2861, 32
        %v3122 = vpop.permute.xlu0 %3121
        %3123 = vrot.lane.b32.xlu0 %v2862, 32
        %v3124 = vpop.permute.xlu0 %3123
        %3125 = vrot.lane.b32.xlu0 %v2863, 32
        %v3126 = vpop.permute.xlu0 %3125
        %3127 = vrot.lane.b32.xlu0 %v3096, 32
        %v3128 = vpop.permute.xlu0 %3127
        %v3129 = vunpack.c.l.b16 %v1537
        %v3130 = vpack.c.b16 %v3129, %v3021
        %3131 = vrot.lane.b32.xlu0 %v1633, 36
        %v3132 = vpop.permute.xlu0 %3131
        %3133 = vrot.lane.b32.xlu0 %v1634, 36
        %v3134 = vpop.permute.xlu0 %3133
        %3135 = vrot.lane.b32.xlu0 %v1635, 36
        %v3136 = vpop.permute.xlu0 %3135
        %3137 = vrot.lane.b32.xlu0 %v1954, 36
        %v3138 = vpop.permute.xlu0 %3137
        %3139 = vrot.lane.b32.xlu0 %v1637, 36
        %v3140 = vpop.permute.xlu0 %3139
        %3141 = vrot.lane.b32.xlu0 %v1638, 36
        %v3142 = vpop.permute.xlu0 %3141
        %3143 = vrot.lane.b32.xlu0 %v1639, 36
        %v3144 = vpop.permute.xlu0 %3143
        %3145 = vrot.lane.b32.xlu0 %v1955, 36
        %v3146 = vpop.permute.xlu0 %3145
        %3147 = vrot.lane.b32.xlu0 %v2081, 36
        %v3148 = vpop.permute.xlu0 %3147
        %3149 = vrot.lane.b32.xlu0 %v2082, 36
        %v3150 = vpop.permute.xlu0 %3149
        %3151 = vrot.lane.b32.xlu0 %v2083, 36
        %v3152 = vpop.permute.xlu0 %3151
        %3153 = vrot.lane.b32.xlu0 %v2817, 36
        %v3154 = vpop.permute.xlu0 %3153
        %3155 = vrot.lane.b32.xlu0 %v2905, 36
        %v3156 = vpop.permute.xlu0 %3155
        %3157 = vrot.lane.b32.xlu0 %v2906, 36
        %v3158 = vpop.permute.xlu0 %3157
        %3159 = vrot.lane.b32.xlu0 %v2907, 36
        %v3160 = vpop.permute.xlu0 %3159
        %3161 = vrot.lane.b32.xlu0 %v3130, 36
        %v3162 = vpop.permute.xlu0 %3161
        %v3163 = vunpack.c.l.b16 %v1543
        %v3164 = vpack.c.b16 %v3163, %v3058
        %3165 = vrot.lane.b32.xlu0 %v1713, 40
        %v3166 = vpop.permute.xlu0 %3165
        %3167 = vrot.lane.b32.xlu0 %v1714, 40
        %v3168 = vpop.permute.xlu0 %3167
        %3169 = vrot.lane.b32.xlu0 %v1715, 40
        %v3170 = vpop.permute.xlu0 %3169
        %3171 = vrot.lane.b32.xlu0 %v1994, 40
        %v3172 = vpop.permute.xlu0 %3171
        %3173 = vrot.lane.b32.xlu0 %v1717, 40
        %v3174 = vpop.permute.xlu0 %3173
        %3175 = vrot.lane.b32.xlu0 %v1718, 40
        %v3176 = vpop.permute.xlu0 %3175
        %3177 = vrot.lane.b32.xlu0 %v1719, 40
        %v3178 = vpop.permute.xlu0 %3177
        %3179 = vrot.lane.b32.xlu0 %v1995, 40
        %v3180 = vpop.permute.xlu0 %3179
        %3181 = vrot.lane.b32.xlu0 %v2125, 40
        %v3182 = vpop.permute.xlu0 %3181
        %3183 = vrot.lane.b32.xlu0 %v2126, 40
        %v3184 = vpop.permute.xlu0 %3183
        %3185 = vrot.lane.b32.xlu0 %v2127, 40
        %v3186 = vpop.permute.xlu0 %3185
        %3187 = vrot.lane.b32.xlu0 %v2819, 40
        %v3188 = vpop.permute.xlu0 %3187
        %3189 = vrot.lane.b32.xlu0 %v2949, 40
        %v3190 = vpop.permute.xlu0 %3189
        %3191 = vrot.lane.b32.xlu0 %v2950, 40
        %v3192 = vpop.permute.xlu0 %3191
        %3193 = vrot.lane.b32.xlu0 %v2951, 40
        %v3194 = vpop.permute.xlu0 %3193
        %3195 = vrot.lane.b32.xlu0 %v3164, 40
        %v3196 = vpop.permute.xlu0 %3195
        %v3199 = vsel %vm2305, %v1629, %v2821
        %v3202 = vsel %vm2305, %v1630, %v2823
        %v3205 = vsel %vm2305, %v1631, %v2825
        %v3208 = vsel %vm2305, %v1953, %v2827
        %v3211 = vsel %vm2305, %v1633, %v2829
        %v3214 = vsel %vm2305, %v1634, %v2831
        %v3217 = vsel %vm2305, %v1635, %v2833
        %v3220 = vsel %vm2305, %v1954, %v2835
        %v3223 = vsel %vm2305, %v1637, %v2837
        %v3226 = vsel %vm2305, %v1638, %v2839
        %v3229 = vsel %vm2305, %v1639, %v2841
        %v3232 = vsel %vm2305, %v1955, %v2843
        %v3235 = vsel %vm2305, %v2081, %v2845
        %v3238 = vsel %vm2305, %v2082, %v2847
        %v3241 = vsel %vm2305, %v2083, %v2849
        %v3244 = vsel %vm2305, %v2817, %v2851
        %v3246 = vsel %vm2354, %v3199, %v2865
        %v3248 = vsel %vm2354, %v3202, %v2867
        %v3250 = vsel %vm2354, %v3205, %v2869
        %v3252 = vsel %vm2354, %v3208, %v2871
        %v3254 = vsel %vm2354, %v3211, %v2873
        %v3256 = vsel %vm2354, %v3214, %v2875
        %v3258 = vsel %vm2354, %v3217, %v2877
        %v3260 = vsel %vm2354, %v3220, %v2879
        %v3262 = vsel %vm2354, %v3223, %v2881
        %v3264 = vsel %vm2354, %v3226, %v2883
        %v3266 = vsel %vm2354, %v3229, %v2885
        %v3268 = vsel %vm2354, %v3232, %v2887
        %v3270 = vsel %vm2354, %v3235, %v2889
        %v3272 = vsel %vm2354, %v3238, %v2891
        %v3274 = vsel %vm2354, %v3241, %v2893
        %v3276 = vsel %vm2354, %v3244, %v2895
        %v3278 = vsel %vm2387, %v3246, %v2909
        %v3280 = vsel %vm2387, %v3248, %v2911
        %v3282 = vsel %vm2387, %v3250, %v2913
        %v3284 = vsel %vm2387, %v3252, %v2915
        %v3286 = vsel %vm2387, %v3254, %v2917
        %v3288 = vsel %vm2387, %v3256, %v2919
        %v3290 = vsel %vm2387, %v3258, %v2921
        %v3292 = vsel %vm2387, %v3260, %v2923
        %v3294 = vsel %vm2387, %v3262, %v2925
        %v3296 = vsel %vm2387, %v3264, %v2927
        %v3298 = vsel %vm2387, %v3266, %v2929
        %v3300 = vsel %vm2387, %v3268, %v2931
        %v3302 = vsel %vm2387, %v3270, %v2933
        %v3304 = vsel %vm2387, %v3272, %v2935
        %v3306 = vsel %vm2387, %v3274, %v2937
        %v3308 = vsel %vm2387, %v3276, %v2939
        %v3310 = vsel %vm2420, %v3278, %v2953
        %v3312 = vsel %vm2420, %v3280, %v2955
        %v3314 = vsel %vm2420, %v3282, %v2957
        %v3316 = vsel %vm2420, %v3284, %v2959
        %v3318 = vsel %vm2420, %v3286, %v2961
        %v3320 = vsel %vm2420, %v3288, %v2963
        %v3322 = vsel %vm2420, %v3290, %v2965
        %v3324 = vsel %vm2420, %v3292, %v2967
        %v3326 = vsel %vm2420, %v3294, %v2969
        %v3328 = vsel %vm2420, %v3296, %v2971
        %v3330 = vsel %vm2420, %v3298, %v2973
        %v3332 = vsel %vm2420, %v3300, %v2975
        %v3334 = vsel %vm2420, %v3302, %v2977
        %v3336 = vsel %vm2420, %v3304, %v2979
        %v3338 = vsel %vm2420, %v3306, %v2981
        %v3340 = vsel %vm2420, %v3308, %v2983
        %v3342 = vsel %vm2453, %v3310, %v2990
        %v3344 = vsel %vm2453, %v3312, %v2992
        %v3346 = vsel %vm2453, %v3314, %v2994
        %v3348 = vsel %vm2453, %v3316, %v2996
        %v3350 = vsel %vm2453, %v3318, %v2998
        %v3352 = vsel %vm2453, %v3320, %v3000
        %v3354 = vsel %vm2453, %v3322, %v3002
        %v3356 = vsel %vm2453, %v3324, %v3004
        %v3358 = vsel %vm2453, %v3326, %v3006
        %v3360 = vsel %vm2453, %v3328, %v3008
        %v3362 = vsel %vm2453, %v3330, %v3010
        %v3364 = vsel %vm2453, %v3332, %v3012
        %v3366 = vsel %vm2453, %v3334, %v3014
        %v3368 = vsel %vm2453, %v3336, %v3016
        %v3370 = vsel %vm2453, %v3338, %v3018
        %v3372 = vsel %vm2453, %v3340, %v3020
        %v3374 = vsel %vm2486, %v3342, %v3027
        %v3376 = vsel %vm2486, %v3344, %v3029
        %v3378 = vsel %vm2486, %v3346, %v3031
        %v3380 = vsel %vm2486, %v3348, %v3033
        %v3382 = vsel %vm2486, %v3350, %v3035
        %v3384 = vsel %vm2486, %v3352, %v3037
        %v3386 = vsel %vm2486, %v3354, %v3039
        %v3388 = vsel %vm2486, %v3356, %v3041
        %v3390 = vsel %vm2486, %v3358, %v3043
        %v3392 = vsel %vm2486, %v3360, %v3045
        %v3394 = vsel %vm2486, %v3362, %v3047
        %v3396 = vsel %vm2486, %v3364, %v3049
        %v3398 = vsel %vm2486, %v3366, %v3051
        %v3400 = vsel %vm2486, %v3368, %v3053
        %v3402 = vsel %vm2486, %v3370, %v3055
        %v3404 = vsel %vm2486, %v3372, %v3057
        %v3406 = vsel %vm2519, %v3374, %v3064
        %v3408 = vsel %vm2519, %v3376, %v3066
        %v3410 = vsel %vm2519, %v3378, %v3068
        %v3412 = vsel %vm2519, %v3380, %v3070
        %v3414 = vsel %vm2519, %v3382, %v3072
        %v3416 = vsel %vm2519, %v3384, %v3074
        %v3418 = vsel %vm2519, %v3386, %v3076
        %v3420 = vsel %vm2519, %v3388, %v3078
        %v3422 = vsel %vm2519, %v3390, %v3080
        %v3424 = vsel %vm2519, %v3392, %v3082
        %v3426 = vsel %vm2519, %v3394, %v3084
        %v3428 = vsel %vm2519, %v3396, %v3086
        %v3430 = vsel %vm2519, %v3398, %v3088
        %v3432 = vsel %vm2519, %v3400, %v3090
        %v3434 = vsel %vm2519, %v3402, %v3092
        %v3436 = vsel %vm2519, %v3404, %v3094
        %v3438 = vsel %vm2552, %v3406, %v3098
        %v3440 = vsel %vm2552, %v3408, %v3100
        %v3442 = vsel %vm2552, %v3410, %v3102
        %v3444 = vsel %vm2552, %v3412, %v3104
        %v3446 = vsel %vm2552, %v3414, %v3106
        %v3448 = vsel %vm2552, %v3416, %v3108
        %v3450 = vsel %vm2552, %v3418, %v3110
        %v3452 = vsel %vm2552, %v3420, %v3112
        %v3454 = vsel %vm2552, %v3422, %v3114
        %v3456 = vsel %vm2552, %v3424, %v3116
        %v3458 = vsel %vm2552, %v3426, %v3118
        %v3460 = vsel %vm2552, %v3428, %v3120
        %v3462 = vsel %vm2552, %v3430, %v3122
        %v3464 = vsel %vm2552, %v3432, %v3124
        %v3466 = vsel %vm2552, %v3434, %v3126
        %v3468 = vsel %vm2552, %v3436, %v3128
        %v3470 = vsel %vm2585, %v3438, %v3132
        %v3472 = vsel %vm2585, %v3440, %v3134
        %v3474 = vsel %vm2585, %v3442, %v3136
        %v3476 = vsel %vm2585, %v3444, %v3138
        %v3478 = vsel %vm2585, %v3446, %v3140
        %v3480 = vsel %vm2585, %v3448, %v3142
        %v3482 = vsel %vm2585, %v3450, %v3144
        %v3484 = vsel %vm2585, %v3452, %v3146
        %v3486 = vsel %vm2585, %v3454, %v3148
        %v3488 = vsel %vm2585, %v3456, %v3150
        %v3490 = vsel %vm2585, %v3458, %v3152
        %v3492 = vsel %vm2585, %v3460, %v3154
        %v3494 = vsel %vm2585, %v3462, %v3156
        %v3496 = vsel %vm2585, %v3464, %v3158
        %v3498 = vsel %vm2585, %v3466, %v3160
        %v3500 = vsel %vm2585, %v3468, %v3162
        %v3502 = vsel %vm2618, %v3470, %v3166
        %v3504 = vsel %vm2618, %v3472, %v3168
        %v3506 = vsel %vm2618, %v3474, %v3170
        %v3508 = vsel %vm2618, %v3476, %v3172
        %v3510 = vsel %vm2618, %v3478, %v3174
        %v3512 = vsel %vm2618, %v3480, %v3176
        %v3514 = vsel %vm2618, %v3482, %v3178
        %v3516 = vsel %vm2618, %v3484, %v3180
        %v3518 = vsel %vm2618, %v3486, %v3182
        %v3520 = vsel %vm2618, %v3488, %v3184
        %v3522 = vsel %vm2618, %v3490, %v3186
        %v3524 = vsel %vm2618, %v3492, %v3188
        %v3526 = vsel %vm2618, %v3494, %v3190
        %v3528 = vsel %vm2618, %v3496, %v3192
        %v3530 = vsel %vm2618, %v3498, %v3194
        %v3532 = vsel %vm2618, %v3500, %v3196
        %3549 = vrot.lane.b32.xlu0 %v3502, 64
        %v3550 = vpop.permute.xlu0 %3549
        %3551 = vrot.lane.b32.xlu0 %v3504, 64
        %v3552 = vpop.permute.xlu0 %3551
        %3553 = vrot.lane.b32.xlu0 %v3506, 64
        %v3554 = vpop.permute.xlu0 %3553
        %3555 = vrot.lane.b32.xlu0 %v3508, 64
        %v3556 = vpop.permute.xlu0 %3555
        %3557 = vrot.lane.b32.xlu0 %v3510, 64
        %v3558 = vpop.permute.xlu0 %3557
        %3559 = vrot.lane.b32.xlu0 %v3512, 64
        %v3560 = vpop.permute.xlu0 %3559
        %3561 = vrot.lane.b32.xlu0 %v3514, 64
        %v3562 = vpop.permute.xlu0 %3561
        %3563 = vrot.lane.b32.xlu0 %v3516, 64
        %v3564 = vpop.permute.xlu0 %3563
        %3565 = vrot.lane.b32.xlu0 %v3518, 64
        %v3566 = vpop.permute.xlu0 %3565
        %3567 = vrot.lane.b32.xlu0 %v3520, 64
        %v3568 = vpop.permute.xlu0 %3567
        %3569 = vrot.lane.b32.xlu0 %v3522, 64
        %v3570 = vpop.permute.xlu0 %3569
        %3571 = vrot.lane.b32.xlu0 %v3524, 64
        %v3572 = vpop.permute.xlu0 %3571
        %3573 = vrot.lane.b32.xlu0 %v3526, 64
        %v3574 = vpop.permute.xlu0 %3573
        %3575 = vrot.lane.b32.xlu0 %v3528, 64
        %v3576 = vpop.permute.xlu0 %3575
        %3577 = vrot.lane.b32.xlu0 %v3530, 64
        %v3578 = vpop.permute.xlu0 %3577
        %3579 = vrot.lane.b32.xlu0 %v3532, 64
        %v3580 = vpop.permute.xlu0 %3579
        %vm3581 = vcmask 523264
        %v3583 = vsel %vm3581, %v2785, %v3550
        %v3585 = vsel %vm3581, %v2787, %v3552
        %v3587 = vsel %vm3581, %v2789, %v3554
        %v3589 = vsel %vm3581, %v2791, %v3556
        %v3591 = vsel %vm3581, %v2793, %v3558
        %v3593 = vsel %vm3581, %v2795, %v3560
        %v3595 = vsel %vm3581, %v2797, %v3562
        %v3597 = vsel %vm3581, %v2799, %v3564
        %v3599 = vsel %vm3581, %v2801, %v3566
        %v3601 = vsel %vm3581, %v2803, %v3568
        %v3603 = vsel %vm3581, %v2805, %v3570
        %v3605 = vsel %vm3581, %v2807, %v3572
        %v3607 = vsel %vm3581, %v2809, %v3574
        %v3609 = vsel %vm3581, %v2811, %v3576
        %v3611 = vsel %vm3581, %v2813, %v3578
        %v3613 = vsel %vm3581, %v2815, %v3580
        %v3614 = vld [vmem:[%s1] sm:$0xf]
        %v3615 = vld [vmem:[%s1 + $0x4] sm:$0xf]
        %v3616 = vld [vmem:[%s1 + $0x8] sm:$0xf]
        %v3617 = vld [vmem:[%s1 + $0xc] sm:$0xf]
        %v3618 = vld [vmem:[%s1 + $0x10] sm:$0xf]
        %v3619 = vld [vmem:[%s1 + $0x14] sm:$0xf]
        %v3620 = vld [vmem:[%s1 + $0x18] sm:$0xf]
        %v3621 = vld [vmem:[%s1 + $0x1c] sm:$0xf]
        %v3622 = vld [vmem:[%s1 + $0x20] sm:$0xf]
        %v3623 = vld [vmem:[%s1 + $0x24] sm:$0xf]
        %v3624 = vld [vmem:[%s1 + $0x28] sm:$0xf]
        %v3625 = vld [vmem:[%s1 + $0x2c] sm:$0xf]
        %v3626 = vld [vmem:[%s1 + $0x30] sm:$0xf]
        %v3627 = vld [vmem:[%s1 + $0x34] sm:$0x3]
        %v3642 = vunpack.c.l.b16 %v3614
        %v3643 = vunpack.c.l.b16 %v3615
        %v3644 = vunpack.c.l.b16 %v3616
        %v3645 = vunpack.c.l.b16 %v3617
        %v3646 = vunpack.c.l.b16 %v3618
        %v3647 = vunpack.c.l.b16 %v3619
        %v3648 = vunpack.c.l.b16 %v3620
        %v3649 = vunpack.c.l.b16 %v3621
        %v3650 = vunpack.c.l.b16 %v3622
        %v3651 = vunpack.c.l.b16 %v3623
        %v3652 = vunpack.c.l.b16 %v3624
        %v3653 = vunpack.c.l.b16 %v3625
        %v3654 = vunpack.c.l.b16 %v3626
        %v3655 = vunpack.c.l.b16 %v3627
        %v3656 = vpack.c.b16 %v3643, %v3642
        %v3657 = vpack.c.b16 %v3645, %v3644
        %v3658 = vpack.c.b16 %v3647, %v3646
        %v3659 = vpack.c.b16 %v3649, %v3648
        %v3660 = vpack.c.b16 %v3651, %v3650
        %v3661 = vpack.c.b16 %v3653, %v3652
        %v3662 = vpack.c.b16 %v3655, %v3654
        %vm3669 = vcmask 883712
        %v3670 = vsel %vm3669, %v3583, 0
        %v3672 = vsel %vm3669, %v3585, 0
        %v3674 = vsel %vm3669, %v3587, 0
        %v3676 = vsel %vm3669, %v3589, 0
        %v3678 = vsel %vm3669, %v3591, 0
        %v3680 = vsel %vm3669, %v3593, 0
        %v3682 = vsel %vm3669, %v3595, 0
        %v3684 = vsel %vm3669, %v3597, 0
        %v3686 = vsel %vm3669, %v3599, 0
        %v3688 = vsel %vm3669, %v3601, 0
        %v3690 = vsel %vm3669, %v3603, 0
        %v3692 = vsel %vm3669, %v3605, 0
        %v3694 = vsel %vm3669, %v3607, 0
        %v3696 = vsel %vm3669, %v3609, 0
        %v3698 = vsel %vm3669, %v3611, 0
        %v3700 = vsel %vm3669, %v3613, 0
        %vm3702 = vcmask 1045504
        %v3704 = vsel %vm3702, %v3662, 0
        %3706 = vmatprep.subr.bf16.mxu0 0
        %3707 = vmatpush1.bf16.msra.mxu0 0
        %3708 = vmatprep.subr.bf16.mxu0 0
        %3709 = vmatpush1.bf16.msra.mxu0 %v3704
        %3710 = vmatprep.subr.bf16.mxu0 0
        %3711 = vmatpush1.bf16.msra.mxu0 %v3661
        %3712 = vmatprep.subr.bf16.mxu0 0
        %3713 = vmatpush1.bf16.msra.mxu0 %v3660
        %3714 = vmatprep.subr.bf16.mxu0 0
        %3715 = vmatpush1.bf16.msra.mxu0 %v3659
        %3716 = vmatprep.subr.bf16.mxu0 0
        %3717 = vmatpush1.bf16.msra.mxu0 %v3658
        %3718 = vmatprep.subr.bf16.mxu0 0
        %3719 = vmatpush1.bf16.msra.mxu0 %v3657
        %3720 = vmatprep.subr.bf16.mxu0 0
        %3721 = vmatpush1.bf16.msra.mxu0 %v3656
        %3722 = vmatprep.subr.bf16.mxu0 0
        %3723 = vmatpush2.bf16.msra.mxu0 0
        %3724 = vmatprep.subr.bf16.mxu0 0
        %3725 = vmatpush2.bf16.msra.mxu0 0
        %3726 = vmatprep.subr.bf16.mxu0 0
        %3727 = vmatpush2.bf16.msra.mxu0 0
        %3728 = vmatprep.subr.bf16.mxu0 0
        %3729 = vmatpush2.bf16.msra.mxu0 0
        %3730 = vmatprep.subr.bf16.mxu0 0
        %3731 = vmatpush2.bf16.msra.mxu0 0
        %3732 = vmatprep.subr.bf16.mxu0 0
        %3733 = vmatpush2.bf16.msra.mxu0 0
        %3734 = vmatprep.subr.bf16.mxu0 0
        %3735 = vmatpush2.bf16.msra.mxu0 0
        %3736 = vmatprep.subr.bf16.mxu0 0
        %3737 = vmatpush2.bf16.msra.mxu0 0
        %3738 = vmatprep.mubr.bf16.mxu0 0
        %3739 = vmatmul.mubr.bf16.gmra.mxu0 %v3670
        %v3740 = vpop.f32.mrf.mxu0
        %v3741 = vadd.f32 0.0, %v3740
        %v3742 = vpop.f32.mrf.mxu0
        %v3743 = vpop.f32.mrf.mxu0
        %v3744 = vadd.f32 0.0, %v3743
        %v3745 = vpop.f32.mrf.mxu0
        %3746 = vmatprep.mubr.bf16.mxu0 0
        %3747 = vmatmul.mubr.bf16.gmra.mxu0 %v3672
        %v3748 = vpop.f32.mrf.mxu0
        %v3749 = vadd.f32 0.0, %v3748
        %v3750 = vpop.f32.mrf.mxu0
        %v3751 = vpop.f32.mrf.mxu0
        %v3752 = vadd.f32 0.0, %v3751
        %v3753 = vpop.f32.mrf.mxu0
        %3754 = vmatprep.mubr.bf16.mxu0 0
        %3755 = vmatmul.mubr.bf16.gmra.mxu0 %v3674
        %v3756 = vpop.f32.mrf.mxu0
        %v3757 = vadd.f32 0.0, %v3756
        %v3758 = vpop.f32.mrf.mxu0
        %v3759 = vpop.f32.mrf.mxu0
        %v3760 = vadd.f32 0.0, %v3759
        %v3761 = vpop.f32.mrf.mxu0
        %3762 = vmatprep.mubr.bf16.mxu0 0
        %3763 = vmatmul.mubr.bf16.gmra.mxu0 %v3676
        %v3764 = vpop.f32.mrf.mxu0
        %v3765 = vadd.f32 0.0, %v3764
        %v3766 = vpop.f32.mrf.mxu0
        %v3767 = vpop.f32.mrf.mxu0
        %v3768 = vadd.f32 0.0, %v3767
        %v3769 = vpop.f32.mrf.mxu0
        %3770 = vmatprep.mubr.bf16.mxu0 0
        %3771 = vmatmul.mubr.bf16.gmra.mxu0 %v3678
        %v3772 = vpop.f32.mrf.mxu0
        %v3773 = vadd.f32 0.0, %v3772
        %v3774 = vpop.f32.mrf.mxu0
        %v3775 = vpop.f32.mrf.mxu0
        %v3776 = vadd.f32 0.0, %v3775
        %v3777 = vpop.f32.mrf.mxu0
        %3778 = vmatprep.mubr.bf16.mxu0 0
        %3779 = vmatmul.mubr.bf16.gmra.mxu0 %v3680
        %v3780 = vpop.f32.mrf.mxu0
        %v3781 = vadd.f32 0.0, %v3780
        %v3782 = vpop.f32.mrf.mxu0
        %v3783 = vpop.f32.mrf.mxu0
        %v3784 = vadd.f32 0.0, %v3783
        %v3785 = vpop.f32.mrf.mxu0
        %3786 = vmatprep.mubr.bf16.mxu0 0
        %3787 = vmatmul.mubr.bf16.gmra.mxu0 %v3682
        %v3788 = vpop.f32.mrf.mxu0
        %v3789 = vadd.f32 0.0, %v3788
        %v3790 = vpop.f32.mrf.mxu0
        %v3791 = vpop.f32.mrf.mxu0
        %v3792 = vadd.f32 0.0, %v3791
        %v3793 = vpop.f32.mrf.mxu0
        %3794 = vmatprep.mubr.bf16.mxu0 0
        %3795 = vmatmul.mubr.bf16.gmra.mxu0 %v3684
        %v3796 = vpop.f32.mrf.mxu0
        %v3797 = vadd.f32 0.0, %v3796
        %v3798 = vpop.f32.mrf.mxu0
        %v3799 = vpop.f32.mrf.mxu0
        %v3800 = vadd.f32 0.0, %v3799
        %v3801 = vpop.f32.mrf.mxu0
        %3802 = vmatprep.mubr.bf16.mxu0 0
        %3803 = vmatmul.mubr.bf16.gmra.mxu0 %v3686
        %v3804 = vpop.f32.mrf.mxu0
        %v3805 = vadd.f32 0.0, %v3804
        %v3806 = vpop.f32.mrf.mxu0
        %v3807 = vpop.f32.mrf.mxu0
        %v3808 = vadd.f32 0.0, %v3807
        %v3809 = vpop.f32.mrf.mxu0
        %3810 = vmatprep.mubr.bf16.mxu0 0
        %3811 = vmatmul.mubr.bf16.gmra.mxu0 %v3688
        %v3812 = vpop.f32.mrf.mxu0
        %v3813 = vadd.f32 0.0, %v3812
        %v3814 = vpop.f32.mrf.mxu0
        %v3815 = vpop.f32.mrf.mxu0
        %v3816 = vadd.f32 0.0, %v3815
        %v3817 = vpop.f32.mrf.mxu0
        %3818 = vmatprep.mubr.bf16.mxu0 0
        %3819 = vmatmul.mubr.bf16.gmra.mxu0 %v3690
        %v3820 = vpop.f32.mrf.mxu0
        %v3821 = vadd.f32 0.0, %v3820
        %v3822 = vpop.f32.mrf.mxu0
        %v3823 = vpop.f32.mrf.mxu0
        %v3824 = vadd.f32 0.0, %v3823
        %v3825 = vpop.f32.mrf.mxu0
        %3826 = vmatprep.mubr.bf16.mxu0 0
        %3827 = vmatmul.mubr.bf16.gmra.mxu0 %v3692
        %v3828 = vpop.f32.mrf.mxu0
        %v3829 = vadd.f32 0.0, %v3828
        %v3830 = vpop.f32.mrf.mxu0
        %v3831 = vpop.f32.mrf.mxu0
        %v3832 = vadd.f32 0.0, %v3831
        %v3833 = vpop.f32.mrf.mxu0
        %3834 = vmatprep.mubr.bf16.mxu0 0
        %3835 = vmatmul.mubr.bf16.gmra.mxu0 %v3694
        %v3836 = vpop.f32.mrf.mxu0
        %v3837 = vadd.f32 0.0, %v3836
        %v3838 = vpop.f32.mrf.mxu0
        %v3839 = vpop.f32.mrf.mxu0
        %v3840 = vadd.f32 0.0, %v3839
        %v3841 = vpop.f32.mrf.mxu0
        %3842 = vmatprep.mubr.bf16.mxu0 0
        %3843 = vmatmul.mubr.bf16.gmra.mxu0 %v3696
        %v3844 = vpop.f32.mrf.mxu0
        %v3845 = vadd.f32 0.0, %v3844
        %v3846 = vpop.f32.mrf.mxu0
        %v3847 = vpop.f32.mrf.mxu0
        %v3848 = vadd.f32 0.0, %v3847
        %v3849 = vpop.f32.mrf.mxu0
        %3850 = vmatprep.mubr.bf16.mxu0 0
        %3851 = vmatmul.mubr.bf16.gmra.mxu0 %v3698
        %v3852 = vpop.f32.mrf.mxu0
        %v3853 = vadd.f32 0.0, %v3852
        %v3854 = vpop.f32.mrf.mxu0
        %v3855 = vpop.f32.mrf.mxu0
        %v3856 = vadd.f32 0.0, %v3855
        %v3857 = vpop.f32.mrf.mxu0
        %3858 = vmatprep.mubr.bf16.mxu0 0
        %3859 = vmatmul.mubr.bf16.gmra.mxu0 %v3700
        %v3860 = vpop.f32.mrf.mxu0
        %v3861 = vadd.f32 0.0, %v3860
        %v3862 = vpop.f32.mrf.mxu0
        %v3863 = vpop.f32.mrf.mxu0
        %v3864 = vadd.f32 0.0, %v3863
        %v3865 = vpop.f32.mrf.mxu0
        %3866 = vdwg.mxu0
        %v3867 = vpack.c.bf16 %v3741, %v3741
        %v3868 = vpack.c.bf16 %v3744, %v3744
        %v3869 = vpack.c.bf16 %v3749, %v3749
        %v3870 = vpack.c.bf16 %v3752, %v3752
        %v3871 = vpack.c.bf16 %v3757, %v3757
        %v3872 = vpack.c.bf16 %v3760, %v3760
        %v3873 = vpack.c.bf16 %v3765, %v3765
        %v3874 = vpack.c.bf16 %v3768, %v3768
        %v3875 = vpack.c.bf16 %v3773, %v3773
        %v3876 = vpack.c.bf16 %v3776, %v3776
        %v3877 = vpack.c.bf16 %v3781, %v3781
        %v3878 = vpack.c.bf16 %v3784, %v3784
        %v3879 = vpack.c.bf16 %v3789, %v3789
        %v3880 = vpack.c.bf16 %v3792, %v3792
        %v3881 = vpack.c.bf16 %v3797, %v3797
        %v3882 = vpack.c.bf16 %v3800, %v3800
        %v3883 = vpack.c.bf16 %v3805, %v3805
        %v3884 = vpack.c.bf16 %v3808, %v3808
        %v3885 = vpack.c.bf16 %v3813, %v3813
        %v3886 = vpack.c.bf16 %v3816, %v3816
        %v3887 = vpack.c.bf16 %v3821, %v3821
        %v3888 = vpack.c.bf16 %v3824, %v3824
        %v3889 = vpack.c.bf16 %v3829, %v3829
        %v3890 = vpack.c.bf16 %v3832, %v3832
        %v3891 = vpack.c.bf16 %v3837, %v3837
        %v3892 = vpack.c.bf16 %v3840, %v3840
        %v3893 = vpack.c.bf16 %v3845, %v3845
        %v3894 = vpack.c.bf16 %v3848, %v3848
        %v3895 = vpack.c.bf16 %v3853, %v3853
        %v3896 = vpack.c.bf16 %v3856, %v3856
        %v3897 = vpack.c.bf16 %v3861, %v3861
        %v3898 = vpack.c.bf16 %v3864, %v3864
        %vm3899 = vcmask 27648
        %3900 = vst.msk [vmem:[%s216] sm:$0xf] %vm3899, %v3867
        %3901 = vst.msk [vmem:[%s216 + $0x4] sm:$0xf] %vm3899, %v3868
        %3902 = vst.msk [vmem:[%s216 + $0x8] sm:$0xf] %vm3899, %v3869
        %3903 = vst.msk [vmem:[%s216 + $0xc] sm:$0xf] %vm3899, %v3870
        %3904 = vst.msk [vmem:[%s216 + $0x10] sm:$0xf] %vm3899, %v3871
        %3905 = vst.msk [vmem:[%s216 + $0x14] sm:$0xf] %vm3899, %v3872
        %3906 = vst.msk [vmem:[%s216 + $0x18] sm:$0xf] %vm3899, %v3873
        %3907 = vst.msk [vmem:[%s216 + $0x1c] sm:$0xf] %vm3899, %v3874
        %3908 = vst.msk [vmem:[%s216 + $0x20] sm:$0xf] %vm3899, %v3875
        %3909 = vst.msk [vmem:[%s216 + $0x24] sm:$0xf] %vm3899, %v3876
        %3910 = vst.msk [vmem:[%s216 + $0x28] sm:$0xf] %vm3899, %v3877
        %3911 = vst.msk [vmem:[%s216 + $0x2c] sm:$0xf] %vm3899, %v3878
        %3912 = vst.msk [vmem:[%s216 + $0x30] sm:$0xf] %vm3899, %v3879
        %3913 = vst.msk [vmem:[%s216 + $0x34] sm:$0xf] %vm3899, %v3880
        %3914 = vst.msk [vmem:[%s216 + $0x38] sm:$0xf] %vm3899, %v3881
        %3915 = vst.msk [vmem:[%s216 + $0x3c] sm:$0xf] %vm3899, %v3882
        %3916 = vst.msk [vmem:[%s216 + $0x40] sm:$0xf] %vm3899, %v3883
        %3917 = vst.msk [vmem:[%s216 + $0x44] sm:$0xf] %vm3899, %v3884
        %3918 = vst.msk [vmem:[%s216 + $0x48] sm:$0xf] %vm3899, %v3885
        %3919 = vst.msk [vmem:[%s216 + $0x4c] sm:$0xf] %vm3899, %v3886
        %3920 = vst.msk [vmem:[%s216 + $0x50] sm:$0xf] %vm3899, %v3887
        %3921 = vst.msk [vmem:[%s216 + $0x54] sm:$0xf] %vm3899, %v3888
        %3922 = vst.msk [vmem:[%s216 + $0x58] sm:$0xf] %vm3899, %v3889
        %3923 = vst.msk [vmem:[%s216 + $0x5c] sm:$0xf] %vm3899, %v3890
        %3924 = vst.msk [vmem:[%s216 + $0x60] sm:$0xf] %vm3899, %v3891
        %3925 = vst.msk [vmem:[%s216 + $0x64] sm:$0xf] %vm3899, %v3892
        %3926 = vst.msk [vmem:[%s216 + $0x68] sm:$0xf] %vm3899, %v3893
        %3927 = vst.msk [vmem:[%s216 + $0x6c] sm:$0xf] %vm3899, %v3894
        %3928 = vst.msk [vmem:[%s216 + $0x70] sm:$0xf] %vm3899, %v3895
        %3929 = vst.msk [vmem:[%s216 + $0x74] sm:$0xf] %vm3899, %v3896
        %3930 = vst.msk [vmem:[%s216 + $0x78] sm:$0xf] %vm3899, %v3897
        %3931 = vst.msk [vmem:[%s216 + $0x7c] sm:$0xf] %vm3899, %v3898
        %v3932 = vsel %vm2305, %v3741, 0.0
        %v3933 = vsel %vm2305, %v3744, 0.0
        %v3934 = vadd.f32 %v3932, %v3933
        %v3935 = vsel %vm2305, %v3749, 0.0
        %v3936 = vadd.f32 %v3934, %v3935
        %v3937 = vsel %vm2305, %v3752, 0.0
        %v3938 = vadd.f32 %v3936, %v3937
        %v3939 = vsel %vm2305, %v3757, 0.0
        %v3940 = vadd.f32 %v3938, %v3939
        %v3941 = vsel %vm2305, %v3760, 0.0
        %v3942 = vadd.f32 %v3940, %v3941
        %v3943 = vsel %vm2305, %v3765, 0.0
        %v3944 = vadd.f32 %v3942, %v3943
        %v3945 = vsel %vm2305, %v3768, 0.0
        %v3946 = vadd.f32 %v3944, %v3945
        %v3947 = vsel %vm2305, %v3773, 0.0
        %v3948 = vadd.f32 %v3946, %v3947
        %v3949 = vsel %vm2305, %v3776, 0.0
        %v3950 = vadd.f32 %v3948, %v3949
        %v3951 = vsel %vm2305, %v3781, 0.0
        %v3952 = vadd.f32 %v3950, %v3951
        %v3953 = vsel %vm2305, %v3784, 0.0
        %v3954 = vadd.f32 %v3952, %v3953
        %v3955 = vsel %vm2305, %v3789, 0.0
        %v3956 = vadd.f32 %v3954, %v3955
        %v3957 = vsel %vm2305, %v3792, 0.0
        %v3958 = vadd.f32 %v3956, %v3957
        %v3959 = vsel %vm2305, %v3797, 0.0
        %v3960 = vadd.f32 %v3958, %v3959
        %v3961 = vsel %vm2305, %v3800, 0.0
        %v3962 = vadd.f32 %v3960, %v3961
        %v3963 = vsel %vm2305, %v3805, 0.0
        %v3964 = vadd.f32 %v3962, %v3963
        %v3965 = vsel %vm2305, %v3808, 0.0
        %v3966 = vadd.f32 %v3964, %v3965
        %v3967 = vsel %vm2305, %v3813, 0.0
        %v3968 = vadd.f32 %v3966, %v3967
        %v3969 = vsel %vm2305, %v3816, 0.0
        %v3970 = vadd.f32 %v3968, %v3969
        %v3971 = vsel %vm2305, %v3821, 0.0
        %v3972 = vadd.f32 %v3970, %v3971
        %v3973 = vsel %vm2305, %v3824, 0.0
        %v3974 = vadd.f32 %v3972, %v3973
        %v3975 = vsel %vm2305, %v3829, 0.0
        %v3976 = vadd.f32 %v3974, %v3975
        %v3977 = vsel %vm2305, %v3832, 0.0
        %v3978 = vadd.f32 %v3976, %v3977
        %v3979 = vsel %vm2305, %v3837, 0.0
        %v3980 = vadd.f32 %v3978, %v3979
        %v3981 = vsel %vm2305, %v3840, 0.0
        %v3982 = vadd.f32 %v3980, %v3981
        %v3983 = vsel %vm2305, %v3845, 0.0
        %v3984 = vadd.f32 %v3982, %v3983
        %v3985 = vsel %vm2305, %v3848, 0.0
        %v3986 = vadd.f32 %v3984, %v3985
        %v3987 = vsel %vm2305, %v3853, 0.0
        %v3988 = vadd.f32 %v3986, %v3987
        %v3989 = vsel %vm2305, %v3856, 0.0
        %v3990 = vadd.f32 %v3988, %v3989
        %v3991 = vsel %vm2305, %v3861, 0.0
        %v3992 = vadd.f32 %v3990, %v3991
        %v3993 = vsel %vm2305, %v3864, 0.0
        %v3994 = vadd.f32 %v3992, %v3993
        %v3995 = vrot.slane %v3994, 4
        %v3996 = vadd.f32 %v3994, %v3995
        %v3997 = vrot.slane %v3996, 2
        %v3998 = vadd.f32 %v3996, %v3997
        %v3999 = vrot.slane %v3998, 1
        %v4000 = vadd.f32 %v3998, %v3999
        %vm4001 = vcmask 24576
        %4002 = vst.msk [vmem:[%s200] sm:$0x1] %vm4001, %v4000
        %v4003 = vmul.f32 %v3741, %v3741
        %v4004 = vmul.f32 %v3744, %v3744
        %v4005 = vmul.f32 %v3749, %v3749
        %v4006 = vmul.f32 %v3752, %v3752
        %v4007 = vmul.f32 %v3757, %v3757
        %v4008 = vmul.f32 %v3760, %v3760
        %v4009 = vmul.f32 %v3765, %v3765
        %v4010 = vmul.f32 %v3768, %v3768
        %v4011 = vmul.f32 %v3773, %v3773
        %v4012 = vmul.f32 %v3776, %v3776
        %v4013 = vmul.f32 %v3781, %v3781
        %v4014 = vmul.f32 %v3784, %v3784
        %v4015 = vmul.f32 %v3789, %v3789
        %v4016 = vmul.f32 %v3792, %v3792
        %v4017 = vmul.f32 %v3797, %v3797
        %v4018 = vmul.f32 %v3800, %v3800
        %v4019 = vmul.f32 %v3805, %v3805
        %v4020 = vmul.f32 %v3808, %v3808
        %v4021 = vmul.f32 %v3813, %v3813
        %v4022 = vmul.f32 %v3816, %v3816
        %v4023 = vmul.f32 %v3821, %v3821
        %v4024 = vmul.f32 %v3824, %v3824
        %v4025 = vmul.f32 %v3829, %v3829
        %v4026 = vmul.f32 %v3832, %v3832
        %v4027 = vmul.f32 %v3837, %v3837
        %v4028 = vmul.f32 %v3840, %v3840
        %v4029 = vmul.f32 %v3845, %v3845
        %v4030 = vmul.f32 %v3848, %v3848
        %v4031 = vmul.f32 %v3853, %v3853
        %v4032 = vmul.f32 %v3856, %v3856
        %v4033 = vmul.f32 %v3861, %v3861
        %v4034 = vmul.f32 %v3864, %v3864
        %v4035 = vsel %vm2305, %v4003, 0.0
        %v4036 = vsel %vm2305, %v4004, 0.0
        %v4037 = vadd.f32 %v4035, %v4036
        %v4038 = vsel %vm2305, %v4005, 0.0
        %v4039 = vadd.f32 %v4037, %v4038
        %v4040 = vsel %vm2305, %v4006, 0.0
        %v4041 = vadd.f32 %v4039, %v4040
        %v4042 = vsel %vm2305, %v4007, 0.0
        %v4043 = vadd.f32 %v4041, %v4042
        %v4044 = vsel %vm2305, %v4008, 0.0
        %v4045 = vadd.f32 %v4043, %v4044
        %v4046 = vsel %vm2305, %v4009, 0.0
        %v4047 = vadd.f32 %v4045, %v4046
        %v4048 = vsel %vm2305, %v4010, 0.0
        %v4049 = vadd.f32 %v4047, %v4048
        %v4050 = vsel %vm2305, %v4011, 0.0
        %v4051 = vadd.f32 %v4049, %v4050
        %v4052 = vsel %vm2305, %v4012, 0.0
        %v4053 = vadd.f32 %v4051, %v4052
        %v4054 = vsel %vm2305, %v4013, 0.0
        %v4055 = vadd.f32 %v4053, %v4054
        %v4056 = vsel %vm2305, %v4014, 0.0
        %v4057 = vadd.f32 %v4055, %v4056
        %v4058 = vsel %vm2305, %v4015, 0.0
        %v4059 = vadd.f32 %v4057, %v4058
        %v4060 = vsel %vm2305, %v4016, 0.0
        %v4061 = vadd.f32 %v4059, %v4060
        %v4062 = vsel %vm2305, %v4017, 0.0
        %v4063 = vadd.f32 %v4061, %v4062
        %v4064 = vsel %vm2305, %v4018, 0.0
        %v4065 = vadd.f32 %v4063, %v4064
        %v4066 = vsel %vm2305, %v4019, 0.0
        %v4067 = vadd.f32 %v4065, %v4066
        %v4068 = vsel %vm2305, %v4020, 0.0
        %v4069 = vadd.f32 %v4067, %v4068
        %v4070 = vsel %vm2305, %v4021, 0.0
        %v4071 = vadd.f32 %v4069, %v4070
        %v4072 = vsel %vm2305, %v4022, 0.0
        %v4073 = vadd.f32 %v4071, %v4072
        %v4074 = vsel %vm2305, %v4023, 0.0
        %v4075 = vadd.f32 %v4073, %v4074
        %v4076 = vsel %vm2305, %v4024, 0.0
        %v4077 = vadd.f32 %v4075, %v4076
        %v4078 = vsel %vm2305, %v4025, 0.0
        %v4079 = vadd.f32 %v4077, %v4078
        %v4080 = vsel %vm2305, %v4026, 0.0
        %v4081 = vadd.f32 %v4079, %v4080
        %v4082 = vsel %vm2305, %v4027, 0.0
        %v4083 = vadd.f32 %v4081, %v4082
        %v4084 = vsel %vm2305, %v4028, 0.0
        %v4085 = vadd.f32 %v4083, %v4084
        %v4086 = vsel %vm2305, %v4029, 0.0
        %v4087 = vadd.f32 %v4085, %v4086
        %v4088 = vsel %vm2305, %v4030, 0.0
        %v4089 = vadd.f32 %v4087, %v4088
        %v4090 = vsel %vm2305, %v4031, 0.0
        %v4091 = vadd.f32 %v4089, %v4090
        %v4092 = vsel %vm2305, %v4032, 0.0
        %v4093 = vadd.f32 %v4091, %v4092
        %v4094 = vsel %vm2305, %v4033, 0.0
        %v4095 = vadd.f32 %v4093, %v4094
        %v4096 = vsel %vm2305, %v4034, 0.0
        %v4097 = vadd.f32 %v4095, %v4096
        %v4098 = vrot.slane %v4097, 4
        %v4099 = vadd.f32 %v4097, %v4098
        %v4100 = vrot.slane %v4099, 2
        %v4101 = vadd.f32 %v4099, %v4100
        %v4102 = vrot.slane %v4101, 1
        %v4103 = vadd.f32 %v4101, %v4102
        %4104 = vst.msk [vmem:[%s206] sm:$0x1] %vm4001, %v4103
        %p4105 = scmp.lt.s32.totalorder %s22, 3
        %s4106 = scalar_select %p4105, %s22, 3
        %s4107 = smul.addr %s4106, 32
        %s4108 = smul.addr %s4107, 4
        %s4109 = scalar_lea.vmem %s2, %s4108
        %s4110 = sand.u32 %s103, 1
        %s4111 = scalar_lea.sflag [#allocation3], %s4110
        %s4112 = sand.u32 %s103, 1
        %s4113 = scalar_lea.vmem [#allocation2], %s4112
        %s4114 = sand.u32 %s129, 1
        %s4115 = scalar_lea.sflag [#allocation5], %s4114
        %s4116 = sand.u32 %s129, 1
        %s4117 = scalar_lea.vmem [#allocation4], %s4116
        // Predicated region
        $region29: #{tpu_custom_call.1} parent=27 // pred_check
          %p4118 = pneg %p87
        $region30: #{tpu_custom_call.1} parent=27 // pred_check_branch
          %4120 = sbr.rel (%p4118) target = $region32
        $region31: #{tpu_custom_call.1} parent=27 // pred_region
          _
        $region32: #{tpu_custom_call.1} parent=27 // pred_fallthru
          _
        // Predicated region
        $region33: #{tpu_custom_call.1} parent=27 // pred_check
          %p4121 = pneg %p113
        $region34: #{tpu_custom_call.1} parent=27 // pred_check_branch
          %4123 = sbr.rel (%p4121) target = $region36
        $region35: #{tpu_custom_call.1} parent=27 // pred_region
          %s4125 = ssub.s32 16, 16
          %4126 = vsyncadd %s4111, %s4125
          %s4127 = smul.addr %s22, 16
          %s4128 = scalar_lea.hbm %s3, %s4127
          %s4130 = sshll.u32 %s4113, 4
          %s4131 = int_to_ptr.vmem [resolvable:$true] %s4130
          %4133 = dma.vmem_to_hbm [thread:$0]  %s4131, 16, %s4128, %s4111
        $region36: #{tpu_custom_call.1} parent=27 // pred_fallthru
          _
        // Predicated region
        $region37: #{tpu_custom_call.1} parent=27 // pred_check
          %p4134 = pneg %p139
        $region38: #{tpu_custom_call.1} parent=27 // pred_check_branch
          %4136 = sbr.rel (%p4134) target = $region40
        $region39: #{tpu_custom_call.1} parent=27 // pred_region
          %s4138 = ssub.s32 16, 16
          %4139 = vsyncadd %s4115, %s4138
          %s4140 = smul.addr %s22, 16
          %s4141 = scalar_lea.hbm %s4, %s4140
          %s4143 = sshll.u32 %s4117, 4
          %s4144 = int_to_ptr.vmem [resolvable:$true] %s4143
          %4146 = dma.vmem_to_hbm [thread:$0]  %s4144, 16, %s4141, %s4115
        $region40: #{tpu_custom_call.1} parent=27 // pred_fallthru
          _
      $region28: #{tpu_custom_call.1} parent=5 // pred_fallthru
        _
      %p4147 = scmp.le.s32.totalorder 2, %s17
      // Predicated region
      $region41: #{tpu_custom_call.1} parent=5 // pred_check
        %p4148 = pneg %p4147
      $region42: #{tpu_custom_call.1} parent=5 // pred_check_branch
        %4150 = sbr.rel (%p4148) target = $region44
      $region43: #{tpu_custom_call.1} parent=5 // pred_region
        %s4151 = ssub.s32 %s17, 2
        // Predicated region
        $region45: #{tpu_custom_call.1} parent=43 // pred_check
          %p4152 = pneg %p93
        $region46: #{tpu_custom_call.1} parent=43 // pred_check_branch
          %4154 = sbr.rel (%p4152) target = $region48
        $region47: #{tpu_custom_call.1} parent=43 // pred_region
          %p4155 = scmp.lt.s32.totalorder %s23, 3
          %s4156 = scalar_select %p4155, %s23, 3
          %s4157 = smul.addr %s4156, 32
          %s4158 = smul.addr %s4157, 4
          %s4159 = scalar_lea.vmem %s2, %s4158
        $region48: #{tpu_custom_call.1} parent=43 // pred_fallthru
          _
        // Predicated region
        $region49: #{tpu_custom_call.1} parent=43 // pred_check
          %p4160 = pneg %p119
        $region50: #{tpu_custom_call.1} parent=43 // pred_check_branch
          %4162 = sbr.rel (%p4160) target = $region52
        $region51: #{tpu_custom_call.1} parent=43 // pred_region
          %s4163 = sand.u32 %s104, 1
          %s4164 = scalar_lea.sflag [#allocation3], %s4163
          %s4165 = sand.u32 %s104, 1
          %s4166 = scalar_lea.vmem [#allocation2], %s4165
          %4167 = dma.done %s4164, 16
        $region52: #{tpu_custom_call.1} parent=43 // pred_fallthru
          _
        // Predicated region
        $region53: #{tpu_custom_call.1} parent=43 // pred_check
          %p4168 = pneg %p145
        $region54: #{tpu_custom_call.1} parent=43 // pred_check_branch
          %4170 = sbr.rel (%p4168) target = $region56
        $region55: #{tpu_custom_call.1} parent=43 // pred_region
          %s4171 = sand.u32 %s130, 1
          %s4172 = scalar_lea.sflag [#allocation5], %s4171
          %s4173 = sand.u32 %s130, 1
          %s4174 = scalar_lea.vmem [#allocation4], %s4173
          %4175 = dma.done %s4172, 16
        $region56: #{tpu_custom_call.1} parent=43 // pred_fallthru
          _
      $region44: #{tpu_custom_call.1} parent=5 // pred_fallthru
        _
    $region6: #{tpu_custom_call.1} parent=1 // loop_footer
      %s21 = sadd.s32 1, %s17
    $region7: #{tpu_custom_call.1} parent=1 // loop_footer_branch
      %16 = sbr.rel target = $region3
    $region8: #{tpu_custom_call.1} parent=1 // loop_exit
      _
    %4176 = vsyncpa [#allocation3], 1
    %s4177 = scalar_lea.sflag [#allocation3], 1
    %4178 = vsyncpa %s4177, 1
    %4179 = vsyncpa [#allocation5], 1
    %s4180 = scalar_lea.sflag [#allocation5], 1
    %4181 = vsyncpa %s4180, 1

</llo_original>
